<compile_context>
chip_gen: v5e
topology: v5e:2x2
jax: 0.10.0
libtpu: 0.0.40
codegen_flags: <defaults>
</compile_context>

<pallas_src>
import functools
import math

import jax
import jax.numpy as jnp
from jax.experimental import pallas as pl
from jax.experimental.pallas import tpu as pltpu

LANE = 128


def _round_up(x, m=LANE):
    return ((x + m - 1) // m) * m


# ----------------------------------------------------------------------------
# Padding helpers (run once at parameter-construction time)
# ----------------------------------------------------------------------------
def _pad_2d(a, rows, cols):
    """Zero-pad a 2-D array into a (rows, cols) slab (top-left placement)."""
    out = jnp.zeros((rows, cols), a.dtype)
    return out.at[: a.shape[0], : a.shape[1]].set(a)


def _pad_grouped_cols(a, rows, group_in, group_out, n_groups):
    """(r, n_groups*group_in) -> (rows, n_groups*group_out); group g's columns land at
    column offset g*group_out (lane-aligned per-group layout), everything else zero."""
    out = jnp.zeros((rows, n_groups * group_out), a.dtype)
    for g in range(n_groups):
        out = out.at[: a.shape[0], g * group_out: g * group_out + group_in].set(
            a[:, g * group_in:(g + 1) * group_in])
    return out


# ----------------------------------------------------------------------------
# Fused kernel: ResFNN+Tanh initial state -> stacked LSTM -> Linear, one pallas_call.
# ----------------------------------------------------------------------------
def _lstm_generator_kernel(*refs, num_layers, seq_len, res1):
    (z_ref, z0_ref,
     w1_ref, b1_ref, w2_ref, b2_ref, w3_ref, b3_ref) = refs[:8]
    lstm_refs = refs[8:8 + 3 * num_layers]
    lin_w_ref = refs[8 + 3 * num_layers]
    lin_b_ref = refs[9 + 3 * num_layers]
    out_ref = refs[10 + 3 * num_layers]
    seq_sc = refs[11 + 3 * num_layers]       # (T, B, Hp) inter-layer h-sequence
    gin_sc = refs[12 + 3 * num_layers]       # (T, B, 4*Hp) hoisted gate pre-activations

    T = seq_len
    _, B, Hp = seq_sc.shape

    # ---- initial_nn: ResFNN(D -> [H, H] -> H*L) + Tanh (all lane-padded) -------------
    x0 = z0_ref[...]                                                    # (B, Dp)
    y1 = jnp.dot(x0, w1_ref[...], preferred_element_type=jnp.float32) + b1_ref[...]
    y1 = jnp.maximum(y1, 0.0)
    if res1:                                                            # residual iff D == H (static)
        y1 = x0 + y1
    y2 = jnp.dot(y1, w2_ref[...], preferred_element_type=jnp.float32) + b2_ref[...]
    y2 = y1 + jnp.maximum(y2, 0.0)                                      # H == H residual
    h0_all = jnp.tanh(
        jnp.dot(y2, w3_ref[...], preferred_element_type=jnp.float32) + b3_ref[...]
    )                                                                   # (B, L*Hp), padded lanes == 0

    # ---- stacked LSTM (PyTorch gate order i, f, g, o; fused b_ih + b_hh bias) ---------
    for layer in range(num_layers):
        wih = lstm_refs[3 * layer + 0][...]                             # (Dp_in, 4*Hp)
        whh = lstm_refs[3 * layer + 1][...]                             # (Hp,   4*Hp)
        b = lstm_refs[3 * layer + 2][...]                               # (1,    4*Hp)

        # Input projection hoisted out of the recurrence: whole sequence at once,
        # off the serial critical path (contract on the feature axis of (T, B, D_in)).
        x3 = z_ref[...] if layer == 0 else seq_sc[...]
        gin3 = jax.lax.dot_general(
            x3, wih, (((2,), (0,)), ((), ())),
            preferred_element_type=jnp.float32) + b[None]               # (T, B, 4*Hp)
        gin_sc[...] = gin3

        h0 = h0_all[:, layer * Hp:(layer + 1) * Hp]                     # lane-aligned 128-wide slice
        c0 = jnp.zeros((B, Hp), jnp.float32)

        def step(t, carry):
            h, c = carry
            g = gin_sc[t] + jnp.dot(h, whh, preferred_element_type=jnp.float32)  # (B, 4*Hp)
            i_g = jax.nn.sigmoid(g[:, 0 * Hp:1 * Hp])                   # all slices vreg-aligned
            f_g = jax.nn.sigmoid(g[:, 1 * Hp:2 * Hp])
            g_g = jnp.tanh(g[:, 2 * Hp:3 * Hp])
            o_g = jax.nn.sigmoid(g[:, 3 * Hp:4 * Hp])
            c = f_g * c + i_g * g_g
            h = o_g * jnp.tanh(c)
            seq_sc[t] = h
            return h, c

        jax.lax.fori_loop(0, T, step, (h0, c0), unroll=True)

    # ---- final Linear(H -> O) over the whole hidden sequence (lane-dense store) -------
    y3 = jax.lax.dot_general(
        seq_sc[...], lin_w_ref[...], (((2,), (0,)), ((), ())),
        preferred_element_type=jnp.float32) + lin_b_ref[...][None]      # (T, B, Op)
    out_ref[...] = y3


def _fused_call(z_tm_pad, z0_pad, params, *, num_layers, n_lags, batch_size,
                hidden_pad, out_pad, res1):
    T, B, Hp, Op = n_lags, batch_size, hidden_pad, out_pad

    args = [z_tm_pad, z0_pad,
            params["rf_w1"], params["rf_b1"],
            params["rf_w2"], params["rf_b2"],
            params["rf_w3"], params["rf_b3"]]
    for layer in range(num_layers):
        lw = params["lstm"][layer]
        args += [lw["wih"], lw["whh"], lw["bias"]]
    args += [params["lin_w"], params["lin_b"]]

    vmem = pl.BlockSpec(memory_space=pltpu.MemorySpace.VMEM)
    kernel = functools.partial(_lstm_generator_kernel,
                               num_layers=num_layers, seq_len=T, res1=res1)
    return pl.pallas_call(
        kernel,
        out_shape=jax.ShapeDtypeStruct((T, B, Op), jnp.float32),
        in_specs=[vmem] * len(args),
        out_specs=vmem,
        scratch_shapes=[
            pltpu.VMEM((T, B, Hp), jnp.float32),        # inter-layer h-sequence
            pltpu.VMEM((T, B, 4 * Hp), jnp.float32),    # hoisted gate pre-activations
        ],
    )(*args)


# ----------------------------------------------------------------------------
# Parameter construction (mirrors the PyTorch module's init; stored lane-padded)
# ----------------------------------------------------------------------------
def init_params(key, input_dim, output_dim, hidden_dim, num_layers):
    Dp = _round_up(max(input_dim, 1))
    Hp = _round_up(hidden_dim)
    Op = _round_up(output_dim)

    keys = jax.random.split(key, 4 + 4 * num_layers)
    ki = iter(keys)

    def xavier_relu(k, fan_in, fan_out):
        gain = math.sqrt(2.0)  # nn.init.calculate_gain('relu')
        bound = gain * math.sqrt(6.0 / (fan_in + fan_out))
        return jax.random.uniform(k, (fan_in, fan_out), jnp.float32, -bound, bound)

    p = {}
    # initial_nn: ResFNN(input_dim, hidden*num_layers, [hidden, hidden]) then Tanh;
    # all Linear weights xavier(relu gain), zero bias (init_weights).
    p["rf_w1"] = _pad_2d(xavier_relu(next(ki), input_dim, hidden_dim), Dp, Hp)
    p["rf_b1"] = jnp.zeros((1, Hp), jnp.float32)
    p["rf_w2"] = _pad_2d(xavier_relu(next(ki), hidden_dim, hidden_dim), Hp, Hp)
    p["rf_b2"] = jnp.zeros((1, Hp), jnp.float32)
    p["rf_w3"] = _pad_grouped_cols(
        xavier_relu(next(ki), hidden_dim, hidden_dim * num_layers),
        Hp, hidden_dim, Hp, num_layers)
    p["rf_b3"] = jnp.zeros((1, num_layers * Hp), jnp.float32)

    # LSTM layers: PyTorch default init U(-1/sqrt(H), 1/sqrt(H)); gate order i, f, g, o.
    k_l = 1.0 / math.sqrt(hidden_dim)
    p["lstm"] = []
    for layer in range(num_layers):
        d_in = input_dim if layer == 0 else hidden_dim
        d_in_pad = Dp if layer == 0 else Hp
        wih = jax.random.uniform(next(ki), (d_in, 4 * hidden_dim), jnp.float32, -k_l, k_l)
        whh = jax.random.uniform(next(ki), (hidden_dim, 4 * hidden_dim), jnp.float32, -k_l, k_l)
        bih = jax.random.uniform(next(ki), (4 * hidden_dim,), jnp.float32, -k_l, k_l)
        bhh = jax.random.uniform(next(ki), (4 * hidden_dim,), jnp.float32, -k_l, k_l)
        bias = (bih + bhh).reshape(1, 4 * hidden_dim)
        p["lstm"].append({
            "wih": _pad_grouped_cols(wih, d_in_pad, hidden_dim, Hp, 4),
            "whh": _pad_grouped_cols(whh, Hp, hidden_dim, Hp, 4),
            "bias": _pad_grouped_cols(bias, 1, hidden_dim, Hp, 4),
        })

    # final Linear(hidden_dim -> output_dim): xavier(relu gain), zero bias.
    p["lin_w"] = _pad_2d(xavier_relu(next(ki), hidden_dim, output_dim), Hp, Op)
    p["lin_b"] = jnp.zeros((1, Op), jnp.float32)
    return p


# ----------------------------------------------------------------------------
# Full forward pass of LSTMGenerator
# ----------------------------------------------------------------------------
def lstm_generator_forward(params, key, batch_size, n_lags,
                           input_dim, output_dim, hidden_dim, num_layers):
    Dp = _round_up(max(input_dim, 1))
    Hp = _round_up(hidden_dim)
    Op = _round_up(output_dim)

    k_z, k_z0 = jax.random.split(key)

    # Noise prep (matches the module: 0.1*randn, zero first lag, cumsum over time).
    # Generated with jax.random in the wrapper (distribution-equivalent to torch.randn).
    z = 0.1 * jax.random.normal(k_z, (batch_size, n_lags, input_dim), jnp.float32)
    z = z.at[:, 0, :].set(0.0)
    z = jnp.cumsum(z, axis=1)
    z_tm = jnp.transpose(z, (1, 0, 2))                                  # (T, B, D) time-major
    z_tm_pad = jnp.zeros((n_lags, batch_size, Dp), jnp.float32).at[:, :, :input_dim].set(z_tm)

    z0 = jax.random.normal(k_z0, (batch_size, input_dim), jnp.float32)
    z0_pad = jnp.zeros((batch_size, Dp), jnp.float32).at[:, :input_dim].set(z0)

    res1 = (input_dim == hidden_dim)

    y_pad = _fused_call(z_tm_pad, z0_pad, params,
                        num_layers=num_layers, n_lags=n_lags, batch_size=batch_size,
                        hidden_pad=Hp, out_pad=Op, res1=res1)           # (T, B, Op)

    # Strip lane padding and return batch-first (B, T, output_dim), matching batch_first=True.
    return jnp.transpose(y_pad[:, :, :output_dim], (1, 0, 2))


if __name__ == "__main__":
    batch_size, n_lags = 2, 8
    input_dim, output_dim, hidden_dim, num_layers = 4, 3, 32, 2

    key = jax.random.PRNGKey(0)
    k_params, k_noise = jax.random.split(key)

    params = init_params(k_params, input_dim, output_dim, hidden_dim, num_layers)

    out = lstm_generator_forward(params, k_noise, batch_size, n_lags,
                                 input_dim, output_dim, hidden_dim, num_layers)
    out = jax.block_until_ready(out)

    assert out.shape == (batch_size, n_lags, output_dim), out.shape
    assert out.dtype == jnp.float32
    assert bool(jnp.all(jnp.isfinite(out)))
    print("KERNEL_OK")
</pallas_src>

<mosaic_0001>
module attributes {stable_mosaic.version = 11 : i64} {
  func.func @_lstm_generator_kernel(%arg0: memref<8x2x128xf32, #tpu.memory_space<vmem>>, %arg1: memref<2x128xf32, #tpu.memory_space<vmem>>, %arg2: memref<128x128xf32, #tpu.memory_space<vmem>>, %arg3: memref<1x128xf32, #tpu.memory_space<vmem>>, %arg4: memref<128x128xf32, #tpu.memory_space<vmem>>, %arg5: memref<1x128xf32, #tpu.memory_space<vmem>>, %arg6: memref<128x256xf32, #tpu.memory_space<vmem>>, %arg7: memref<1x256xf32, #tpu.memory_space<vmem>>, %arg8: memref<128x512xf32, #tpu.memory_space<vmem>>, %arg9: memref<128x512xf32, #tpu.memory_space<vmem>>, %arg10: memref<1x512xf32, #tpu.memory_space<vmem>>, %arg11: memref<128x512xf32, #tpu.memory_space<vmem>>, %arg12: memref<128x512xf32, #tpu.memory_space<vmem>>, %arg13: memref<1x512xf32, #tpu.memory_space<vmem>>, %arg14: memref<128x128xf32, #tpu.memory_space<vmem>>, %arg15: memref<1x128xf32, #tpu.memory_space<vmem>>, %arg16: memref<8x2x128xf32, #tpu.memory_space<vmem>>, %arg17: memref<8x2x128xf32, #tpu.memory_space<vmem>>, %arg18: memref<8x2x512xf32, #tpu.memory_space<vmem>>) attributes {dimension_semantics = [], scalar_prefetch = 0 : i64, scratch_operands = 2 : i64, tpu.core_type = #tpu.core_type<tc>} {
    %c0 = arith.constant 0 : index
    %c0_0 = arith.constant 0 : index
    %0 = vector.load %arg1[%c0, %c0_0] : memref<2x128xf32, #tpu.memory_space<vmem>>, vector<2x128xf32>
    %c0_1 = arith.constant 0 : index
    %c0_2 = arith.constant 0 : index
    %1 = vector.load %arg2[%c0_1, %c0_2] : memref<128x128xf32, #tpu.memory_space<vmem>>, vector<128x128xf32>
    %cst = arith.constant dense<0.000000e+00> : vector<2x128xf32>
    %2 = tpu.matmul %0, %1, %cst {dimension_numbers = #tpu.dot_dimension_numbers<[1], [0], [0], [1], [0, 0, 1, 1], [], []>} : vector<2x128xf32>, vector<128x128xf32>, vector<2x128xf32> -> vector<2x128xf32>
    %c0_3 = arith.constant 0 : index
    %c0_4 = arith.constant 0 : index
    %3 = vector.load %arg3[%c0_3, %c0_4] : memref<1x128xf32, #tpu.memory_space<vmem>>, vector<1x128xf32>
    %4 = vector.broadcast %3 : vector<1x128xf32> to vector<2x128xf32>
    %5 = arith.addf %2, %4 : vector<2x128xf32>
    %cst_5 = arith.constant 0.000000e+00 : f32
    %6 = vector.broadcast %cst_5 : f32 to vector<2x128xf32>
    %7 = arith.maximumf %5, %6 : vector<2x128xf32>
    %c0_6 = arith.constant 0 : index
    %c0_7 = arith.constant 0 : index
    %8 = vector.load %arg4[%c0_6, %c0_7] : memref<128x128xf32, #tpu.memory_space<vmem>>, vector<128x128xf32>
    %cst_8 = arith.constant dense<0.000000e+00> : vector<2x128xf32>
    %9 = tpu.matmul %7, %8, %cst_8 {dimension_numbers = #tpu.dot_dimension_numbers<[1], [0], [0], [1], [0, 0, 1, 1], [], []>} : vector<2x128xf32>, vector<128x128xf32>, vector<2x128xf32> -> vector<2x128xf32>
    %c0_9 = arith.constant 0 : index
    %c0_10 = arith.constant 0 : index
    %10 = vector.load %arg5[%c0_9, %c0_10] : memref<1x128xf32, #tpu.memory_space<vmem>>, vector<1x128xf32>
    %11 = vector.broadcast %10 : vector<1x128xf32> to vector<2x128xf32>
    %12 = arith.addf %9, %11 : vector<2x128xf32>
    %cst_11 = arith.constant 0.000000e+00 : f32
    %13 = vector.broadcast %cst_11 : f32 to vector<2x128xf32>
    %14 = arith.maximumf %12, %13 : vector<2x128xf32>
    %15 = arith.addf %7, %14 : vector<2x128xf32>
    %c0_12 = arith.constant 0 : index
    %c0_13 = arith.constant 0 : index
    %16 = vector.load %arg6[%c0_12, %c0_13] : memref<128x256xf32, #tpu.memory_space<vmem>>, vector<128x256xf32>
    %cst_14 = arith.constant dense<0.000000e+00> : vector<2x256xf32>
    %17 = tpu.matmul %15, %16, %cst_14 {dimension_numbers = #tpu.dot_dimension_numbers<[1], [0], [0], [1], [0, 0, 1, 1], [], []>} : vector<2x128xf32>, vector<128x256xf32>, vector<2x256xf32> -> vector<2x256xf32>
    %c0_15 = arith.constant 0 : index
    %c0_16 = arith.constant 0 : index
    %18 = vector.load %arg7[%c0_15, %c0_16] : memref<1x256xf32, #tpu.memory_space<vmem>>, vector<1x256xf32>
    %19 = vector.broadcast %18 : vector<1x256xf32> to vector<2x256xf32>
    %20 = arith.addf %17, %19 : vector<2x256xf32>
    %21 = math.tanh %20 : vector<2x256xf32>
    %c0_17 = arith.constant 0 : index
    %c0_18 = arith.constant 0 : index
    %22 = vector.load %arg8[%c0_17, %c0_18] : memref<128x512xf32, #tpu.memory_space<vmem>>, vector<128x512xf32>
    %c0_19 = arith.constant 0 : index
    %c0_20 = arith.constant 0 : index
    %23 = vector.load %arg9[%c0_19, %c0_20] : memref<128x512xf32, #tpu.memory_space<vmem>>, vector<128x512xf32>
    %c0_21 = arith.constant 0 : index
    %c0_22 = arith.constant 0 : index
    %24 = vector.load %arg10[%c0_21, %c0_22] : memref<1x512xf32, #tpu.memory_space<vmem>>, vector<1x512xf32>
    %c0_23 = arith.constant 0 : index
    %c0_24 = arith.constant 0 : index
    %c0_25 = arith.constant 0 : index
    %25 = vector.load %arg0[%c0_23, %c0_24, %c0_25] : memref<8x2x128xf32, #tpu.memory_space<vmem>>, vector<8x2x128xf32>
    %cst_26 = arith.constant dense<0.000000e+00> : vector<8x2x512xf32>
    %26 = tpu.matmul %25, %22, %cst_26 {dimension_numbers = #tpu.dot_dimension_numbers<[2], [0], [0, 1], [1], [0, 0, 0, 1, 1, 1], [], []>} : vector<8x2x128xf32>, vector<128x512xf32>, vector<8x2x512xf32> -> vector<8x2x512xf32>
    %27 = vector.shape_cast %24 : vector<1x512xf32> to vector<1x1x512xf32>
    %28 = vector.broadcast %27 : vector<1x1x512xf32> to vector<8x2x512xf32>
    %29 = arith.addf %26, %28 : vector<8x2x512xf32>
    %c0_27 = arith.constant 0 : index
    %c0_28 = arith.constant 0 : index
    %c0_29 = arith.constant 0 : index
    %30 = vector.load %arg18[%c0_27, %c0_28, %c0_29] : memref<8x2x512xf32, #tpu.memory_space<vmem>>, vector<8x2x512xf32>
    tpu.vector_store %arg18[%c0_27, %c0_28, %c0_29], %29 {strides = array<i32>} : memref<8x2x512xf32, #tpu.memory_space<vmem>>, vector<8x2x512xf32>,
    %31 = vector.extract_strided_slice %21 {offsets = [0, 0], sizes = [2, 128], strides = [1, 1]} : vector<2x256xf32> to vector<2x128xf32>
    %cst_30 = arith.constant 0.000000e+00 : f32
    %32 = vector.broadcast %cst_30 : f32 to vector<2x128xf32>
    %c0_i32 = arith.constant 0 : i32
    %33 = arith.index_cast %c0_i32 : i32 to index
    %c0_31 = arith.constant 0 : index
    %c0_32 = arith.constant 0 : index
    %34 = vector.load %arg18[%33, %c0_31, %c0_32] : memref<8x2x512xf32, #tpu.memory_space<vmem>>, vector<1x2x512xf32>
    %35 = vector.shape_cast %34 : vector<1x2x512xf32> to vector<2x512xf32>
    %cst_33 = arith.constant dense<0.000000e+00> : vector<2x512xf32>
    %36 = tpu.matmul %31, %23, %cst_33 {dimension_numbers = #tpu.dot_dimension_numbers<[1], [0], [0], [1], [0, 0, 1, 1], [], []>} : vector<2x128xf32>, vector<128x512xf32>, vector<2x512xf32> -> vector<2x512xf32>
    %37 = arith.addf %35, %36 : vector<2x512xf32>
    %38 = vector.extract_strided_slice %37 {offsets = [0, 0], sizes = [2, 128], strides = [1, 1]} : vector<2x512xf32> to vector<2x128xf32>
    %39 = arith.negf %38 : vector<2x128xf32>
    %40 = math.exp %39 : vector<2x128xf32>
    %cst_34 = arith.constant 1.000000e+00 : f32
    %41 = vector.broadcast %cst_34 : f32 to vector<2x128xf32>
    %42 = arith.addf %41, %40 : vector<2x128xf32>
    %43 = arith.divf %41, %42 : vector<2x128xf32>
    %44 = vector.extract_strided_slice %37 {offsets = [0, 128], sizes = [2, 128], strides = [1, 1]} : vector<2x512xf32> to vector<2x128xf32>
    %45 = arith.negf %44 : vector<2x128xf32>
    %46 = math.exp %45 : vector<2x128xf32>
    %cst_35 = arith.constant 1.000000e+00 : f32
    %47 = vector.broadcast %cst_35 : f32 to vector<2x128xf32>
    %48 = arith.addf %47, %46 : vector<2x128xf32>
    %49 = arith.divf %47, %48 : vector<2x128xf32>
    %50 = vector.extract_strided_slice %37 {offsets = [0, 256], sizes = [2, 128], strides = [1, 1]} : vector<2x512xf32> to vector<2x128xf32>
    %51 = math.tanh %50 : vector<2x128xf32>
    %52 = vector.extract_strided_slice %37 {offsets = [0, 384], sizes = [2, 128], strides = [1, 1]} : vector<2x512xf32> to vector<2x128xf32>
    %53 = arith.negf %52 : vector<2x128xf32>
    %54 = math.exp %53 : vector<2x128xf32>
    %cst_36 = arith.constant 1.000000e+00 : f32
    %55 = vector.broadcast %cst_36 : f32 to vector<2x128xf32>
    %56 = arith.addf %55, %54 : vector<2x128xf32>
    %57 = arith.divf %55, %56 : vector<2x128xf32>
    %58 = arith.mulf %49, %32 : vector<2x128xf32>
    %59 = arith.mulf %43, %51 : vector<2x128xf32>
    %60 = arith.addf %58, %59 : vector<2x128xf32>
    %61 = math.tanh %60 : vector<2x128xf32>
    %62 = arith.mulf %57, %61 : vector<2x128xf32>
    %63 = arith.index_cast %c0_i32 : i32 to index
    %c0_37 = arith.constant 0 : index
    %c0_38 = arith.constant 0 : index
    %64 = vector.load %arg17[%63, %c0_37, %c0_38] : memref<8x2x128xf32, #tpu.memory_space<vmem>>, vector<1x2x128xf32>
    %65 = vector.shape_cast %64 : vector<1x2x128xf32> to vector<2x128xf32>
    %66 = vector.shape_cast %62 : vector<2x128xf32> to vector<1x2x128xf32>
    tpu.vector_store %arg17[%63, %c0_37, %c0_38], %66 {strides = array<i32>} : memref<8x2x128xf32, #tpu.memory_space<vmem>>, vector<1x2x128xf32>,
    %c1_i32 = arith.constant 1 : i32
    %67 = arith.index_cast %c1_i32 : i32 to index
    %c0_39 = arith.constant 0 : index
    %c0_40 = arith.constant 0 : index
    %68 = vector.load %arg18[%67, %c0_39, %c0_40] : memref<8x2x512xf32, #tpu.memory_space<vmem>>, vector<1x2x512xf32>
    %69 = vector.shape_cast %68 : vector<1x2x512xf32> to vector<2x512xf32>
    %cst_41 = arith.constant dense<0.000000e+00> : vector<2x512xf32>
    %70 = tpu.matmul %62, %23, %cst_41 {dimension_numbers = #tpu.dot_dimension_numbers<[1], [0], [0], [1], [0, 0, 1, 1], [], []>} : vector<2x128xf32>, vector<128x512xf32>, vector<2x512xf32> -> vector<2x512xf32>
    %71 = arith.addf %69, %70 : vector<2x512xf32>
    %72 = vector.extract_strided_slice %71 {offsets = [0, 0], sizes = [2, 128], strides = [1, 1]} : vector<2x512xf32> to vector<2x128xf32>
    %73 = arith.negf %72 : vector<2x128xf32>
    %74 = math.exp %73 : vector<2x128xf32>
    %cst_42 = arith.constant 1.000000e+00 : f32
    %75 = vector.broadcast %cst_42 : f32 to vector<2x128xf32>
    %76 = arith.addf %75, %74 : vector<2x128xf32>
    %77 = arith.divf %75, %76 : vector<2x128xf32>
    %78 = vector.extract_strided_slice %71 {offsets = [0, 128], sizes = [2, 128], strides = [1, 1]} : vector<2x512xf32> to vector<2x128xf32>
    %79 = arith.negf %78 : vector<2x128xf32>
    %80 = math.exp %79 : vector<2x128xf32>
    %cst_43 = arith.constant 1.000000e+00 : f32
    %81 = vector.broadcast %cst_43 : f32 to vector<2x128xf32>
    %82 = arith.addf %81, %80 : vector<2x128xf32>
    %83 = arith.divf %81, %82 : vector<2x128xf32>
    %84 = vector.extract_strided_slice %71 {offsets = [0, 256], sizes = [2, 128], strides = [1, 1]} : vector<2x512xf32> to vector<2x128xf32>
    %85 = math.tanh %84 : vector<2x128xf32>
    %86 = vector.extract_strided_slice %71 {offsets = [0, 384], sizes = [2, 128], strides = [1, 1]} : vector<2x512xf32> to vector<2x128xf32>
    %87 = arith.negf %86 : vector<2x128xf32>
    %88 = math.exp %87 : vector<2x128xf32>
    %cst_44 = arith.constant 1.000000e+00 : f32
    %89 = vector.broadcast %cst_44 : f32 to vector<2x128xf32>
    %90 = arith.addf %89, %88 : vector<2x128xf32>
    %91 = arith.divf %89, %90 : vector<2x128xf32>
    %92 = arith.mulf %83, %60 : vector<2x128xf32>
    %93 = arith.mulf %77, %85 : vector<2x128xf32>
    %94 = arith.addf %92, %93 : vector<2x128xf32>
    %95 = math.tanh %94 : vector<2x128xf32>
    %96 = arith.mulf %91, %95 : vector<2x128xf32>
    %97 = arith.index_cast %c1_i32 : i32 to index
    %c0_45 = arith.constant 0 : index
    %c0_46 = arith.constant 0 : index
    %98 = vector.load %arg17[%97, %c0_45, %c0_46] : memref<8x2x128xf32, #tpu.memory_space<vmem>>, vector<1x2x128xf32>
    %99 = vector.shape_cast %98 : vector<1x2x128xf32> to vector<2x128xf32>
    %100 = vector.shape_cast %96 : vector<2x128xf32> to vector<1x2x128xf32>
    tpu.vector_store %arg17[%97, %c0_45, %c0_46], %100 {strides = array<i32>} : memref<8x2x128xf32, #tpu.memory_space<vmem>>, vector<1x2x128xf32>,
    %c2_i32 = arith.constant 2 : i32
    %101 = arith.index_cast %c2_i32 : i32 to index
    %c0_47 = arith.constant 0 : index
    %c0_48 = arith.constant 0 : index
    %102 = vector.load %arg18[%101, %c0_47, %c0_48] : memref<8x2x512xf32, #tpu.memory_space<vmem>>, vector<1x2x512xf32>
    %103 = vector.shape_cast %102 : vector<1x2x512xf32> to vector<2x512xf32>
    %cst_49 = arith.constant dense<0.000000e+00> : vector<2x512xf32>
    %104 = tpu.matmul %96, %23, %cst_49 {dimension_numbers = #tpu.dot_dimension_numbers<[1], [0], [0], [1], [0, 0, 1, 1], [], []>} : vector<2x128xf32>, vector<128x512xf32>, vector<2x512xf32> -> vector<2x512xf32>
    %105 = arith.addf %103, %104 : vector<2x512xf32>
    %106 = vector.extract_strided_slice %105 {offsets = [0, 0], sizes = [2, 128], strides = [1, 1]} : vector<2x512xf32> to vector<2x128xf32>
    %107 = arith.negf %106 : vector<2x128xf32>
    %108 = math.exp %107 : vector<2x128xf32>
    %cst_50 = arith.constant 1.000000e+00 : f32
    %109 = vector.broadcast %cst_50 : f32 to vector<2x128xf32>
    %110 = arith.addf %109, %108 : vector<2x128xf32>
    %111 = arith.divf %109, %110 : vector<2x128xf32>
    %112 = vector.extract_strided_slice %105 {offsets = [0, 128], sizes = [2, 128], strides = [1, 1]} : vector<2x512xf32> to vector<2x128xf32>
    %113 = arith.negf %112 : vector<2x128xf32>
    %114 = math.exp %113 : vector<2x128xf32>
    %cst_51 = arith.constant 1.000000e+00 : f32
    %115 = vector.broadcast %cst_51 : f32 to vector<2x128xf32>
    %116 = arith.addf %115, %114 : vector<2x128xf32>
    %117 = arith.divf %115, %116 : vector<2x128xf32>
    %118 = vector.extract_strided_slice %105 {offsets = [0, 256], sizes = [2, 128], strides = [1, 1]} : vector<2x512xf32> to vector<2x128xf32>
    %119 = math.tanh %118 : vector<2x128xf32>
    %120 = vector.extract_strided_slice %105 {offsets = [0, 384], sizes = [2, 128], strides = [1, 1]} : vector<2x512xf32> to vector<2x128xf32>
    %121 = arith.negf %120 : vector<2x128xf32>
    %122 = math.exp %121 : vector<2x128xf32>
    %cst_52 = arith.constant 1.000000e+00 : f32
    %123 = vector.broadcast %cst_52 : f32 to vector<2x128xf32>
    %124 = arith.addf %123, %122 : vector<2x128xf32>
    %125 = arith.divf %123, %124 : vector<2x128xf32>
    %126 = arith.mulf %117, %94 : vector<2x128xf32>
    %127 = arith.mulf %111, %119 : vector<2x128xf32>
    %128 = arith.addf %126, %127 : vector<2x128xf32>
    %129 = math.tanh %128 : vector<2x128xf32>
    %130 = arith.mulf %125, %129 : vector<2x128xf32>
    %131 = arith.index_cast %c2_i32 : i32 to index
    %c0_53 = arith.constant 0 : index
    %c0_54 = arith.constant 0 : index
    %132 = vector.load %arg17[%131, %c0_53, %c0_54] : memref<8x2x128xf32, #tpu.memory_space<vmem>>, vector<1x2x128xf32>
    %133 = vector.shape_cast %132 : vector<1x2x128xf32> to vector<2x128xf32>
    %134 = vector.shape_cast %130 : vector<2x128xf32> to vector<1x2x128xf32>
    tpu.vector_store %arg17[%131, %c0_53, %c0_54], %134 {strides = array<i32>} : memref<8x2x128xf32, #tpu.memory_space<vmem>>, vector<1x2x128xf32>,
    %c3_i32 = arith.constant 3 : i32
    %135 = arith.index_cast %c3_i32 : i32 to index
    %c0_55 = arith.constant 0 : index
    %c0_56 = arith.constant 0 : index
    %136 = vector.load %arg18[%135, %c0_55, %c0_56] : memref<8x2x512xf32, #tpu.memory_space<vmem>>, vector<1x2x512xf32>
    %137 = vector.shape_cast %136 : vector<1x2x512xf32> to vector<2x512xf32>
    %cst_57 = arith.constant dense<0.000000e+00> : vector<2x512xf32>
    %138 = tpu.matmul %130, %23, %cst_57 {dimension_numbers = #tpu.dot_dimension_numbers<[1], [0], [0], [1], [0, 0, 1, 1], [], []>} : vector<2x128xf32>, vector<128x512xf32>, vector<2x512xf32> -> vector<2x512xf32>
    %139 = arith.addf %137, %138 : vector<2x512xf32>
    %140 = vector.extract_strided_slice %139 {offsets = [0, 0], sizes = [2, 128], strides = [1, 1]} : vector<2x512xf32> to vector<2x128xf32>
    %141 = arith.negf %140 : vector<2x128xf32>
    %142 = math.exp %141 : vector<2x128xf32>
    %cst_58 = arith.constant 1.000000e+00 : f32
    %143 = vector.broadcast %cst_58 : f32 to vector<2x128xf32>
    %144 = arith.addf %143, %142 : vector<2x128xf32>
    %145 = arith.divf %143, %144 : vector<2x128xf32>
    %146 = vector.extract_strided_slice %139 {offsets = [0, 128], sizes = [2, 128], strides = [1, 1]} : vector<2x512xf32> to vector<2x128xf32>
    %147 = arith.negf %146 : vector<2x128xf32>
    %148 = math.exp %147 : vector<2x128xf32>
    %cst_59 = arith.constant 1.000000e+00 : f32
    %149 = vector.broadcast %cst_59 : f32 to vector<2x128xf32>
    %150 = arith.addf %149, %148 : vector<2x128xf32>
    %151 = arith.divf %149, %150 : vector<2x128xf32>
    %152 = vector.extract_strided_slice %139 {offsets = [0, 256], sizes = [2, 128], strides = [1, 1]} : vector<2x512xf32> to vector<2x128xf32>
    %153 = math.tanh %152 : vector<2x128xf32>
    %154 = vector.extract_strided_slice %139 {offsets = [0, 384], sizes = [2, 128], strides = [1, 1]} : vector<2x512xf32> to vector<2x128xf32>
    %155 = arith.negf %154 : vector<2x128xf32>
    %156 = math.exp %155 : vector<2x128xf32>
    %cst_60 = arith.constant 1.000000e+00 : f32
    %157 = vector.broadcast %cst_60 : f32 to vector<2x128xf32>
    %158 = arith.addf %157, %156 : vector<2x128xf32>
    %159 = arith.divf %157, %158 : vector<2x128xf32>
    %160 = arith.mulf %151, %128 : vector<2x128xf32>
    %161 = arith.mulf %145, %153 : vector<2x128xf32>
    %162 = arith.addf %160, %161 : vector<2x128xf32>
    %163 = math.tanh %162 : vector<2x128xf32>
    %164 = arith.mulf %159, %163 : vector<2x128xf32>
    %165 = arith.index_cast %c3_i32 : i32 to index
    %c0_61 = arith.constant 0 : index
    %c0_62 = arith.constant 0 : index
    %166 = vector.load %arg17[%165, %c0_61, %c0_62] : memref<8x2x128xf32, #tpu.memory_space<vmem>>, vector<1x2x128xf32>
    %167 = vector.shape_cast %166 : vector<1x2x128xf32> to vector<2x128xf32>
    %168 = vector.shape_cast %164 : vector<2x128xf32> to vector<1x2x128xf32>
    tpu.vector_store %arg17[%165, %c0_61, %c0_62], %168 {strides = array<i32>} : memref<8x2x128xf32, #tpu.memory_space<vmem>>, vector<1x2x128xf32>,
    %c4_i32 = arith.constant 4 : i32
    %169 = arith.index_cast %c4_i32 : i32 to index
    %c0_63 = arith.constant 0 : index
    %c0_64 = arith.constant 0 : index
    %170 = vector.load %arg18[%169, %c0_63, %c0_64] : memref<8x2x512xf32, #tpu.memory_space<vmem>>, vector<1x2x512xf32>
    %171 = vector.shape_cast %170 : vector<1x2x512xf32> to vector<2x512xf32>
    %cst_65 = arith.constant dense<0.000000e+00> : vector<2x512xf32>
    %172 = tpu.matmul %164, %23, %cst_65 {dimension_numbers = #tpu.dot_dimension_numbers<[1], [0], [0], [1], [0, 0, 1, 1], [], []>} : vector<2x128xf32>, vector<128x512xf32>, vector<2x512xf32> -> vector<2x512xf32>
    %173 = arith.addf %171, %172 : vector<2x512xf32>
    %174 = vector.extract_strided_slice %173 {offsets = [0, 0], sizes = [2, 128], strides = [1, 1]} : vector<2x512xf32> to vector<2x128xf32>
    %175 = arith.negf %174 : vector<2x128xf32>
    %176 = math.exp %175 : vector<2x128xf32>
    %cst_66 = arith.constant 1.000000e+00 : f32
    %177 = vector.broadcast %cst_66 : f32 to vector<2x128xf32>
    %178 = arith.addf %177, %176 : vector<2x128xf32>
    %179 = arith.divf %177, %178 : vector<2x128xf32>
    %180 = vector.extract_strided_slice %173 {offsets = [0, 128], sizes = [2, 128], strides = [1, 1]} : vector<2x512xf32> to vector<2x128xf32>
    %181 = arith.negf %180 : vector<2x128xf32>
    %182 = math.exp %181 : vector<2x128xf32>
    %cst_67 = arith.constant 1.000000e+00 : f32
    %183 = vector.broadcast %cst_67 : f32 to vector<2x128xf32>
    %184 = arith.addf %183, %182 : vector<2x128xf32>
    %185 = arith.divf %183, %184 : vector<2x128xf32>
    %186 = vector.extract_strided_slice %173 {offsets = [0, 256], sizes = [2, 128], strides = [1, 1]} : vector<2x512xf32> to vector<2x128xf32>
    %187 = math.tanh %186 : vector<2x128xf32>
    %188 = vector.extract_strided_slice %173 {offsets = [0, 384], sizes = [2, 128], strides = [1, 1]} : vector<2x512xf32> to vector<2x128xf32>
    %189 = arith.negf %188 : vector<2x128xf32>
    %190 = math.exp %189 : vector<2x128xf32>
    %cst_68 = arith.constant 1.000000e+00 : f32
    %191 = vector.broadcast %cst_68 : f32 to vector<2x128xf32>
    %192 = arith.addf %191, %190 : vector<2x128xf32>
    %193 = arith.divf %191, %192 : vector<2x128xf32>
    %194 = arith.mulf %185, %162 : vector<2x128xf32>
    %195 = arith.mulf %179, %187 : vector<2x128xf32>
    %196 = arith.addf %194, %195 : vector<2x128xf32>
    %197 = math.tanh %196 : vector<2x128xf32>
    %198 = arith.mulf %193, %197 : vector<2x128xf32>
    %199 = arith.index_cast %c4_i32 : i32 to index
    %c0_69 = arith.constant 0 : index
    %c0_70 = arith.constant 0 : index
    %200 = vector.load %arg17[%199, %c0_69, %c0_70] : memref<8x2x128xf32, #tpu.memory_space<vmem>>, vector<1x2x128xf32>
    %201 = vector.shape_cast %200 : vector<1x2x128xf32> to vector<2x128xf32>
    %202 = vector.shape_cast %198 : vector<2x128xf32> to vector<1x2x128xf32>
    tpu.vector_store %arg17[%199, %c0_69, %c0_70], %202 {strides = array<i32>} : memref<8x2x128xf32, #tpu.memory_space<vmem>>, vector<1x2x128xf32>,
    %c5_i32 = arith.constant 5 : i32
    %203 = arith.index_cast %c5_i32 : i32 to index
    %c0_71 = arith.constant 0 : index
    %c0_72 = arith.constant 0 : index
    %204 = vector.load %arg18[%203, %c0_71, %c0_72] : memref<8x2x512xf32, #tpu.memory_space<vmem>>, vector<1x2x512xf32>
    %205 = vector.shape_cast %204 : vector<1x2x512xf32> to vector<2x512xf32>
    %cst_73 = arith.constant dense<0.000000e+00> : vector<2x512xf32>
    %206 = tpu.matmul %198, %23, %cst_73 {dimension_numbers = #tpu.dot_dimension_numbers<[1], [0], [0], [1], [0, 0, 1, 1], [], []>} : vector<2x128xf32>, vector<128x512xf32>, vector<2x512xf32> -> vector<2x512xf32>
    %207 = arith.addf %205, %206 : vector<2x512xf32>
    %208 = vector.extract_strided_slice %207 {offsets = [0, 0], sizes = [2, 128], strides = [1, 1]} : vector<2x512xf32> to vector<2x128xf32>
    %209 = arith.negf %208 : vector<2x128xf32>
    %210 = math.exp %209 : vector<2x128xf32>
    %cst_74 = arith.constant 1.000000e+00 : f32
    %211 = vector.broadcast %cst_74 : f32 to vector<2x128xf32>
    %212 = arith.addf %211, %210 : vector<2x128xf32>
    %213 = arith.divf %211, %212 : vector<2x128xf32>
    %214 = vector.extract_strided_slice %207 {offsets = [0, 128], sizes = [2, 128], strides = [1, 1]} : vector<2x512xf32> to vector<2x128xf32>
    %215 = arith.negf %214 : vector<2x128xf32>
    %216 = math.exp %215 : vector<2x128xf32>
    %cst_75 = arith.constant 1.000000e+00 : f32
    %217 = vector.broadcast %cst_75 : f32 to vector<2x128xf32>
    %218 = arith.addf %217, %216 : vector<2x128xf32>
    %219 = arith.divf %217, %218 : vector<2x128xf32>
    %220 = vector.extract_strided_slice %207 {offsets = [0, 256], sizes = [2, 128], strides = [1, 1]} : vector<2x512xf32> to vector<2x128xf32>
    %221 = math.tanh %220 : vector<2x128xf32>
    %222 = vector.extract_strided_slice %207 {offsets = [0, 384], sizes = [2, 128], strides = [1, 1]} : vector<2x512xf32> to vector<2x128xf32>
    %223 = arith.negf %222 : vector<2x128xf32>
    %224 = math.exp %223 : vector<2x128xf32>
    %cst_76 = arith.constant 1.000000e+00 : f32
    %225 = vector.broadcast %cst_76 : f32 to vector<2x128xf32>
    %226 = arith.addf %225, %224 : vector<2x128xf32>
    %227 = arith.divf %225, %226 : vector<2x128xf32>
    %228 = arith.mulf %219, %196 : vector<2x128xf32>
    %229 = arith.mulf %213, %221 : vector<2x128xf32>
    %230 = arith.addf %228, %229 : vector<2x128xf32>
    %231 = math.tanh %230 : vector<2x128xf32>
    %232 = arith.mulf %227, %231 : vector<2x128xf32>
    %233 = arith.index_cast %c5_i32 : i32 to index
    %c0_77 = arith.constant 0 : index
    %c0_78 = arith.constant 0 : index
    %234 = vector.load %arg17[%233, %c0_77, %c0_78] : memref<8x2x128xf32, #tpu.memory_space<vmem>>, vector<1x2x128xf32>
    %235 = vector.shape_cast %234 : vector<1x2x128xf32> to vector<2x128xf32>
    %236 = vector.shape_cast %232 : vector<2x128xf32> to vector<1x2x128xf32>
    tpu.vector_store %arg17[%233, %c0_77, %c0_78], %236 {strides = array<i32>} : memref<8x2x128xf32, #tpu.memory_space<vmem>>, vector<1x2x128xf32>,
    %c6_i32 = arith.constant 6 : i32
    %237 = arith.index_cast %c6_i32 : i32 to index
    %c0_79 = arith.constant 0 : index
    %c0_80 = arith.constant 0 : index
    %238 = vector.load %arg18[%237, %c0_79, %c0_80] : memref<8x2x512xf32, #tpu.memory_space<vmem>>, vector<1x2x512xf32>
    %239 = vector.shape_cast %238 : vector<1x2x512xf32> to vector<2x512xf32>
    %cst_81 = arith.constant dense<0.000000e+00> : vector<2x512xf32>
    %240 = tpu.matmul %232, %23, %cst_81 {dimension_numbers = #tpu.dot_dimension_numbers<[1], [0], [0], [1], [0, 0, 1, 1], [], []>} : vector<2x128xf32>, vector<128x512xf32>, vector<2x512xf32> -> vector<2x512xf32>
    %241 = arith.addf %239, %240 : vector<2x512xf32>
    %242 = vector.extract_strided_slice %241 {offsets = [0, 0], sizes = [2, 128], strides = [1, 1]} : vector<2x512xf32> to vector<2x128xf32>
    %243 = arith.negf %242 : vector<2x128xf32>
    %244 = math.exp %243 : vector<2x128xf32>
    %cst_82 = arith.constant 1.000000e+00 : f32
    %245 = vector.broadcast %cst_82 : f32 to vector<2x128xf32>
    %246 = arith.addf %245, %244 : vector<2x128xf32>
    %247 = arith.divf %245, %246 : vector<2x128xf32>
    %248 = vector.extract_strided_slice %241 {offsets = [0, 128], sizes = [2, 128], strides = [1, 1]} : vector<2x512xf32> to vector<2x128xf32>
    %249 = arith.negf %248 : vector<2x128xf32>
    %250 = math.exp %249 : vector<2x128xf32>
    %cst_83 = arith.constant 1.000000e+00 : f32
    %251 = vector.broadcast %cst_83 : f32 to vector<2x128xf32>
    %252 = arith.addf %251, %250 : vector<2x128xf32>
    %253 = arith.divf %251, %252 : vector<2x128xf32>
    %254 = vector.extract_strided_slice %241 {offsets = [0, 256], sizes = [2, 128], strides = [1, 1]} : vector<2x512xf32> to vector<2x128xf32>
    %255 = math.tanh %254 : vector<2x128xf32>
    %256 = vector.extract_strided_slice %241 {offsets = [0, 384], sizes = [2, 128], strides = [1, 1]} : vector<2x512xf32> to vector<2x128xf32>
    %257 = arith.negf %256 : vector<2x128xf32>
    %258 = math.exp %257 : vector<2x128xf32>
    %cst_84 = arith.constant 1.000000e+00 : f32
    %259 = vector.broadcast %cst_84 : f32 to vector<2x128xf32>
    %260 = arith.addf %259, %258 : vector<2x128xf32>
    %261 = arith.divf %259, %260 : vector<2x128xf32>
    %262 = arith.mulf %253, %230 : vector<2x128xf32>
    %263 = arith.mulf %247, %255 : vector<2x128xf32>
    %264 = arith.addf %262, %263 : vector<2x128xf32>
    %265 = math.tanh %264 : vector<2x128xf32>
    %266 = arith.mulf %261, %265 : vector<2x128xf32>
    %267 = arith.index_cast %c6_i32 : i32 to index
    %c0_85 = arith.constant 0 : index
    %c0_86 = arith.constant 0 : index
    %268 = vector.load %arg17[%267, %c0_85, %c0_86] : memref<8x2x128xf32, #tpu.memory_space<vmem>>, vector<1x2x128xf32>
    %269 = vector.shape_cast %268 : vector<1x2x128xf32> to vector<2x128xf32>
    %270 = vector.shape_cast %266 : vector<2x128xf32> to vector<1x2x128xf32>
    tpu.vector_store %arg17[%267, %c0_85, %c0_86], %270 {strides = array<i32>} : memref<8x2x128xf32, #tpu.memory_space<vmem>>, vector<1x2x128xf32>,
    %c7_i32 = arith.constant 7 : i32
    %271 = arith.index_cast %c7_i32 : i32 to index
    %c0_87 = arith.constant 0 : index
    %c0_88 = arith.constant 0 : index
    %272 = vector.load %arg18[%271, %c0_87, %c0_88] : memref<8x2x512xf32, #tpu.memory_space<vmem>>, vector<1x2x512xf32>
    %273 = vector.shape_cast %272 : vector<1x2x512xf32> to vector<2x512xf32>
    %cst_89 = arith.constant dense<0.000000e+00> : vector<2x512xf32>
    %274 = tpu.matmul %266, %23, %cst_89 {dimension_numbers = #tpu.dot_dimension_numbers<[1], [0], [0], [1], [0, 0, 1, 1], [], []>} : vector<2x128xf32>, vector<128x512xf32>, vector<2x512xf32> -> vector<2x512xf32>
    %275 = arith.addf %273, %274 : vector<2x512xf32>
    %276 = vector.extract_strided_slice %275 {offsets = [0, 0], sizes = [2, 128], strides = [1, 1]} : vector<2x512xf32> to vector<2x128xf32>
    %277 = arith.negf %276 : vector<2x128xf32>
    %278 = math.exp %277 : vector<2x128xf32>
    %cst_90 = arith.constant 1.000000e+00 : f32
    %279 = vector.broadcast %cst_90 : f32 to vector<2x128xf32>
    %280 = arith.addf %279, %278 : vector<2x128xf32>
    %281 = arith.divf %279, %280 : vector<2x128xf32>
    %282 = vector.extract_strided_slice %275 {offsets = [0, 128], sizes = [2, 128], strides = [1, 1]} : vector<2x512xf32> to vector<2x128xf32>
    %283 = arith.negf %282 : vector<2x128xf32>
    %284 = math.exp %283 : vector<2x128xf32>
    %cst_91 = arith.constant 1.000000e+00 : f32
    %285 = vector.broadcast %cst_91 : f32 to vector<2x128xf32>
    %286 = arith.addf %285, %284 : vector<2x128xf32>
    %287 = arith.divf %285, %286 : vector<2x128xf32>
    %288 = vector.extract_strided_slice %275 {offsets = [0, 256], sizes = [2, 128], strides = [1, 1]} : vector<2x512xf32> to vector<2x128xf32>
    %289 = math.tanh %288 : vector<2x128xf32>
    %290 = vector.extract_strided_slice %275 {offsets = [0, 384], sizes = [2, 128], strides = [1, 1]} : vector<2x512xf32> to vector<2x128xf32>
    %291 = arith.negf %290 : vector<2x128xf32>
    %292 = math.exp %291 : vector<2x128xf32>
    %cst_92 = arith.constant 1.000000e+00 : f32
    %293 = vector.broadcast %cst_92 : f32 to vector<2x128xf32>
    %294 = arith.addf %293, %292 : vector<2x128xf32>
    %295 = arith.divf %293, %294 : vector<2x128xf32>
    %296 = arith.mulf %287, %264 : vector<2x128xf32>
    %297 = arith.mulf %281, %289 : vector<2x128xf32>
    %298 = arith.addf %296, %297 : vector<2x128xf32>
    %299 = math.tanh %298 : vector<2x128xf32>
    %300 = arith.mulf %295, %299 : vector<2x128xf32>
    %301 = arith.index_cast %c7_i32 : i32 to index
    %c0_93 = arith.constant 0 : index
    %c0_94 = arith.constant 0 : index
    %302 = vector.load %arg17[%301, %c0_93, %c0_94] : memref<8x2x128xf32, #tpu.memory_space<vmem>>, vector<1x2x128xf32>
    %303 = vector.shape_cast %302 : vector<1x2x128xf32> to vector<2x128xf32>
    %304 = vector.shape_cast %300 : vector<2x128xf32> to vector<1x2x128xf32>
    tpu.vector_store %arg17[%301, %c0_93, %c0_94], %304 {strides = array<i32>} : memref<8x2x128xf32, #tpu.memory_space<vmem>>, vector<1x2x128xf32>,
    %c8_i32 = arith.constant 8 : i32
    %c0_95 = arith.constant 0 : index
    %c0_96 = arith.constant 0 : index
    %305 = vector.load %arg11[%c0_95, %c0_96] : memref<128x512xf32, #tpu.memory_space<vmem>>, vector<128x512xf32>
    %c0_97 = arith.constant 0 : index
    %c0_98 = arith.constant 0 : index
    %306 = vector.load %arg12[%c0_97, %c0_98] : memref<128x512xf32, #tpu.memory_space<vmem>>, vector<128x512xf32>
    %c0_99 = arith.constant 0 : index
    %c0_100 = arith.constant 0 : index
    %307 = vector.load %arg13[%c0_99, %c0_100] : memref<1x512xf32, #tpu.memory_space<vmem>>, vector<1x512xf32>
    %c0_101 = arith.constant 0 : index
    %c0_102 = arith.constant 0 : index
    %c0_103 = arith.constant 0 : index
    %308 = vector.load %arg17[%c0_101, %c0_102, %c0_103] : memref<8x2x128xf32, #tpu.memory_space<vmem>>, vector<8x2x128xf32>
    %cst_104 = arith.constant dense<0.000000e+00> : vector<8x2x512xf32>
    %309 = tpu.matmul %308, %305, %cst_104 {dimension_numbers = #tpu.dot_dimension_numbers<[2], [0], [0, 1], [1], [0, 0, 0, 1, 1, 1], [], []>} : vector<8x2x128xf32>, vector<128x512xf32>, vector<8x2x512xf32> -> vector<8x2x512xf32>
    %310 = vector.shape_cast %307 : vector<1x512xf32> to vector<1x1x512xf32>
    %311 = vector.broadcast %310 : vector<1x1x512xf32> to vector<8x2x512xf32>
    %312 = arith.addf %309, %311 : vector<8x2x512xf32>
    %c0_105 = arith.constant 0 : index
    %c0_106 = arith.constant 0 : index
    %c0_107 = arith.constant 0 : index
    %313 = vector.load %arg18[%c0_105, %c0_106, %c0_107] : memref<8x2x512xf32, #tpu.memory_space<vmem>>, vector<8x2x512xf32>
    tpu.vector_store %arg18[%c0_105, %c0_106, %c0_107], %312 {strides = array<i32>} : memref<8x2x512xf32, #tpu.memory_space<vmem>>, vector<8x2x512xf32>,
    %314 = vector.extract_strided_slice %21 {offsets = [0, 128], sizes = [2, 128], strides = [1, 1]} : vector<2x256xf32> to vector<2x128xf32>
    %cst_108 = arith.constant 0.000000e+00 : f32
    %315 = vector.broadcast %cst_108 : f32 to vector<2x128xf32>
    %c0_i32_109 = arith.constant 0 : i32
    %316 = arith.index_cast %c0_i32_109 : i32 to index
    %c0_110 = arith.constant 0 : index
    %c0_111 = arith.constant 0 : index
    %317 = vector.load %arg18[%316, %c0_110, %c0_111] : memref<8x2x512xf32, #tpu.memory_space<vmem>>, vector<1x2x512xf32>
    %318 = vector.shape_cast %317 : vector<1x2x512xf32> to vector<2x512xf32>
    %cst_112 = arith.constant dense<0.000000e+00> : vector<2x512xf32>
    %319 = tpu.matmul %314, %306, %cst_112 {dimension_numbers = #tpu.dot_dimension_numbers<[1], [0], [0], [1], [0, 0, 1, 1], [], []>} : vector<2x128xf32>, vector<128x512xf32>, vector<2x512xf32> -> vector<2x512xf32>
    %320 = arith.addf %318, %319 : vector<2x512xf32>
    %321 = vector.extract_strided_slice %320 {offsets = [0, 0], sizes = [2, 128], strides = [1, 1]} : vector<2x512xf32> to vector<2x128xf32>
    %322 = arith.negf %321 : vector<2x128xf32>
    %323 = math.exp %322 : vector<2x128xf32>
    %cst_113 = arith.constant 1.000000e+00 : f32
    %324 = vector.broadcast %cst_113 : f32 to vector<2x128xf32>
    %325 = arith.addf %324, %323 : vector<2x128xf32>
    %326 = arith.divf %324, %325 : vector<2x128xf32>
    %327 = vector.extract_strided_slice %320 {offsets = [0, 128], sizes = [2, 128], strides = [1, 1]} : vector<2x512xf32> to vector<2x128xf32>
    %328 = arith.negf %327 : vector<2x128xf32>
    %329 = math.exp %328 : vector<2x128xf32>
    %cst_114 = arith.constant 1.000000e+00 : f32
    %330 = vector.broadcast %cst_114 : f32 to vector<2x128xf32>
    %331 = arith.addf %330, %329 : vector<2x128xf32>
    %332 = arith.divf %330, %331 : vector<2x128xf32>
    %333 = vector.extract_strided_slice %320 {offsets = [0, 256], sizes = [2, 128], strides = [1, 1]} : vector<2x512xf32> to vector<2x128xf32>
    %334 = math.tanh %333 : vector<2x128xf32>
    %335 = vector.extract_strided_slice %320 {offsets = [0, 384], sizes = [2, 128], strides = [1, 1]} : vector<2x512xf32> to vector<2x128xf32>
    %336 = arith.negf %335 : vector<2x128xf32>
    %337 = math.exp %336 : vector<2x128xf32>
    %cst_115 = arith.constant 1.000000e+00 : f32
    %338 = vector.broadcast %cst_115 : f32 to vector<2x128xf32>
    %339 = arith.addf %338, %337 : vector<2x128xf32>
    %340 = arith.divf %338, %339 : vector<2x128xf32>
    %341 = arith.mulf %332, %315 : vector<2x128xf32>
    %342 = arith.mulf %326, %334 : vector<2x128xf32>
    %343 = arith.addf %341, %342 : vector<2x128xf32>
    %344 = math.tanh %343 : vector<2x128xf32>
    %345 = arith.mulf %340, %344 : vector<2x128xf32>
    %346 = arith.index_cast %c0_i32_109 : i32 to index
    %c0_116 = arith.constant 0 : index
    %c0_117 = arith.constant 0 : index
    %347 = vector.load %arg17[%346, %c0_116, %c0_117] : memref<8x2x128xf32, #tpu.memory_space<vmem>>, vector<1x2x128xf32>
    %348 = vector.shape_cast %347 : vector<1x2x128xf32> to vector<2x128xf32>
    %349 = vector.shape_cast %345 : vector<2x128xf32> to vector<1x2x128xf32>
    tpu.vector_store %arg17[%346, %c0_116, %c0_117], %349 {strides = array<i32>} : memref<8x2x128xf32, #tpu.memory_space<vmem>>, vector<1x2x128xf32>,
    %c1_i32_118 = arith.constant 1 : i32
    %350 = arith.index_cast %c1_i32_118 : i32 to index
    %c0_119 = arith.constant 0 : index
    %c0_120 = arith.constant 0 : index
    %351 = vector.load %arg18[%350, %c0_119, %c0_120] : memref<8x2x512xf32, #tpu.memory_space<vmem>>, vector<1x2x512xf32>
    %352 = vector.shape_cast %351 : vector<1x2x512xf32> to vector<2x512xf32>
    %cst_121 = arith.constant dense<0.000000e+00> : vector<2x512xf32>
    %353 = tpu.matmul %345, %306, %cst_121 {dimension_numbers = #tpu.dot_dimension_numbers<[1], [0], [0], [1], [0, 0, 1, 1], [], []>} : vector<2x128xf32>, vector<128x512xf32>, vector<2x512xf32> -> vector<2x512xf32>
    %354 = arith.addf %352, %353 : vector<2x512xf32>
    %355 = vector.extract_strided_slice %354 {offsets = [0, 0], sizes = [2, 128], strides = [1, 1]} : vector<2x512xf32> to vector<2x128xf32>
    %356 = arith.negf %355 : vector<2x128xf32>
    %357 = math.exp %356 : vector<2x128xf32>
    %cst_122 = arith.constant 1.000000e+00 : f32
    %358 = vector.broadcast %cst_122 : f32 to vector<2x128xf32>
    %359 = arith.addf %358, %357 : vector<2x128xf32>
    %360 = arith.divf %358, %359 : vector<2x128xf32>
    %361 = vector.extract_strided_slice %354 {offsets = [0, 128], sizes = [2, 128], strides = [1, 1]} : vector<2x512xf32> to vector<2x128xf32>
    %362 = arith.negf %361 : vector<2x128xf32>
    %363 = math.exp %362 : vector<2x128xf32>
    %cst_123 = arith.constant 1.000000e+00 : f32
    %364 = vector.broadcast %cst_123 : f32 to vector<2x128xf32>
    %365 = arith.addf %364, %363 : vector<2x128xf32>
    %366 = arith.divf %364, %365 : vector<2x128xf32>
    %367 = vector.extract_strided_slice %354 {offsets = [0, 256], sizes = [2, 128], strides = [1, 1]} : vector<2x512xf32> to vector<2x128xf32>
    %368 = math.tanh %367 : vector<2x128xf32>
    %369 = vector.extract_strided_slice %354 {offsets = [0, 384], sizes = [2, 128], strides = [1, 1]} : vector<2x512xf32> to vector<2x128xf32>
    %370 = arith.negf %369 : vector<2x128xf32>
    %371 = math.exp %370 : vector<2x128xf32>
    %cst_124 = arith.constant 1.000000e+00 : f32
    %372 = vector.broadcast %cst_124 : f32 to vector<2x128xf32>
    %373 = arith.addf %372, %371 : vector<2x128xf32>
    %374 = arith.divf %372, %373 : vector<2x128xf32>
    %375 = arith.mulf %366, %343 : vector<2x128xf32>
    %376 = arith.mulf %360, %368 : vector<2x128xf32>
    %377 = arith.addf %375, %376 : vector<2x128xf32>
    %378 = math.tanh %377 : vector<2x128xf32>
    %379 = arith.mulf %374, %378 : vector<2x128xf32>
    %380 = arith.index_cast %c1_i32_118 : i32 to index
    %c0_125 = arith.constant 0 : index
    %c0_126 = arith.constant 0 : index
    %381 = vector.load %arg17[%380, %c0_125, %c0_126] : memref<8x2x128xf32, #tpu.memory_space<vmem>>, vector<1x2x128xf32>
    %382 = vector.shape_cast %381 : vector<1x2x128xf32> to vector<2x128xf32>
    %383 = vector.shape_cast %379 : vector<2x128xf32> to vector<1x2x128xf32>
    tpu.vector_store %arg17[%380, %c0_125, %c0_126], %383 {strides = array<i32>} : memref<8x2x128xf32, #tpu.memory_space<vmem>>, vector<1x2x128xf32>,
    %c2_i32_127 = arith.constant 2 : i32
    %384 = arith.index_cast %c2_i32_127 : i32 to index
    %c0_128 = arith.constant 0 : index
    %c0_129 = arith.constant 0 : index
    %385 = vector.load %arg18[%384, %c0_128, %c0_129] : memref<8x2x512xf32, #tpu.memory_space<vmem>>, vector<1x2x512xf32>
    %386 = vector.shape_cast %385 : vector<1x2x512xf32> to vector<2x512xf32>
    %cst_130 = arith.constant dense<0.000000e+00> : vector<2x512xf32>
    %387 = tpu.matmul %379, %306, %cst_130 {dimension_numbers = #tpu.dot_dimension_numbers<[1], [0], [0], [1], [0, 0, 1, 1], [], []>} : vector<2x128xf32>, vector<128x512xf32>, vector<2x512xf32> -> vector<2x512xf32>
    %388 = arith.addf %386, %387 : vector<2x512xf32>
    %389 = vector.extract_strided_slice %388 {offsets = [0, 0], sizes = [2, 128], strides = [1, 1]} : vector<2x512xf32> to vector<2x128xf32>
    %390 = arith.negf %389 : vector<2x128xf32>
    %391 = math.exp %390 : vector<2x128xf32>
    %cst_131 = arith.constant 1.000000e+00 : f32
    %392 = vector.broadcast %cst_131 : f32 to vector<2x128xf32>
    %393 = arith.addf %392, %391 : vector<2x128xf32>
    %394 = arith.divf %392, %393 : vector<2x128xf32>
    %395 = vector.extract_strided_slice %388 {offsets = [0, 128], sizes = [2, 128], strides = [1, 1]} : vector<2x512xf32> to vector<2x128xf32>
    %396 = arith.negf %395 : vector<2x128xf32>
    %397 = math.exp %396 : vector<2x128xf32>
    %cst_132 = arith.constant 1.000000e+00 : f32
    %398 = vector.broadcast %cst_132 : f32 to vector<2x128xf32>
    %399 = arith.addf %398, %397 : vector<2x128xf32>
    %400 = arith.divf %398, %399 : vector<2x128xf32>
    %401 = vector.extract_strided_slice %388 {offsets = [0, 256], sizes = [2, 128], strides = [1, 1]} : vector<2x512xf32> to vector<2x128xf32>
    %402 = math.tanh %401 : vector<2x128xf32>
    %403 = vector.extract_strided_slice %388 {offsets = [0, 384], sizes = [2, 128], strides = [1, 1]} : vector<2x512xf32> to vector<2x128xf32>
    %404 = arith.negf %403 : vector<2x128xf32>
    %405 = math.exp %404 : vector<2x128xf32>
    %cst_133 = arith.constant 1.000000e+00 : f32
    %406 = vector.broadcast %cst_133 : f32 to vector<2x128xf32>
    %407 = arith.addf %406, %405 : vector<2x128xf32>
    %408 = arith.divf %406, %407 : vector<2x128xf32>
    %409 = arith.mulf %400, %377 : vector<2x128xf32>
    %410 = arith.mulf %394, %402 : vector<2x128xf32>
    %411 = arith.addf %409, %410 : vector<2x128xf32>
    %412 = math.tanh %411 : vector<2x128xf32>
    %413 = arith.mulf %408, %412 : vector<2x128xf32>
    %414 = arith.index_cast %c2_i32_127 : i32 to index
    %c0_134 = arith.constant 0 : index
    %c0_135 = arith.constant 0 : index
    %415 = vector.load %arg17[%414, %c0_134, %c0_135] : memref<8x2x128xf32, #tpu.memory_space<vmem>>, vector<1x2x128xf32>
    %416 = vector.shape_cast %415 : vector<1x2x128xf32> to vector<2x128xf32>
    %417 = vector.shape_cast %413 : vector<2x128xf32> to vector<1x2x128xf32>
    tpu.vector_store %arg17[%414, %c0_134, %c0_135], %417 {strides = array<i32>} : memref<8x2x128xf32, #tpu.memory_space<vmem>>, vector<1x2x128xf32>,
    %c3_i32_136 = arith.constant 3 : i32
    %418 = arith.index_cast %c3_i32_136 : i32 to index
    %c0_137 = arith.constant 0 : index
    %c0_138 = arith.constant 0 : index
    %419 = vector.load %arg18[%418, %c0_137, %c0_138] : memref<8x2x512xf32, #tpu.memory_space<vmem>>, vector<1x2x512xf32>
    %420 = vector.shape_cast %419 : vector<1x2x512xf32> to vector<2x512xf32>
    %cst_139 = arith.constant dense<0.000000e+00> : vector<2x512xf32>
    %421 = tpu.matmul %413, %306, %cst_139 {dimension_numbers = #tpu.dot_dimension_numbers<[1], [0], [0], [1], [0, 0, 1, 1], [], []>} : vector<2x128xf32>, vector<128x512xf32>, vector<2x512xf32> -> vector<2x512xf32>
    %422 = arith.addf %420, %421 : vector<2x512xf32>
    %423 = vector.extract_strided_slice %422 {offsets = [0, 0], sizes = [2, 128], strides = [1, 1]} : vector<2x512xf32> to vector<2x128xf32>
    %424 = arith.negf %423 : vector<2x128xf32>
    %425 = math.exp %424 : vector<2x128xf32>
    %cst_140 = arith.constant 1.000000e+00 : f32
    %426 = vector.broadcast %cst_140 : f32 to vector<2x128xf32>
    %427 = arith.addf %426, %425 : vector<2x128xf32>
    %428 = arith.divf %426, %427 : vector<2x128xf32>
    %429 = vector.extract_strided_slice %422 {offsets = [0, 128], sizes = [2, 128], strides = [1, 1]} : vector<2x512xf32> to vector<2x128xf32>
    %430 = arith.negf %429 : vector<2x128xf32>
    %431 = math.exp %430 : vector<2x128xf32>
    %cst_141 = arith.constant 1.000000e+00 : f32
    %432 = vector.broadcast %cst_141 : f32 to vector<2x128xf32>
    %433 = arith.addf %432, %431 : vector<2x128xf32>
    %434 = arith.divf %432, %433 : vector<2x128xf32>
    %435 = vector.extract_strided_slice %422 {offsets = [0, 256], sizes = [2, 128], strides = [1, 1]} : vector<2x512xf32> to vector<2x128xf32>
    %436 = math.tanh %435 : vector<2x128xf32>
    %437 = vector.extract_strided_slice %422 {offsets = [0, 384], sizes = [2, 128], strides = [1, 1]} : vector<2x512xf32> to vector<2x128xf32>
    %438 = arith.negf %437 : vector<2x128xf32>
    %439 = math.exp %438 : vector<2x128xf32>
    %cst_142 = arith.constant 1.000000e+00 : f32
    %440 = vector.broadcast %cst_142 : f32 to vector<2x128xf32>
    %441 = arith.addf %440, %439 : vector<2x128xf32>
    %442 = arith.divf %440, %441 : vector<2x128xf32>
    %443 = arith.mulf %434, %411 : vector<2x128xf32>
    %444 = arith.mulf %428, %436 : vector<2x128xf32>
    %445 = arith.addf %443, %444 : vector<2x128xf32>
    %446 = math.tanh %445 : vector<2x128xf32>
    %447 = arith.mulf %442, %446 : vector<2x128xf32>
    %448 = arith.index_cast %c3_i32_136 : i32 to index
    %c0_143 = arith.constant 0 : index
    %c0_144 = arith.constant 0 : index
    %449 = vector.load %arg17[%448, %c0_143, %c0_144] : memref<8x2x128xf32, #tpu.memory_space<vmem>>, vector<1x2x128xf32>
    %450 = vector.shape_cast %449 : vector<1x2x128xf32> to vector<2x128xf32>
    %451 = vector.shape_cast %447 : vector<2x128xf32> to vector<1x2x128xf32>
    tpu.vector_store %arg17[%448, %c0_143, %c0_144], %451 {strides = array<i32>} : memref<8x2x128xf32, #tpu.memory_space<vmem>>, vector<1x2x128xf32>,
    %c4_i32_145 = arith.constant 4 : i32
    %452 = arith.index_cast %c4_i32_145 : i32 to index
    %c0_146 = arith.constant 0 : index
    %c0_147 = arith.constant 0 : index
    %453 = vector.load %arg18[%452, %c0_146, %c0_147] : memref<8x2x512xf32, #tpu.memory_space<vmem>>, vector<1x2x512xf32>
    %454 = vector.shape_cast %453 : vector<1x2x512xf32> to vector<2x512xf32>
    %cst_148 = arith.constant dense<0.000000e+00> : vector<2x512xf32>
    %455 = tpu.matmul %447, %306, %cst_148 {dimension_numbers = #tpu.dot_dimension_numbers<[1], [0], [0], [1], [0, 0, 1, 1], [], []>} : vector<2x128xf32>, vector<128x512xf32>, vector<2x512xf32> -> vector<2x512xf32>
    %456 = arith.addf %454, %455 : vector<2x512xf32>
    %457 = vector.extract_strided_slice %456 {offsets = [0, 0], sizes = [2, 128], strides = [1, 1]} : vector<2x512xf32> to vector<2x128xf32>
    %458 = arith.negf %457 : vector<2x128xf32>
    %459 = math.exp %458 : vector<2x128xf32>
    %cst_149 = arith.constant 1.000000e+00 : f32
    %460 = vector.broadcast %cst_149 : f32 to vector<2x128xf32>
    %461 = arith.addf %460, %459 : vector<2x128xf32>
    %462 = arith.divf %460, %461 : vector<2x128xf32>
    %463 = vector.extract_strided_slice %456 {offsets = [0, 128], sizes = [2, 128], strides = [1, 1]} : vector<2x512xf32> to vector<2x128xf32>
    %464 = arith.negf %463 : vector<2x128xf32>
    %465 = math.exp %464 : vector<2x128xf32>
    %cst_150 = arith.constant 1.000000e+00 : f32
    %466 = vector.broadcast %cst_150 : f32 to vector<2x128xf32>
    %467 = arith.addf %466, %465 : vector<2x128xf32>
    %468 = arith.divf %466, %467 : vector<2x128xf32>
    %469 = vector.extract_strided_slice %456 {offsets = [0, 256], sizes = [2, 128], strides = [1, 1]} : vector<2x512xf32> to vector<2x128xf32>
    %470 = math.tanh %469 : vector<2x128xf32>
    %471 = vector.extract_strided_slice %456 {offsets = [0, 384], sizes = [2, 128], strides = [1, 1]} : vector<2x512xf32> to vector<2x128xf32>
    %472 = arith.negf %471 : vector<2x128xf32>
    %473 = math.exp %472 : vector<2x128xf32>
    %cst_151 = arith.constant 1.000000e+00 : f32
    %474 = vector.broadcast %cst_151 : f32 to vector<2x128xf32>
    %475 = arith.addf %474, %473 : vector<2x128xf32>
    %476 = arith.divf %474, %475 : vector<2x128xf32>
    %477 = arith.mulf %468, %445 : vector<2x128xf32>
    %478 = arith.mulf %462, %470 : vector<2x128xf32>
    %479 = arith.addf %477, %478 : vector<2x128xf32>
    %480 = math.tanh %479 : vector<2x128xf32>
    %481 = arith.mulf %476, %480 : vector<2x128xf32>
    %482 = arith.index_cast %c4_i32_145 : i32 to index
    %c0_152 = arith.constant 0 : index
    %c0_153 = arith.constant 0 : index
    %483 = vector.load %arg17[%482, %c0_152, %c0_153] : memref<8x2x128xf32, #tpu.memory_space<vmem>>, vector<1x2x128xf32>
    %484 = vector.shape_cast %483 : vector<1x2x128xf32> to vector<2x128xf32>
    %485 = vector.shape_cast %481 : vector<2x128xf32> to vector<1x2x128xf32>
    tpu.vector_store %arg17[%482, %c0_152, %c0_153], %485 {strides = array<i32>} : memref<8x2x128xf32, #tpu.memory_space<vmem>>, vector<1x2x128xf32>,
    %c5_i32_154 = arith.constant 5 : i32
    %486 = arith.index_cast %c5_i32_154 : i32 to index
    %c0_155 = arith.constant 0 : index
    %c0_156 = arith.constant 0 : index
    %487 = vector.load %arg18[%486, %c0_155, %c0_156] : memref<8x2x512xf32, #tpu.memory_space<vmem>>, vector<1x2x512xf32>
    %488 = vector.shape_cast %487 : vector<1x2x512xf32> to vector<2x512xf32>
    %cst_157 = arith.constant dense<0.000000e+00> : vector<2x512xf32>
    %489 = tpu.matmul %481, %306, %cst_157 {dimension_numbers = #tpu.dot_dimension_numbers<[1], [0], [0], [1], [0, 0, 1, 1], [], []>} : vector<2x128xf32>, vector<128x512xf32>, vector<2x512xf32> -> vector<2x512xf32>
    %490 = arith.addf %488, %489 : vector<2x512xf32>
    %491 = vector.extract_strided_slice %490 {offsets = [0, 0], sizes = [2, 128], strides = [1, 1]} : vector<2x512xf32> to vector<2x128xf32>
    %492 = arith.negf %491 : vector<2x128xf32>
    %493 = math.exp %492 : vector<2x128xf32>
    %cst_158 = arith.constant 1.000000e+00 : f32
    %494 = vector.broadcast %cst_158 : f32 to vector<2x128xf32>
    %495 = arith.addf %494, %493 : vector<2x128xf32>
    %496 = arith.divf %494, %495 : vector<2x128xf32>
    %497 = vector.extract_strided_slice %490 {offsets = [0, 128], sizes = [2, 128], strides = [1, 1]} : vector<2x512xf32> to vector<2x128xf32>
    %498 = arith.negf %497 : vector<2x128xf32>
    %499 = math.exp %498 : vector<2x128xf32>
    %cst_159 = arith.constant 1.000000e+00 : f32
    %500 = vector.broadcast %cst_159 : f32 to vector<2x128xf32>
    %501 = arith.addf %500, %499 : vector<2x128xf32>
    %502 = arith.divf %500, %501 : vector<2x128xf32>
    %503 = vector.extract_strided_slice %490 {offsets = [0, 256], sizes = [2, 128], strides = [1, 1]} : vector<2x512xf32> to vector<2x128xf32>
    %504 = math.tanh %503 : vector<2x128xf32>
    %505 = vector.extract_strided_slice %490 {offsets = [0, 384], sizes = [2, 128], strides = [1, 1]} : vector<2x512xf32> to vector<2x128xf32>
    %506 = arith.negf %505 : vector<2x128xf32>
    %507 = math.exp %506 : vector<2x128xf32>
    %cst_160 = arith.constant 1.000000e+00 : f32
    %508 = vector.broadcast %cst_160 : f32 to vector<2x128xf32>
    %509 = arith.addf %508, %507 : vector<2x128xf32>
    %510 = arith.divf %508, %509 : vector<2x128xf32>
    %511 = arith.mulf %502, %479 : vector<2x128xf32>
    %512 = arith.mulf %496, %504 : vector<2x128xf32>
    %513 = arith.addf %511, %512 : vector<2x128xf32>
    %514 = math.tanh %513 : vector<2x128xf32>
    %515 = arith.mulf %510, %514 : vector<2x128xf32>
    %516 = arith.index_cast %c5_i32_154 : i32 to index
    %c0_161 = arith.constant 0 : index
    %c0_162 = arith.constant 0 : index
    %517 = vector.load %arg17[%516, %c0_161, %c0_162] : memref<8x2x128xf32, #tpu.memory_space<vmem>>, vector<1x2x128xf32>
    %518 = vector.shape_cast %517 : vector<1x2x128xf32> to vector<2x128xf32>
    %519 = vector.shape_cast %515 : vector<2x128xf32> to vector<1x2x128xf32>
    tpu.vector_store %arg17[%516, %c0_161, %c0_162], %519 {strides = array<i32>} : memref<8x2x128xf32, #tpu.memory_space<vmem>>, vector<1x2x128xf32>,
    %c6_i32_163 = arith.constant 6 : i32
    %520 = arith.index_cast %c6_i32_163 : i32 to index
    %c0_164 = arith.constant 0 : index
    %c0_165 = arith.constant 0 : index
    %521 = vector.load %arg18[%520, %c0_164, %c0_165] : memref<8x2x512xf32, #tpu.memory_space<vmem>>, vector<1x2x512xf32>
    %522 = vector.shape_cast %521 : vector<1x2x512xf32> to vector<2x512xf32>
    %cst_166 = arith.constant dense<0.000000e+00> : vector<2x512xf32>
    %523 = tpu.matmul %515, %306, %cst_166 {dimension_numbers = #tpu.dot_dimension_numbers<[1], [0], [0], [1], [0, 0, 1, 1], [], []>} : vector<2x128xf32>, vector<128x512xf32>, vector<2x512xf32> -> vector<2x512xf32>
    %524 = arith.addf %522, %523 : vector<2x512xf32>
    %525 = vector.extract_strided_slice %524 {offsets = [0, 0], sizes = [2, 128], strides = [1, 1]} : vector<2x512xf32> to vector<2x128xf32>
    %526 = arith.negf %525 : vector<2x128xf32>
    %527 = math.exp %526 : vector<2x128xf32>
    %cst_167 = arith.constant 1.000000e+00 : f32
    %528 = vector.broadcast %cst_167 : f32 to vector<2x128xf32>
    %529 = arith.addf %528, %527 : vector<2x128xf32>
    %530 = arith.divf %528, %529 : vector<2x128xf32>
    %531 = vector.extract_strided_slice %524 {offsets = [0, 128], sizes = [2, 128], strides = [1, 1]} : vector<2x512xf32> to vector<2x128xf32>
    %532 = arith.negf %531 : vector<2x128xf32>
    %533 = math.exp %532 : vector<2x128xf32>
    %cst_168 = arith.constant 1.000000e+00 : f32
    %534 = vector.broadcast %cst_168 : f32 to vector<2x128xf32>
    %535 = arith.addf %534, %533 : vector<2x128xf32>
    %536 = arith.divf %534, %535 : vector<2x128xf32>
    %537 = vector.extract_strided_slice %524 {offsets = [0, 256], sizes = [2, 128], strides = [1, 1]} : vector<2x512xf32> to vector<2x128xf32>
    %538 = math.tanh %537 : vector<2x128xf32>
    %539 = vector.extract_strided_slice %524 {offsets = [0, 384], sizes = [2, 128], strides = [1, 1]} : vector<2x512xf32> to vector<2x128xf32>
    %540 = arith.negf %539 : vector<2x128xf32>
    %541 = math.exp %540 : vector<2x128xf32>
    %cst_169 = arith.constant 1.000000e+00 : f32
    %542 = vector.broadcast %cst_169 : f32 to vector<2x128xf32>
    %543 = arith.addf %542, %541 : vector<2x128xf32>
    %544 = arith.divf %542, %543 : vector<2x128xf32>
    %545 = arith.mulf %536, %513 : vector<2x128xf32>
    %546 = arith.mulf %530, %538 : vector<2x128xf32>
    %547 = arith.addf %545, %546 : vector<2x128xf32>
    %548 = math.tanh %547 : vector<2x128xf32>
    %549 = arith.mulf %544, %548 : vector<2x128xf32>
    %550 = arith.index_cast %c6_i32_163 : i32 to index
    %c0_170 = arith.constant 0 : index
    %c0_171 = arith.constant 0 : index
    %551 = vector.load %arg17[%550, %c0_170, %c0_171] : memref<8x2x128xf32, #tpu.memory_space<vmem>>, vector<1x2x128xf32>
    %552 = vector.shape_cast %551 : vector<1x2x128xf32> to vector<2x128xf32>
    %553 = vector.shape_cast %549 : vector<2x128xf32> to vector<1x2x128xf32>
    tpu.vector_store %arg17[%550, %c0_170, %c0_171], %553 {strides = array<i32>} : memref<8x2x128xf32, #tpu.memory_space<vmem>>, vector<1x2x128xf32>,
    %c7_i32_172 = arith.constant 7 : i32
    %554 = arith.index_cast %c7_i32_172 : i32 to index
    %c0_173 = arith.constant 0 : index
    %c0_174 = arith.constant 0 : index
    %555 = vector.load %arg18[%554, %c0_173, %c0_174] : memref<8x2x512xf32, #tpu.memory_space<vmem>>, vector<1x2x512xf32>
    %556 = vector.shape_cast %555 : vector<1x2x512xf32> to vector<2x512xf32>
    %cst_175 = arith.constant dense<0.000000e+00> : vector<2x512xf32>
    %557 = tpu.matmul %549, %306, %cst_175 {dimension_numbers = #tpu.dot_dimension_numbers<[1], [0], [0], [1], [0, 0, 1, 1], [], []>} : vector<2x128xf32>, vector<128x512xf32>, vector<2x512xf32> -> vector<2x512xf32>
    %558 = arith.addf %556, %557 : vector<2x512xf32>
    %559 = vector.extract_strided_slice %558 {offsets = [0, 0], sizes = [2, 128], strides = [1, 1]} : vector<2x512xf32> to vector<2x128xf32>
    %560 = arith.negf %559 : vector<2x128xf32>
    %561 = math.exp %560 : vector<2x128xf32>
    %cst_176 = arith.constant 1.000000e+00 : f32
    %562 = vector.broadcast %cst_176 : f32 to vector<2x128xf32>
    %563 = arith.addf %562, %561 : vector<2x128xf32>
    %564 = arith.divf %562, %563 : vector<2x128xf32>
    %565 = vector.extract_strided_slice %558 {offsets = [0, 128], sizes = [2, 128], strides = [1, 1]} : vector<2x512xf32> to vector<2x128xf32>
    %566 = arith.negf %565 : vector<2x128xf32>
    %567 = math.exp %566 : vector<2x128xf32>
    %cst_177 = arith.constant 1.000000e+00 : f32
    %568 = vector.broadcast %cst_177 : f32 to vector<2x128xf32>
    %569 = arith.addf %568, %567 : vector<2x128xf32>
    %570 = arith.divf %568, %569 : vector<2x128xf32>
    %571 = vector.extract_strided_slice %558 {offsets = [0, 256], sizes = [2, 128], strides = [1, 1]} : vector<2x512xf32> to vector<2x128xf32>
    %572 = math.tanh %571 : vector<2x128xf32>
    %573 = vector.extract_strided_slice %558 {offsets = [0, 384], sizes = [2, 128], strides = [1, 1]} : vector<2x512xf32> to vector<2x128xf32>
    %574 = arith.negf %573 : vector<2x128xf32>
    %575 = math.exp %574 : vector<2x128xf32>
    %cst_178 = arith.constant 1.000000e+00 : f32
    %576 = vector.broadcast %cst_178 : f32 to vector<2x128xf32>
    %577 = arith.addf %576, %575 : vector<2x128xf32>
    %578 = arith.divf %576, %577 : vector<2x128xf32>
    %579 = arith.mulf %570, %547 : vector<2x128xf32>
    %580 = arith.mulf %564, %572 : vector<2x128xf32>
    %581 = arith.addf %579, %580 : vector<2x128xf32>
    %582 = math.tanh %581 : vector<2x128xf32>
    %583 = arith.mulf %578, %582 : vector<2x128xf32>
    %584 = arith.index_cast %c7_i32_172 : i32 to index
    %c0_179 = arith.constant 0 : index
    %c0_180 = arith.constant 0 : index
    %585 = vector.load %arg17[%584, %c0_179, %c0_180] : memref<8x2x128xf32, #tpu.memory_space<vmem>>, vector<1x2x128xf32>
    %586 = vector.shape_cast %585 : vector<1x2x128xf32> to vector<2x128xf32>
    %587 = vector.shape_cast %583 : vector<2x128xf32> to vector<1x2x128xf32>
    tpu.vector_store %arg17[%584, %c0_179, %c0_180], %587 {strides = array<i32>} : memref<8x2x128xf32, #tpu.memory_space<vmem>>, vector<1x2x128xf32>,
    %c8_i32_181 = arith.constant 8 : i32
    %c0_182 = arith.constant 0 : index
    %c0_183 = arith.constant 0 : index
    %c0_184 = arith.constant 0 : index
    %588 = vector.load %arg17[%c0_182, %c0_183, %c0_184] : memref<8x2x128xf32, #tpu.memory_space<vmem>>, vector<8x2x128xf32>
    %c0_185 = arith.constant 0 : index
    %c0_186 = arith.constant 0 : index
    %589 = vector.load %arg14[%c0_185, %c0_186] : memref<128x128xf32, #tpu.memory_space<vmem>>, vector<128x128xf32>
    %cst_187 = arith.constant dense<0.000000e+00> : vector<8x2x128xf32>
    %590 = tpu.matmul %588, %589, %cst_187 {dimension_numbers = #tpu.dot_dimension_numbers<[2], [0], [0, 1], [1], [0, 0, 0, 1, 1, 1], [], []>} : vector<8x2x128xf32>, vector<128x128xf32>, vector<8x2x128xf32> -> vector<8x2x128xf32>
    %c0_188 = arith.constant 0 : index
    %c0_189 = arith.constant 0 : index
    %591 = vector.load %arg15[%c0_188, %c0_189] : memref<1x128xf32, #tpu.memory_space<vmem>>, vector<1x128xf32>
    %592 = vector.shape_cast %591 : vector<1x128xf32> to vector<1x1x128xf32>
    %593 = vector.broadcast %592 : vector<1x1x128xf32> to vector<8x2x128xf32>
    %594 = arith.addf %590, %593 : vector<8x2x128xf32>
    %c0_190 = arith.constant 0 : index
    %c0_191 = arith.constant 0 : index
    %c0_192 = arith.constant 0 : index
    %595 = vector.load %arg16[%c0_190, %c0_191, %c0_192] : memref<8x2x128xf32, #tpu.memory_space<vmem>>, vector<8x2x128xf32>
    tpu.vector_store %arg16[%c0_190, %c0_191, %c0_192], %594 {strides = array<i32>} : memref<8x2x128xf32, #tpu.memory_space<vmem>>, vector<8x2x128xf32>,
    return
  }
}

</mosaic_0001>

<llo_original>
// kernel: tpu_custom_call.1
$region0: #{tpu_custom_call.1}
  #allocation0 [shape = 'u32[]', space=smem, size = 0x4, offset = 0x4, fixed_abs, tag = 'smem constant byte address 0x4 - core index']
  #allocation1 [shape = 'u32[72,128]{1,0:T(1,128)}', space=vmem, size = 0x9000, scoped, tag = 'internal scratch']
  #allocation2 [shape = 'f32[8,2,128]{2,1,0:T(2,128)}', space=vmem, size = 0x2000, scoped, tag = 'scratch operand']
  #allocation3 [shape = 'f32[8,2,512]{2,1,0:T(2,128)}', space=vmem, size = 0x8000, scoped, tag = 'scratch operand']
  %s0 = inlined_call_operand.hbm [shape: f32[8,2,128], index: 0, kind: input, shape index: {}]
  %s1 = inlined_call_operand.hbm [shape: f32[2,128], index: 1, kind: input, shape index: {}]
  %s2 = inlined_call_operand.hbm [shape: f32[128,128], index: 2, kind: input, shape index: {}]
  %s3 = inlined_call_operand.hbm [shape: f32[1,128], index: 3, kind: input, shape index: {}]
  %s4 = inlined_call_operand.hbm [shape: f32[128,128], index: 4, kind: input, shape index: {}]
  %s5 = inlined_call_operand.hbm [shape: f32[1,128], index: 5, kind: input, shape index: {}]
  %s6 = inlined_call_operand.hbm [shape: f32[128,256], index: 6, kind: input, shape index: {}]
  %s7 = inlined_call_operand.hbm [shape: f32[1,256], index: 7, kind: input, shape index: {}]
  %s8 = inlined_call_operand.hbm [shape: f32[128,512], index: 8, kind: input, shape index: {}]
  %s9 = inlined_call_operand.hbm [shape: f32[128,512], index: 9, kind: input, shape index: {}]
  %s10 = inlined_call_operand.vmem [shape: f32[1,512], index: 10, kind: input, shape index: {}]
  %s11 = inlined_call_operand.hbm [shape: f32[128,512], index: 11, kind: input, shape index: {}]
  %s12 = inlined_call_operand.hbm [shape: f32[128,512], index: 12, kind: input, shape index: {}]
  %s13 = inlined_call_operand.vmem [shape: f32[1,512], index: 13, kind: input, shape index: {}]
  %s14 = inlined_call_operand.hbm [shape: f32[128,128], index: 14, kind: input, shape index: {}]
  %s15 = inlined_call_operand.vmem [shape: f32[1,128], index: 15, kind: input, shape index: {}]
  %s16 = inlined_call_operand.hbm [shape: f32[8,2,128], index: 16, kind: output, shape index: {}]
  %s17 = sld [smem:[#allocation0]]
  $region126: #{tpu_custom_call.1} parent=0
    _
  %s19 = ssub.s32 1, %s17
  %s20 = scalar_select 0, %s19, %s17
  $region1: #{tpu_custom_call.1} parent=0
    #allocation4 [shape = 'u8[8192]{0}', space=vmem, size = 0x2000, scoped, tag = 'input window, operand 0, single buffered']
    #allocation5 [shape = 's32[1]{0}', space=sflag, size = 0x4, scoped, tag = 'scoped memory for tpu_custom_call.1']
    #allocation6 [shape = 's32[1]{0}', space=sflag, size = 0x4, scoped, tag = 'scoped memory for tpu_custom_call.1']
    #allocation7 [shape = 'u8[1024]{0}', space=vmem, size = 0x400, scoped, tag = 'input window, operand 1, single buffered']
    #allocation8 [shape = 's32[1]{0}', space=sflag, size = 0x4, scoped, tag = 'scoped memory for tpu_custom_call.1']
    #allocation9 [shape = 'u8[65536]{0}', space=vmem, size = 0x10000, scoped, tag = 'input window, operand 2, single buffered']
    #allocation10 [shape = 'u8[512]{0}', space=vmem, size = 0x400, scoped, tag = 'input window, operand 3, single buffered']
    #allocation11 [shape = 's32[1]{0}', space=sflag, size = 0x4, scoped, tag = 'scoped memory for tpu_custom_call.1']
    #allocation12 [shape = 'u8[65536]{0}', space=vmem, size = 0x10000, scoped, tag = 'input window, operand 4, single buffered']
    #allocation13 [shape = 'u8[512]{0}', space=vmem, size = 0x400, scoped, tag = 'input window, operand 5, single buffered']
    #allocation14 [shape = 's32[1]{0}', space=sflag, size = 0x4, scoped, tag = 'scoped memory for tpu_custom_call.1']
    #allocation15 [shape = 'u8[131072]{0}', space=vmem, size = 0x20000, scoped, tag = 'input window, operand 6, single buffered']
    #allocation16 [shape = 'u8[1024]{0}', space=vmem, size = 0x400, scoped, tag = 'input window, operand 7, single buffered']
    #allocation17 [shape = 's32[1]{0}', space=sflag, size = 0x4, scoped, tag = 'scoped memory for tpu_custom_call.1']
    #allocation18 [shape = 'u8[262144]{0}', space=vmem, size = 0x40000, scoped, tag = 'input window, operand 8, single buffered']
    #allocation19 [shape = 'u8[262144]{0}', space=vmem, size = 0x40000, scoped, tag = 'input window, operand 9, single buffered']
    #allocation20 [shape = 's32[1]{0}', space=sflag, size = 0x4, scoped, tag = 'scoped memory for tpu_custom_call.1']
    #allocation21 [shape = 'u8[262144]{0}', space=vmem, size = 0x40000, scoped, tag = 'input window, operand 11, single buffered']
    #allocation22 [shape = 'u8[262144]{0}', space=vmem, size = 0x40000, scoped, tag = 'input window, operand 12, single buffered']
    #allocation23 [shape = 's32[1]{0}', space=sflag, size = 0x4, scoped, tag = 'scoped memory for tpu_custom_call.1']
    #allocation24 [shape = 'u8[65536]{0}', space=vmem, size = 0x10000, scoped, tag = 'input window, operand 14, single buffered']
    #allocation25 [shape = 'u8[8192]{0}', space=vmem, size = 0x2000, scoped, tag = 'output window, operand 0, single buffered']
    %21 = vsyncpa [#allocation5], 0
    %22 = vsyncpa [#allocation8], 0
    %23 = vsyncpa [#allocation11], 0
    %24 = vsyncpa [#allocation14], 0
    %25 = vsyncpa [#allocation17], 0
    %26 = vsyncpa [#allocation20], 0
    %27 = vsyncpa [#allocation23], 0
    %28 = vsyncpa [#allocation6], 0
    // Predicated region
    $region2: #{tpu_custom_call.1} parent=1 // pred_check
      _
    $region3: #{tpu_custom_call.1} parent=1 // pred_check_branch
      %30 = sbr.rel (0) target = $region5
    $region4: #{tpu_custom_call.1} parent=1 // pred_region
      %32 = vsyncadd [#allocation5], 0
      %s33 = sshll.u32 %s0, 4
      %s34 = int_to_ptr.hbm [resolvable:$true] %s33
      %s35 = sshll.u32 [#allocation4], 4
      %s36 = int_to_ptr.vmem [resolvable:$true] %s35
      %41 = dma.hbm_to_vmem [thread:$0]  %s34, 256, %s36, [#allocation5], 32, 32, 2
    $region5: #{tpu_custom_call.1} parent=1 // pred_fallthru
      _
    // Predicated region
    $region6: #{tpu_custom_call.1} parent=1 // pred_check
      _
    $region7: #{tpu_custom_call.1} parent=1 // pred_check_branch
      %43 = sbr.rel (0) target = $region9
    $region8: #{tpu_custom_call.1} parent=1 // pred_region
      %45 = vsyncadd [#allocation8], 0
      %s47 = sshll.u32 %s1, 4
      %s48 = int_to_ptr.hbm [resolvable:$true] %s47
      %s49 = sshll.u32 [#allocation7], 4
      %s50 = int_to_ptr.vmem [resolvable:$true] %s49
      %52 = dma.hbm_to_vmem [thread:$0]  %s48, 32, %s50, [#allocation8]
    $region9: #{tpu_custom_call.1} parent=1 // pred_fallthru
      _
    // Predicated region
    $region10: #{tpu_custom_call.1} parent=1 // pred_check
      _
    $region11: #{tpu_custom_call.1} parent=1 // pred_check_branch
      %54 = sbr.rel (0) target = $region13
    $region12: #{tpu_custom_call.1} parent=1 // pred_region
      %56 = vsyncadd [#allocation8], 0
      %s57 = sshll.u32 %s2, 4
      %s58 = int_to_ptr.hbm [resolvable:$true] %s57
      %s59 = sshll.u32 [#allocation9], 4
      %s60 = int_to_ptr.vmem [resolvable:$true] %s59
      %65 = dma.hbm_to_vmem [thread:$0]  %s58, 2048, %s60, [#allocation8], 128, 128, 8
    $region13: #{tpu_custom_call.1} parent=1 // pred_fallthru
      _
    // Predicated region
    $region14: #{tpu_custom_call.1} parent=1 // pred_check
      _
    $region15: #{tpu_custom_call.1} parent=1 // pred_check_branch
      %67 = sbr.rel (0) target = $region17
    $region16: #{tpu_custom_call.1} parent=1 // pred_region
      %69 = vsyncadd [#allocation11], 0
      %s71 = sshll.u32 %s3, 4
      %s72 = int_to_ptr.hbm [resolvable:$true] %s71
      %s73 = sshll.u32 [#allocation10], 4
      %s74 = int_to_ptr.vmem [resolvable:$true] %s73
      %76 = dma.hbm_to_vmem [thread:$0]  %s72, 16, %s74, [#allocation11]
    $region17: #{tpu_custom_call.1} parent=1 // pred_fallthru
      _
    // Predicated region
    $region18: #{tpu_custom_call.1} parent=1 // pred_check
      _
    $region19: #{tpu_custom_call.1} parent=1 // pred_check_branch
      %78 = sbr.rel (0) target = $region21
    $region20: #{tpu_custom_call.1} parent=1 // pred_region
      %80 = vsyncadd [#allocation11], 0
      %s81 = sshll.u32 %s4, 4
      %s82 = int_to_ptr.hbm [resolvable:$true] %s81
      %s83 = sshll.u32 [#allocation12], 4
      %s84 = int_to_ptr.vmem [resolvable:$true] %s83
      %89 = dma.hbm_to_vmem [thread:$0]  %s82, 2048, %s84, [#allocation11], 128, 128, 8
    $region21: #{tpu_custom_call.1} parent=1 // pred_fallthru
      _
    // Predicated region
    $region22: #{tpu_custom_call.1} parent=1 // pred_check
      _
    $region23: #{tpu_custom_call.1} parent=1 // pred_check_branch
      %91 = sbr.rel (0) target = $region25
    $region24: #{tpu_custom_call.1} parent=1 // pred_region
      %93 = vsyncadd [#allocation14], 0
      %s95 = sshll.u32 %s5, 4
      %s96 = int_to_ptr.hbm [resolvable:$true] %s95
      %s97 = sshll.u32 [#allocation13], 4
      %s98 = int_to_ptr.vmem [resolvable:$true] %s97
      %100 = dma.hbm_to_vmem [thread:$0]  %s96, 16, %s98, [#allocation14]
    $region25: #{tpu_custom_call.1} parent=1 // pred_fallthru
      _
    // Predicated region
    $region26: #{tpu_custom_call.1} parent=1 // pred_check
      _
    $region27: #{tpu_custom_call.1} parent=1 // pred_check_branch
      %102 = sbr.rel (0) target = $region29
    $region28: #{tpu_custom_call.1} parent=1 // pred_region
      %104 = vsyncadd [#allocation14], 0
      %s105 = sshll.u32 %s6, 4
      %s106 = int_to_ptr.hbm [resolvable:$true] %s105
      %s107 = sshll.u32 [#allocation15], 4
      %s108 = int_to_ptr.vmem [resolvable:$true] %s107
      %113 = dma.hbm_to_vmem [thread:$0]  %s106, 4096, %s108, [#allocation14], 256, 256, 16
    $region29: #{tpu_custom_call.1} parent=1 // pred_fallthru
      _
    // Predicated region
    $region30: #{tpu_custom_call.1} parent=1 // pred_check
      _
    $region31: #{tpu_custom_call.1} parent=1 // pred_check_branch
      %115 = sbr.rel (0) target = $region33
    $region32: #{tpu_custom_call.1} parent=1 // pred_region
      %117 = vsyncadd [#allocation17], 0
      %s119 = sshll.u32 %s7, 4
      %s120 = int_to_ptr.hbm [resolvable:$true] %s119
      %s121 = sshll.u32 [#allocation16], 4
      %s122 = int_to_ptr.vmem [resolvable:$true] %s121
      %124 = dma.hbm_to_vmem [thread:$0]  %s120, 32, %s122, [#allocation17]
    $region33: #{tpu_custom_call.1} parent=1 // pred_fallthru
      _
    // Predicated region
    $region34: #{tpu_custom_call.1} parent=1 // pred_check
      _
    $region35: #{tpu_custom_call.1} parent=1 // pred_check_branch
      %126 = sbr.rel (0) target = $region37
    $region36: #{tpu_custom_call.1} parent=1 // pred_region
      %128 = vsyncadd [#allocation17], 0
      %s129 = sshll.u32 %s8, 4
      %s130 = int_to_ptr.hbm [resolvable:$true] %s129
      %s131 = sshll.u32 [#allocation18], 4
      %s132 = int_to_ptr.vmem [resolvable:$true] %s131
      %137 = dma.hbm_to_vmem [thread:$0]  %s130, 8192, %s132, [#allocation17], 512, 512, 32
    $region37: #{tpu_custom_call.1} parent=1 // pred_fallthru
      _
    // Predicated region
    $region38: #{tpu_custom_call.1} parent=1 // pred_check
      _
    $region39: #{tpu_custom_call.1} parent=1 // pred_check_branch
      %139 = sbr.rel (0) target = $region41
    $region40: #{tpu_custom_call.1} parent=1 // pred_region
      %141 = vsyncadd [#allocation20], 0
      %s142 = sshll.u32 %s9, 4
      %s143 = int_to_ptr.hbm [resolvable:$true] %s142
      %s144 = sshll.u32 [#allocation19], 4
      %s145 = int_to_ptr.vmem [resolvable:$true] %s144
      %150 = dma.hbm_to_vmem [thread:$0]  %s143, 8192, %s145, [#allocation20], 512, 512, 32
    $region41: #{tpu_custom_call.1} parent=1 // pred_fallthru
      _
    // Predicated region
    $region42: #{tpu_custom_call.1} parent=1 // pred_check
      _
    $region43: #{tpu_custom_call.1} parent=1 // pred_check_branch
      %152 = sbr.rel (0) target = $region45
    $region44: #{tpu_custom_call.1} parent=1 // pred_region
      _
    $region45: #{tpu_custom_call.1} parent=1 // pred_fallthru
      _
    // Predicated region
    $region46: #{tpu_custom_call.1} parent=1 // pred_check
      _
    $region47: #{tpu_custom_call.1} parent=1 // pred_check_branch
      %154 = sbr.rel (0) target = $region49
    $region48: #{tpu_custom_call.1} parent=1 // pred_region
      %156 = vsyncadd [#allocation20], 0
      %s157 = sshll.u32 %s11, 4
      %s158 = int_to_ptr.hbm [resolvable:$true] %s157
      %s159 = sshll.u32 [#allocation21], 4
      %s160 = int_to_ptr.vmem [resolvable:$true] %s159
      %165 = dma.hbm_to_vmem [thread:$0]  %s158, 8192, %s160, [#allocation20], 512, 512, 32
    $region49: #{tpu_custom_call.1} parent=1 // pred_fallthru
      _
    // Predicated region
    $region50: #{tpu_custom_call.1} parent=1 // pred_check
      _
    $region51: #{tpu_custom_call.1} parent=1 // pred_check_branch
      %167 = sbr.rel (0) target = $region53
    $region52: #{tpu_custom_call.1} parent=1 // pred_region
      %169 = vsyncadd [#allocation23], 0
      %s170 = sshll.u32 %s12, 4
      %s171 = int_to_ptr.hbm [resolvable:$true] %s170
      %s172 = sshll.u32 [#allocation22], 4
      %s173 = int_to_ptr.vmem [resolvable:$true] %s172
      %178 = dma.hbm_to_vmem [thread:$0]  %s171, 8192, %s173, [#allocation23], 512, 512, 32
    $region53: #{tpu_custom_call.1} parent=1 // pred_fallthru
      _
    // Predicated region
    $region54: #{tpu_custom_call.1} parent=1 // pred_check
      _
    $region55: #{tpu_custom_call.1} parent=1 // pred_check_branch
      %180 = sbr.rel (0) target = $region57
    $region56: #{tpu_custom_call.1} parent=1 // pred_region
      _
    $region57: #{tpu_custom_call.1} parent=1 // pred_fallthru
      _
    // Predicated region
    $region58: #{tpu_custom_call.1} parent=1 // pred_check
      _
    $region59: #{tpu_custom_call.1} parent=1 // pred_check_branch
      %182 = sbr.rel (0) target = $region61
    $region60: #{tpu_custom_call.1} parent=1 // pred_region
      %184 = vsyncadd [#allocation23], 0
      %s185 = sshll.u32 %s14, 4
      %s186 = int_to_ptr.hbm [resolvable:$true] %s185
      %s187 = sshll.u32 [#allocation24], 4
      %s188 = int_to_ptr.vmem [resolvable:$true] %s187
      %193 = dma.hbm_to_vmem [thread:$0]  %s186, 2048, %s188, [#allocation23], 128, 128, 8
    $region61: #{tpu_custom_call.1} parent=1 // pred_fallthru
      _
    // Predicated region
    $region62: #{tpu_custom_call.1} parent=1 // pred_check
      _
    $region63: #{tpu_custom_call.1} parent=1 // pred_check_branch
      %195 = sbr.rel (0) target = $region65
    $region64: #{tpu_custom_call.1} parent=1 // pred_region
      _
    $region65: #{tpu_custom_call.1} parent=1 // pred_fallthru
      _
    // Predicated region
    $region66: #{tpu_custom_call.1} parent=1 // pred_check
      _
    $region67: #{tpu_custom_call.1} parent=1 // pred_check_branch
      %197 = sbr.rel (0) target = $region69
    $region68: #{tpu_custom_call.1} parent=1 // pred_region
      %199 = dma.done [#allocation5], 256
    $region69: #{tpu_custom_call.1} parent=1 // pred_fallthru
      _
    // Predicated region
    $region70: #{tpu_custom_call.1} parent=1 // pred_check
      _
    $region71: #{tpu_custom_call.1} parent=1 // pred_check_branch
      %201 = sbr.rel (0) target = $region73
    $region72: #{tpu_custom_call.1} parent=1 // pred_region
      %203 = dma.done [#allocation8], 32
    $region73: #{tpu_custom_call.1} parent=1 // pred_fallthru
      _
    // Predicated region
    $region74: #{tpu_custom_call.1} parent=1 // pred_check
      _
    $region75: #{tpu_custom_call.1} parent=1 // pred_check_branch
      %205 = sbr.rel (0) target = $region77
    $region76: #{tpu_custom_call.1} parent=1 // pred_region
      %207 = dma.done [#allocation8], 2048
    $region77: #{tpu_custom_call.1} parent=1 // pred_fallthru
      _
    // Predicated region
    $region78: #{tpu_custom_call.1} parent=1 // pred_check
      _
    $region79: #{tpu_custom_call.1} parent=1 // pred_check_branch
      %209 = sbr.rel (0) target = $region81
    $region80: #{tpu_custom_call.1} parent=1 // pred_region
      %211 = dma.done [#allocation11], 16
    $region81: #{tpu_custom_call.1} parent=1 // pred_fallthru
      _
    // Predicated region
    $region82: #{tpu_custom_call.1} parent=1 // pred_check
      _
    $region83: #{tpu_custom_call.1} parent=1 // pred_check_branch
      %213 = sbr.rel (0) target = $region85
    $region84: #{tpu_custom_call.1} parent=1 // pred_region
      %215 = dma.done [#allocation11], 2048
    $region85: #{tpu_custom_call.1} parent=1 // pred_fallthru
      _
    // Predicated region
    $region86: #{tpu_custom_call.1} parent=1 // pred_check
      _
    $region87: #{tpu_custom_call.1} parent=1 // pred_check_branch
      %217 = sbr.rel (0) target = $region89
    $region88: #{tpu_custom_call.1} parent=1 // pred_region
      %219 = dma.done [#allocation14], 16
    $region89: #{tpu_custom_call.1} parent=1 // pred_fallthru
      _
    // Predicated region
    $region90: #{tpu_custom_call.1} parent=1 // pred_check
      _
    $region91: #{tpu_custom_call.1} parent=1 // pred_check_branch
      %221 = sbr.rel (0) target = $region93
    $region92: #{tpu_custom_call.1} parent=1 // pred_region
      %223 = dma.done [#allocation14], 4096
    $region93: #{tpu_custom_call.1} parent=1 // pred_fallthru
      _
    // Predicated region
    $region94: #{tpu_custom_call.1} parent=1 // pred_check
      _
    $region95: #{tpu_custom_call.1} parent=1 // pred_check_branch
      %225 = sbr.rel (0) target = $region97
    $region96: #{tpu_custom_call.1} parent=1 // pred_region
      %227 = dma.done [#allocation17], 32
    $region97: #{tpu_custom_call.1} parent=1 // pred_fallthru
      _
    // Predicated region
    $region98: #{tpu_custom_call.1} parent=1 // pred_check
      _
    $region99: #{tpu_custom_call.1} parent=1 // pred_check_branch
      %229 = sbr.rel (0) target = $region101
    $region100: #{tpu_custom_call.1} parent=1 // pred_region
      %231 = dma.done [#allocation17], 8192
    $region101: #{tpu_custom_call.1} parent=1 // pred_fallthru
      _
    // Predicated region
    $region102: #{tpu_custom_call.1} parent=1 // pred_check
      _
    $region103: #{tpu_custom_call.1} parent=1 // pred_check_branch
      %233 = sbr.rel (0) target = $region105
    $region104: #{tpu_custom_call.1} parent=1 // pred_region
      %235 = dma.done [#allocation20], 8192
    $region105: #{tpu_custom_call.1} parent=1 // pred_fallthru
      _
    // Predicated region
    $region106: #{tpu_custom_call.1} parent=1 // pred_check
      _
    $region107: #{tpu_custom_call.1} parent=1 // pred_check_branch
      %237 = sbr.rel (0) target = $region109
    $region108: #{tpu_custom_call.1} parent=1 // pred_region
      %239 = dma.done [#allocation20], 8192
    $region109: #{tpu_custom_call.1} parent=1 // pred_fallthru
      _
    // Predicated region
    $region110: #{tpu_custom_call.1} parent=1 // pred_check
      _
    $region111: #{tpu_custom_call.1} parent=1 // pred_check_branch
      %241 = sbr.rel (0) target = $region113
    $region112: #{tpu_custom_call.1} parent=1 // pred_region
      %243 = dma.done [#allocation23], 8192
    $region113: #{tpu_custom_call.1} parent=1 // pred_fallthru
      _
    // Predicated region
    $region114: #{tpu_custom_call.1} parent=1 // pred_check
      _
    $region115: #{tpu_custom_call.1} parent=1 // pred_check_branch
      %245 = sbr.rel (0) target = $region117
    $region116: #{tpu_custom_call.1} parent=1 // pred_region
      %247 = dma.done [#allocation23], 2048
    $region117: #{tpu_custom_call.1} parent=1 // pred_fallthru
      _
    %v248 = vld [vmem:[#allocation7] sm:$0x3]
    %v249 = vld [vmem:[#allocation9] sm:$0xff]
    %v250 = vld [vmem:[#allocation9 + $0x8] sm:$0xff]
    %v251 = vld [vmem:[#allocation9 + $0x10] sm:$0xff]
    %v252 = vld [vmem:[#allocation9 + $0x18] sm:$0xff]
    %v253 = vld [vmem:[#allocation9 + $0x20] sm:$0xff]
    %v254 = vld [vmem:[#allocation9 + $0x28] sm:$0xff]
    %v255 = vld [vmem:[#allocation9 + $0x30] sm:$0xff]
    %v256 = vld [vmem:[#allocation9 + $0x38] sm:$0xff]
    %v257 = vld [vmem:[#allocation9 + $0x40] sm:$0xff]
    %v258 = vld [vmem:[#allocation9 + $0x48] sm:$0xff]
    %v259 = vld [vmem:[#allocation9 + $0x50] sm:$0xff]
    %v260 = vld [vmem:[#allocation9 + $0x58] sm:$0xff]
    %v261 = vld [vmem:[#allocation9 + $0x60] sm:$0xff]
    %v262 = vld [vmem:[#allocation9 + $0x68] sm:$0xff]
    %v263 = vld [vmem:[#allocation9 + $0x70] sm:$0xff]
    %v264 = vld [vmem:[#allocation9 + $0x78] sm:$0xff]
    %v265 = vld [vmem:[#allocation10] sm:$0x1]
    %v267 = vperm.slane %v265, 0
    %269 = vmatpush.msra.mxu0 %v264
    %270 = vmatpush.msra.mxu0 %v263
    %271 = vmatpush.msra.mxu0 %v262
    %272 = vmatpush.msra.mxu0 %v261
    %273 = vmatpush.msra.mxu0 %v260
    %274 = vmatpush.msra.mxu0 %v259
    %275 = vmatpush.msra.mxu0 %v258
    %276 = vmatpush.msra.mxu0 %v257
    %277 = vmatpush.msra.mxu0 %v256
    %278 = vmatpush.msra.mxu0 %v255
    %279 = vmatpush.msra.mxu0 %v254
    %280 = vmatpush.msra.mxu0 %v253
    %281 = vmatpush.msra.mxu0 %v252
    %282 = vmatpush.msra.mxu0 %v251
    %283 = vmatpush.msra.mxu0 %v250
    %284 = vmatpush.msra.mxu0 %v249
    %285 = vmatmul.f32.gmra.mxu0 %v248
    %v286 = vpop.f32.mrf.mxu0
    %v287 = vadd.f32 %v267, %v286
    %288 = vdwg.mxu0
    %v289 = vmax.f32 %v287, 0.0
    %v290 = vld [vmem:[#allocation12] sm:$0xff]
    %v291 = vld [vmem:[#allocation12 + $0x8] sm:$0xff]
    %v292 = vld [vmem:[#allocation12 + $0x10] sm:$0xff]
    %v293 = vld [vmem:[#allocation12 + $0x18] sm:$0xff]
    %v294 = vld [vmem:[#allocation12 + $0x20] sm:$0xff]
    %v295 = vld [vmem:[#allocation12 + $0x28] sm:$0xff]
    %v296 = vld [vmem:[#allocation12 + $0x30] sm:$0xff]
    %v297 = vld [vmem:[#allocation12 + $0x38] sm:$0xff]
    %v298 = vld [vmem:[#allocation12 + $0x40] sm:$0xff]
    %v299 = vld [vmem:[#allocation12 + $0x48] sm:$0xff]
    %v300 = vld [vmem:[#allocation12 + $0x50] sm:$0xff]
    %v301 = vld [vmem:[#allocation12 + $0x58] sm:$0xff]
    %v302 = vld [vmem:[#allocation12 + $0x60] sm:$0xff]
    %v303 = vld [vmem:[#allocation12 + $0x68] sm:$0xff]
    %v304 = vld [vmem:[#allocation12 + $0x70] sm:$0xff]
    %v305 = vld [vmem:[#allocation12 + $0x78] sm:$0xff]
    %v306 = vld [vmem:[#allocation13] sm:$0x1]
    %v308 = vperm.slane %v306, 0
    %310 = vmatpush.msra.mxu0 %v305
    %311 = vmatpush.msra.mxu0 %v304
    %312 = vmatpush.msra.mxu0 %v303
    %313 = vmatpush.msra.mxu0 %v302
    %314 = vmatpush.msra.mxu0 %v301
    %315 = vmatpush.msra.mxu0 %v300
    %316 = vmatpush.msra.mxu0 %v299
    %317 = vmatpush.msra.mxu0 %v298
    %318 = vmatpush.msra.mxu0 %v297
    %319 = vmatpush.msra.mxu0 %v296
    %320 = vmatpush.msra.mxu0 %v295
    %321 = vmatpush.msra.mxu0 %v294
    %322 = vmatpush.msra.mxu0 %v293
    %323 = vmatpush.msra.mxu0 %v292
    %324 = vmatpush.msra.mxu0 %v291
    %325 = vmatpush.msra.mxu0 %v290
    %326 = vmatmul.f32.gmra.mxu0 %v289
    %v327 = vpop.f32.mrf.mxu0
    %v328 = vadd.f32 %v308, %v327
    %329 = vdwg.mxu0
    %v330 = vmax.f32 %v328, 0.0
    %v331 = vadd.f32 %v289, %v330
    %v332 = vld [vmem:[#allocation15] sm:$0xff]
    %v333 = vld [vmem:[#allocation15 + $0x8] sm:$0xff]
    %v334 = vld [vmem:[#allocation15 + $0x10] sm:$0xff]
    %v335 = vld [vmem:[#allocation15 + $0x18] sm:$0xff]
    %v336 = vld [vmem:[#allocation15 + $0x20] sm:$0xff]
    %v337 = vld [vmem:[#allocation15 + $0x28] sm:$0xff]
    %v338 = vld [vmem:[#allocation15 + $0x30] sm:$0xff]
    %v339 = vld [vmem:[#allocation15 + $0x38] sm:$0xff]
    %v340 = vld [vmem:[#allocation15 + $0x40] sm:$0xff]
    %v341 = vld [vmem:[#allocation15 + $0x48] sm:$0xff]
    %v342 = vld [vmem:[#allocation15 + $0x50] sm:$0xff]
    %v343 = vld [vmem:[#allocation15 + $0x58] sm:$0xff]
    %v344 = vld [vmem:[#allocation15 + $0x60] sm:$0xff]
    %v345 = vld [vmem:[#allocation15 + $0x68] sm:$0xff]
    %v346 = vld [vmem:[#allocation15 + $0x70] sm:$0xff]
    %v347 = vld [vmem:[#allocation15 + $0x78] sm:$0xff]
    %v348 = vld [vmem:[#allocation15 + $0x80] sm:$0xff]
    %v349 = vld [vmem:[#allocation15 + $0x88] sm:$0xff]
    %v350 = vld [vmem:[#allocation15 + $0x90] sm:$0xff]
    %v351 = vld [vmem:[#allocation15 + $0x98] sm:$0xff]
    %v352 = vld [vmem:[#allocation15 + $0xa0] sm:$0xff]
    %v353 = vld [vmem:[#allocation15 + $0xa8] sm:$0xff]
    %v354 = vld [vmem:[#allocation15 + $0xb0] sm:$0xff]
    %v355 = vld [vmem:[#allocation15 + $0xb8] sm:$0xff]
    %v356 = vld [vmem:[#allocation15 + $0xc0] sm:$0xff]
    %v357 = vld [vmem:[#allocation15 + $0xc8] sm:$0xff]
    %v358 = vld [vmem:[#allocation15 + $0xd0] sm:$0xff]
    %v359 = vld [vmem:[#allocation15 + $0xd8] sm:$0xff]
    %v360 = vld [vmem:[#allocation15 + $0xe0] sm:$0xff]
    %v361 = vld [vmem:[#allocation15 + $0xe8] sm:$0xff]
    %v362 = vld [vmem:[#allocation15 + $0xf0] sm:$0xff]
    %v363 = vld [vmem:[#allocation15 + $0xf8] sm:$0xff]
    %v364 = vld [vmem:[#allocation16] sm:$0x3]
    %v366 = vperm.slane %v364, 0
    %v367 = vperm.slane %v364, 1
    %370 = vmatpush.msra.mxu0 %v362
    %371 = vmatpush.msra.mxu0 %v360
    %372 = vmatpush.msra.mxu0 %v358
    %373 = vmatpush.msra.mxu0 %v356
    %374 = vmatpush.msra.mxu0 %v354
    %375 = vmatpush.msra.mxu0 %v352
    %376 = vmatpush.msra.mxu0 %v350
    %377 = vmatpush.msra.mxu0 %v348
    %378 = vmatpush.msra.mxu0 %v346
    %379 = vmatpush.msra.mxu0 %v344
    %380 = vmatpush.msra.mxu0 %v342
    %381 = vmatpush.msra.mxu0 %v340
    %382 = vmatpush.msra.mxu0 %v338
    %383 = vmatpush.msra.mxu0 %v336
    %384 = vmatpush.msra.mxu0 %v334
    %385 = vmatpush.msra.mxu0 %v332
    %386 = vmatmul.f32.gmra.mxu0 %v331
    %v387 = vpop.f32.mrf.mxu0
    %v388 = vadd.f32 %v366, %v387
    %389 = vdwg.mxu0
    %390 = vmatpush.msra.mxu0 %v363
    %391 = vmatpush.msra.mxu0 %v361
    %392 = vmatpush.msra.mxu0 %v359
    %393 = vmatpush.msra.mxu0 %v357
    %394 = vmatpush.msra.mxu0 %v355
    %395 = vmatpush.msra.mxu0 %v353
    %396 = vmatpush.msra.mxu0 %v351
    %397 = vmatpush.msra.mxu0 %v349
    %398 = vmatpush.msra.mxu0 %v347
    %399 = vmatpush.msra.mxu0 %v345
    %400 = vmatpush.msra.mxu0 %v343
    %401 = vmatpush.msra.mxu0 %v341
    %402 = vmatpush.msra.mxu0 %v339
    %403 = vmatpush.msra.mxu0 %v337
    %404 = vmatpush.msra.mxu0 %v335
    %405 = vmatpush.msra.mxu0 %v333
    %406 = vmatmul.f32.gmra.mxu0 %v331
    %v407 = vpop.f32.mrf.mxu0
    %v408 = vadd.f32 %v367, %v407
    %409 = vdwg.mxu0
    %v410 = vtanh.pop %v388
    %v411 = vtanh.pop %v408
    %v412 = vld [vmem:[#allocation18] sm:$0xff]
    %v413 = vld [vmem:[#allocation18 + $0x8] sm:$0xff]
    %v414 = vld [vmem:[#allocation18 + $0x10] sm:$0xff]
    %v415 = vld [vmem:[#allocation18 + $0x18] sm:$0xff]
    %v416 = vld [vmem:[#allocation18 + $0x20] sm:$0xff]
    %v417 = vld [vmem:[#allocation18 + $0x28] sm:$0xff]
    %v418 = vld [vmem:[#allocation18 + $0x30] sm:$0xff]
    %v419 = vld [vmem:[#allocation18 + $0x38] sm:$0xff]
    %v420 = vld [vmem:[#allocation18 + $0x40] sm:$0xff]
    %v421 = vld [vmem:[#allocation18 + $0x48] sm:$0xff]
    %v422 = vld [vmem:[#allocation18 + $0x50] sm:$0xff]
    %v423 = vld [vmem:[#allocation18 + $0x58] sm:$0xff]
    %v424 = vld [vmem:[#allocation18 + $0x60] sm:$0xff]
    %v425 = vld [vmem:[#allocation18 + $0x68] sm:$0xff]
    %v426 = vld [vmem:[#allocation18 + $0x70] sm:$0xff]
    %v427 = vld [vmem:[#allocation18 + $0x78] sm:$0xff]
    %v428 = vld [vmem:[#allocation18 + $0x80] sm:$0xff]
    %v429 = vld [vmem:[#allocation18 + $0x88] sm:$0xff]
    %v430 = vld [vmem:[#allocation18 + $0x90] sm:$0xff]
    %v431 = vld [vmem:[#allocation18 + $0x98] sm:$0xff]
    %v432 = vld [vmem:[#allocation18 + $0xa0] sm:$0xff]
    %v433 = vld [vmem:[#allocation18 + $0xa8] sm:$0xff]
    %v434 = vld [vmem:[#allocation18 + $0xb0] sm:$0xff]
    %v435 = vld [vmem:[#allocation18 + $0xb8] sm:$0xff]
    %v436 = vld [vmem:[#allocation18 + $0xc0] sm:$0xff]
    %v437 = vld [vmem:[#allocation18 + $0xc8] sm:$0xff]
    %v438 = vld [vmem:[#allocation18 + $0xd0] sm:$0xff]
    %v439 = vld [vmem:[#allocation18 + $0xd8] sm:$0xff]
    %v440 = vld [vmem:[#allocation18 + $0xe0] sm:$0xff]
    %v441 = vld [vmem:[#allocation18 + $0xe8] sm:$0xff]
    %v442 = vld [vmem:[#allocation18 + $0xf0] sm:$0xff]
    %v443 = vld [vmem:[#allocation18 + $0xf8] sm:$0xff]
    %v444 = vld [vmem:[#allocation18 + $0x100] sm:$0xff]
    %v445 = vld [vmem:[#allocation18 + $0x108] sm:$0xff]
    %v446 = vld [vmem:[#allocation18 + $0x110] sm:$0xff]
    %v447 = vld [vmem:[#allocation18 + $0x118] sm:$0xff]
    %v448 = vld [vmem:[#allocation18 + $0x120] sm:$0xff]
    %v449 = vld [vmem:[#allocation18 + $0x128] sm:$0xff]
    %v450 = vld [vmem:[#allocation18 + $0x130] sm:$0xff]
    %v451 = vld [vmem:[#allocation18 + $0x138] sm:$0xff]
    %v452 = vld [vmem:[#allocation18 + $0x140] sm:$0xff]
    %v453 = vld [vmem:[#allocation18 + $0x148] sm:$0xff]
    %v454 = vld [vmem:[#allocation18 + $0x150] sm:$0xff]
    %v455 = vld [vmem:[#allocation18 + $0x158] sm:$0xff]
    %v456 = vld [vmem:[#allocation18 + $0x160] sm:$0xff]
    %v457 = vld [vmem:[#allocation18 + $0x168] sm:$0xff]
    %v458 = vld [vmem:[#allocation18 + $0x170] sm:$0xff]
    %v459 = vld [vmem:[#allocation18 + $0x178] sm:$0xff]
    %v460 = vld [vmem:[#allocation18 + $0x180] sm:$0xff]
    %v461 = vld [vmem:[#allocation18 + $0x188] sm:$0xff]
    %v462 = vld [vmem:[#allocation18 + $0x190] sm:$0xff]
    %v463 = vld [vmem:[#allocation18 + $0x198] sm:$0xff]
    %v464 = vld [vmem:[#allocation18 + $0x1a0] sm:$0xff]
    %v465 = vld [vmem:[#allocation18 + $0x1a8] sm:$0xff]
    %v466 = vld [vmem:[#allocation18 + $0x1b0] sm:$0xff]
    %v467 = vld [vmem:[#allocation18 + $0x1b8] sm:$0xff]
    %v468 = vld [vmem:[#allocation18 + $0x1c0] sm:$0xff]
    %v469 = vld [vmem:[#allocation18 + $0x1c8] sm:$0xff]
    %v470 = vld [vmem:[#allocation18 + $0x1d0] sm:$0xff]
    %v471 = vld [vmem:[#allocation18 + $0x1d8] sm:$0xff]
    %v472 = vld [vmem:[#allocation18 + $0x1e0] sm:$0xff]
    %v473 = vld [vmem:[#allocation18 + $0x1e8] sm:$0xff]
    %v474 = vld [vmem:[#allocation18 + $0x1f0] sm:$0xff]
    %v475 = vld [vmem:[#allocation18 + $0x1f8] sm:$0xff]
    %v476 = vld [vmem:[#allocation19] sm:$0xff]
    %v477 = vld [vmem:[#allocation19 + $0x8] sm:$0xff]
    %v478 = vld [vmem:[#allocation19 + $0x10] sm:$0xff]
    %v479 = vld [vmem:[#allocation19 + $0x18] sm:$0xff]
    %v480 = vld [vmem:[#allocation19 + $0x20] sm:$0xff]
    %v481 = vld [vmem:[#allocation19 + $0x28] sm:$0xff]
    %v482 = vld [vmem:[#allocation19 + $0x30] sm:$0xff]
    %v483 = vld [vmem:[#allocation19 + $0x38] sm:$0xff]
    %v484 = vld [vmem:[#allocation19 + $0x40] sm:$0xff]
    %v485 = vld [vmem:[#allocation19 + $0x48] sm:$0xff]
    %v486 = vld [vmem:[#allocation19 + $0x50] sm:$0xff]
    %v487 = vld [vmem:[#allocation19 + $0x58] sm:$0xff]
    %v488 = vld [vmem:[#allocation19 + $0x60] sm:$0xff]
    %v489 = vld [vmem:[#allocation19 + $0x68] sm:$0xff]
    %v490 = vld [vmem:[#allocation19 + $0x70] sm:$0xff]
    %v491 = vld [vmem:[#allocation19 + $0x78] sm:$0xff]
    %v492 = vld [vmem:[#allocation19 + $0x80] sm:$0xff]
    %v493 = vld [vmem:[#allocation19 + $0x88] sm:$0xff]
    %v494 = vld [vmem:[#allocation19 + $0x90] sm:$0xff]
    %v495 = vld [vmem:[#allocation19 + $0x98] sm:$0xff]
    %v496 = vld [vmem:[#allocation19 + $0xa0] sm:$0xff]
    %v497 = vld [vmem:[#allocation19 + $0xa8] sm:$0xff]
    %v498 = vld [vmem:[#allocation19 + $0xb0] sm:$0xff]
    %v499 = vld [vmem:[#allocation19 + $0xb8] sm:$0xff]
    %v500 = vld [vmem:[#allocation19 + $0xc0] sm:$0xff]
    %v501 = vld [vmem:[#allocation19 + $0xc8] sm:$0xff]
    %v502 = vld [vmem:[#allocation19 + $0xd0] sm:$0xff]
    %v503 = vld [vmem:[#allocation19 + $0xd8] sm:$0xff]
    %v504 = vld [vmem:[#allocation19 + $0xe0] sm:$0xff]
    %v505 = vld [vmem:[#allocation19 + $0xe8] sm:$0xff]
    %v506 = vld [vmem:[#allocation19 + $0xf0] sm:$0xff]
    %v507 = vld [vmem:[#allocation19 + $0xf8] sm:$0xff]
    %v508 = vld [vmem:[#allocation19 + $0x100] sm:$0xff]
    %v509 = vld [vmem:[#allocation19 + $0x108] sm:$0xff]
    %v510 = vld [vmem:[#allocation19 + $0x110] sm:$0xff]
    %v511 = vld [vmem:[#allocation19 + $0x118] sm:$0xff]
    %v512 = vld [vmem:[#allocation19 + $0x120] sm:$0xff]
    %v513 = vld [vmem:[#allocation19 + $0x128] sm:$0xff]
    %v514 = vld [vmem:[#allocation19 + $0x130] sm:$0xff]
    %v515 = vld [vmem:[#allocation19 + $0x138] sm:$0xff]
    %v516 = vld [vmem:[#allocation19 + $0x140] sm:$0xff]
    %v517 = vld [vmem:[#allocation19 + $0x148] sm:$0xff]
    %v518 = vld [vmem:[#allocation19 + $0x150] sm:$0xff]
    %v519 = vld [vmem:[#allocation19 + $0x158] sm:$0xff]
    %v520 = vld [vmem:[#allocation19 + $0x160] sm:$0xff]
    %v521 = vld [vmem:[#allocation19 + $0x168] sm:$0xff]
    %v522 = vld [vmem:[#allocation19 + $0x170] sm:$0xff]
    %v523 = vld [vmem:[#allocation19 + $0x178] sm:$0xff]
    %v524 = vld [vmem:[#allocation19 + $0x180] sm:$0xff]
    %v525 = vld [vmem:[#allocation19 + $0x188] sm:$0xff]
    %v526 = vld [vmem:[#allocation19 + $0x190] sm:$0xff]
    %v527 = vld [vmem:[#allocation19 + $0x198] sm:$0xff]
    %v528 = vld [vmem:[#allocation19 + $0x1a0] sm:$0xff]
    %v529 = vld [vmem:[#allocation19 + $0x1a8] sm:$0xff]
    %v530 = vld [vmem:[#allocation19 + $0x1b0] sm:$0xff]
    %v531 = vld [vmem:[#allocation19 + $0x1b8] sm:$0xff]
    %v532 = vld [vmem:[#allocation19 + $0x1c0] sm:$0xff]
    %v533 = vld [vmem:[#allocation19 + $0x1c8] sm:$0xff]
    %v534 = vld [vmem:[#allocation19 + $0x1d0] sm:$0xff]
    %v535 = vld [vmem:[#allocation19 + $0x1d8] sm:$0xff]
    %v536 = vld [vmem:[#allocation19 + $0x1e0] sm:$0xff]
    %v537 = vld [vmem:[#allocation19 + $0x1e8] sm:$0xff]
    %v538 = vld [vmem:[#allocation19 + $0x1f0] sm:$0xff]
    %v539 = vld [vmem:[#allocation19 + $0x1f8] sm:$0xff]
    %v540 = vld [vmem:[%s10] sm:$0xf]
    %v541 = vld [vmem:[#allocation4] sm:$0x3]
    %v542 = vld [vmem:[#allocation4 + $0x2] sm:$0x3]
    %v543 = vld [vmem:[#allocation4 + $0x4] sm:$0x3]
    %v544 = vld [vmem:[#allocation4 + $0x6] sm:$0x3]
    %v545 = vld [vmem:[#allocation4 + $0x8] sm:$0x3]
    %v546 = vld [vmem:[#allocation4 + $0xa] sm:$0x3]
    %v547 = vld [vmem:[#allocation4 + $0xc] sm:$0x3]
    %v548 = vld [vmem:[#allocation4 + $0xe] sm:$0x3]
    %v550 = vperm.slane %v540, 0
    %v551 = vperm.slane %v540, 1
    %v552 = vperm.slane %v540, 2
    %v553 = vperm.slane %v540, 3
    %v554 = vrot.slane %v551, 6
    %v555 = vrot.slane %v552, 4
    %v556 = vrot.slane %v553, 2
    %vm557 = vcmask 1041408
    %v558 = vsel %vm557, %v550, %v554
    %vm559 = vcmask 1045508
    %v560 = vsel %vm559, %v555, %v556
    %vm561 = vcmask 1043456
    %v562 = vsel %vm561, %v558, %v560
    %571 = vst [vmem:[#allocation1] ss:$4 sm:$0xff] %v541
    %s572 = scalar_lea.vmem [#allocation1], 1
    %573 = vst [vmem:[%s572] ss:$4 sm:$0xff] %v542
    %s574 = scalar_lea.vmem [#allocation1], 2
    %575 = vst [vmem:[%s574] ss:$4 sm:$0xff] %v543
    %s576 = scalar_lea.vmem [#allocation1], 3
    %577 = vst [vmem:[%s576] ss:$4 sm:$0xff] %v544
    %s578 = scalar_lea.vmem [#allocation1], 32
    %579 = vst [vmem:[%s578] ss:$4 sm:$0xff] %v545
    %s580 = scalar_lea.vmem [#allocation1], 33
    %581 = vst [vmem:[%s580] ss:$4 sm:$0xff] %v546
    %s582 = scalar_lea.vmem [#allocation1], 34
    %583 = vst [vmem:[%s582] ss:$4 sm:$0xff] %v547
    %s584 = scalar_lea.vmem [#allocation1], 35
    %585 = vst [vmem:[%s584] ss:$4 sm:$0xff] %v548
    %v586 = vld.sshfl [vmem:[#allocation1] sm:$0xff pattern:$0x73625140]
    %v587 = vld.sshfl [vmem:[#allocation1 + $0x20] sm:$0xff pattern:$0x73625140]
    %590 = vst [vmem:[#allocation1] ss:$4 sm:$0xff] %v562
    %s591 = scalar_lea.vmem [#allocation1], 1
    %592 = vst [vmem:[%s591] ss:$4 sm:$0xff] %v562
    %s593 = scalar_lea.vmem [#allocation1], 2
    %594 = vst [vmem:[%s593] ss:$4 sm:$0xff] %v562
    %s595 = scalar_lea.vmem [#allocation1], 3
    %596 = vst [vmem:[%s595] ss:$4 sm:$0xff] %v562
    %s597 = scalar_lea.vmem [#allocation1], 32
    %598 = vst [vmem:[%s597] ss:$4 sm:$0xff] %v562
    %s599 = scalar_lea.vmem [#allocation1], 33
    %600 = vst [vmem:[%s599] ss:$4 sm:$0xff] %v562
    %s601 = scalar_lea.vmem [#allocation1], 34
    %602 = vst [vmem:[%s601] ss:$4 sm:$0xff] %v562
    %s603 = scalar_lea.vmem [#allocation1], 35
    %604 = vst [vmem:[%s603] ss:$4 sm:$0xff] %v562
    %v605 = vld.sshfl [vmem:[#allocation1] sm:$0xff pattern:$0x73625140]
    %v606 = vld.sshfl [vmem:[#allocation1 + $0x8] sm:$0xff pattern:$0x73625140]
    %v607 = vld.sshfl [vmem:[#allocation1 + $0x10] sm:$0xff pattern:$0x73625140]
    %v608 = vld.sshfl [vmem:[#allocation1 + $0x18] sm:$0xff pattern:$0x73625140]
    %v609 = vld.sshfl [vmem:[#allocation1 + $0x20] sm:$0xff pattern:$0x73625140]
    %v610 = vld.sshfl [vmem:[#allocation1 + $0x28] sm:$0xff pattern:$0x73625140]
    %v611 = vld.sshfl [vmem:[#allocation1 + $0x30] sm:$0xff pattern:$0x73625140]
    %v612 = vld.sshfl [vmem:[#allocation1 + $0x38] sm:$0xff pattern:$0x73625140]
    %621 = vmatpush.msra.mxu0 %v472
    %622 = vmatpush.msra.mxu0 %v468
    %623 = vmatpush.msra.mxu0 %v464
    %624 = vmatpush.msra.mxu0 %v460
    %625 = vmatpush.msra.mxu0 %v456
    %626 = vmatpush.msra.mxu0 %v452
    %627 = vmatpush.msra.mxu0 %v448
    %628 = vmatpush.msra.mxu0 %v444
    %629 = vmatpush.msra.mxu0 %v440
    %630 = vmatpush.msra.mxu0 %v436
    %631 = vmatpush.msra.mxu0 %v432
    %632 = vmatpush.msra.mxu0 %v428
    %633 = vmatpush.msra.mxu0 %v424
    %634 = vmatpush.msra.mxu0 %v420
    %635 = vmatpush.msra.mxu0 %v416
    %636 = vmatpush.msra.mxu0 %v412
    %637 = vmatmul.f32.gmra.mxu0 %v586
    %v638 = vpop.f32.mrf.mxu0
    %v639 = vadd.f32 %v605, %v638
    %640 = vmatmul.f32.gmra.mxu0 %v587
    %v641 = vpop.f32.mrf.mxu0
    %v642 = vadd.f32 %v609, %v641
    %643 = vdwg.mxu0
    %644 = vmatpush.msra.mxu0 %v473
    %645 = vmatpush.msra.mxu0 %v469
    %646 = vmatpush.msra.mxu0 %v465
    %647 = vmatpush.msra.mxu0 %v461
    %648 = vmatpush.msra.mxu0 %v457
    %649 = vmatpush.msra.mxu0 %v453
    %650 = vmatpush.msra.mxu0 %v449
    %651 = vmatpush.msra.mxu0 %v445
    %652 = vmatpush.msra.mxu0 %v441
    %653 = vmatpush.msra.mxu0 %v437
    %654 = vmatpush.msra.mxu0 %v433
    %655 = vmatpush.msra.mxu0 %v429
    %656 = vmatpush.msra.mxu0 %v425
    %657 = vmatpush.msra.mxu0 %v421
    %658 = vmatpush.msra.mxu0 %v417
    %659 = vmatpush.msra.mxu0 %v413
    %660 = vmatmul.f32.gmra.mxu0 %v586
    %v661 = vpop.f32.mrf.mxu0
    %v662 = vadd.f32 %v606, %v661
    %663 = vmatmul.f32.gmra.mxu0 %v587
    %v664 = vpop.f32.mrf.mxu0
    %v665 = vadd.f32 %v610, %v664
    %666 = vdwg.mxu0
    %667 = vmatpush.msra.mxu0 %v474
    %668 = vmatpush.msra.mxu0 %v470
    %669 = vmatpush.msra.mxu0 %v466
    %670 = vmatpush.msra.mxu0 %v462
    %671 = vmatpush.msra.mxu0 %v458
    %672 = vmatpush.msra.mxu0 %v454
    %673 = vmatpush.msra.mxu0 %v450
    %674 = vmatpush.msra.mxu0 %v446
    %675 = vmatpush.msra.mxu0 %v442
    %676 = vmatpush.msra.mxu0 %v438
    %677 = vmatpush.msra.mxu0 %v434
    %678 = vmatpush.msra.mxu0 %v430
    %679 = vmatpush.msra.mxu0 %v426
    %680 = vmatpush.msra.mxu0 %v422
    %681 = vmatpush.msra.mxu0 %v418
    %682 = vmatpush.msra.mxu0 %v414
    %683 = vmatmul.f32.gmra.mxu0 %v586
    %v684 = vpop.f32.mrf.mxu0
    %v685 = vadd.f32 %v607, %v684
    %686 = vmatmul.f32.gmra.mxu0 %v587
    %v687 = vpop.f32.mrf.mxu0
    %v688 = vadd.f32 %v611, %v687
    %689 = vdwg.mxu0
    %690 = vmatpush.msra.mxu0 %v475
    %691 = vmatpush.msra.mxu0 %v471
    %692 = vmatpush.msra.mxu0 %v467
    %693 = vmatpush.msra.mxu0 %v463
    %694 = vmatpush.msra.mxu0 %v459
    %695 = vmatpush.msra.mxu0 %v455
    %696 = vmatpush.msra.mxu0 %v451
    %697 = vmatpush.msra.mxu0 %v447
    %698 = vmatpush.msra.mxu0 %v443
    %699 = vmatpush.msra.mxu0 %v439
    %700 = vmatpush.msra.mxu0 %v435
    %701 = vmatpush.msra.mxu0 %v431
    %702 = vmatpush.msra.mxu0 %v427
    %703 = vmatpush.msra.mxu0 %v423
    %704 = vmatpush.msra.mxu0 %v419
    %705 = vmatpush.msra.mxu0 %v415
    %706 = vmatmul.f32.gmra.mxu0 %v586
    %v707 = vpop.f32.mrf.mxu0
    %v708 = vadd.f32 %v608, %v707
    %709 = vmatmul.f32.gmra.mxu0 %v587
    %v710 = vpop.f32.mrf.mxu0
    %v711 = vadd.f32 %v612, %v710
    %712 = vdwg.mxu0
    %v721 = vrot.slane %v662, 6
    %v722 = vrot.slane %v685, 4
    %v723 = vrot.slane %v708, 2
    %v724 = vrot.slane %v665, 6
    %v725 = vrot.slane %v688, 4
    %v726 = vrot.slane %v711, 2
    %v727 = vsel %vm557, %v639, %v721
    %v728 = vsel %vm559, %v722, %v723
    %v729 = vsel %vm561, %v727, %v728
    %vm730 = vcmask 1043458
    %v731 = vsel %vm730, %v639, %v721
    %vm732 = vcmask 1045504
    %v733 = vsel %vm732, %v723, %v722
    %vm734 = vcmask 1045506
    %v735 = vsel %vm734, %v731, %v733
    %v736 = vrot.slane %v735, 2
    %v737 = vsel %vm559, %v639, %v721
    %v738 = vsel %vm557, %v722, %v723
    %v739 = vsel %vm561, %v738, %v737
    %v740 = vrot.slane %v739, 4
    %v741 = vsel %vm732, %v721, %v639
    %v742 = vsel %vm730, %v722, %v723
    %v743 = vsel %vm734, %v742, %v741
    %v744 = vrot.slane %v743, 6
    %v745 = vsel %vm557, %v642, %v724
    %v746 = vsel %vm559, %v725, %v726
    %v747 = vsel %vm561, %v745, %v746
    %v748 = vsel %vm730, %v642, %v724
    %v749 = vsel %vm732, %v726, %v725
    %v750 = vsel %vm734, %v748, %v749
    %v751 = vrot.slane %v750, 2
    %v752 = vsel %vm559, %v642, %v724
    %v753 = vsel %vm557, %v725, %v726
    %v754 = vsel %vm561, %v753, %v752
    %v755 = vrot.slane %v754, 4
    %v756 = vsel %vm732, %v724, %v642
    %v757 = vsel %vm730, %v725, %v726
    %v758 = vsel %vm734, %v757, %v756
    %v759 = vrot.slane %v758, 6
    %768 = vst [vmem:[#allocation3] sm:$0xff] %v729
    %769 = vst [vmem:[#allocation3 + $0x8] sm:$0xff] %v736
    %770 = vst [vmem:[#allocation3 + $0x10] sm:$0xff] %v740
    %771 = vst [vmem:[#allocation3 + $0x18] sm:$0xff] %v744
    %772 = vst [vmem:[#allocation3 + $0x20] sm:$0xff] %v747
    %773 = vst [vmem:[#allocation3 + $0x28] sm:$0xff] %v751
    %774 = vst [vmem:[#allocation3 + $0x30] sm:$0xff] %v755
    %775 = vst [vmem:[#allocation3 + $0x38] sm:$0xff] %v759
    %v776 = vld [vmem:[#allocation3] sm:$0xff]
    %777 = vmatpush.msra.mxu0 %v536
    %778 = vmatpush.msra.mxu0 %v532
    %779 = vmatpush.msra.mxu0 %v528
    %780 = vmatpush.msra.mxu0 %v524
    %781 = vmatpush.msra.mxu0 %v520
    %782 = vmatpush.msra.mxu0 %v516
    %783 = vmatpush.msra.mxu0 %v512
    %784 = vmatpush.msra.mxu0 %v508
    %785 = vmatpush.msra.mxu0 %v504
    %786 = vmatpush.msra.mxu0 %v500
    %787 = vmatpush.msra.mxu0 %v496
    %788 = vmatpush.msra.mxu0 %v492
    %789 = vmatpush.msra.mxu0 %v488
    %790 = vmatpush.msra.mxu0 %v484
    %791 = vmatpush.msra.mxu0 %v480
    %792 = vmatpush.msra.mxu0 %v476
    %793 = vmatmul.f32.gmra.mxu0 %v410
    %v794 = vpop.f32.mrf.mxu0
    %v795 = vadd.f32 0.0, %v794
    %796 = vdwg.mxu0
    %797 = vmatpush.msra.mxu0 %v537
    %798 = vmatpush.msra.mxu0 %v533
    %799 = vmatpush.msra.mxu0 %v529
    %800 = vmatpush.msra.mxu0 %v525
    %801 = vmatpush.msra.mxu0 %v521
    %802 = vmatpush.msra.mxu0 %v517
    %803 = vmatpush.msra.mxu0 %v513
    %804 = vmatpush.msra.mxu0 %v509
    %805 = vmatpush.msra.mxu0 %v505
    %806 = vmatpush.msra.mxu0 %v501
    %807 = vmatpush.msra.mxu0 %v497
    %808 = vmatpush.msra.mxu0 %v493
    %809 = vmatpush.msra.mxu0 %v489
    %810 = vmatpush.msra.mxu0 %v485
    %811 = vmatpush.msra.mxu0 %v481
    %812 = vmatpush.msra.mxu0 %v477
    %813 = vmatmul.f32.gmra.mxu0 %v410
    %v814 = vpop.f32.mrf.mxu0
    %v815 = vadd.f32 0.0, %v814
    %816 = vdwg.mxu0
    %817 = vmatpush.msra.mxu0 %v538
    %818 = vmatpush.msra.mxu0 %v534
    %819 = vmatpush.msra.mxu0 %v530
    %820 = vmatpush.msra.mxu0 %v526
    %821 = vmatpush.msra.mxu0 %v522
    %822 = vmatpush.msra.mxu0 %v518
    %823 = vmatpush.msra.mxu0 %v514
    %824 = vmatpush.msra.mxu0 %v510
    %825 = vmatpush.msra.mxu0 %v506
    %826 = vmatpush.msra.mxu0 %v502
    %827 = vmatpush.msra.mxu0 %v498
    %828 = vmatpush.msra.mxu0 %v494
    %829 = vmatpush.msra.mxu0 %v490
    %830 = vmatpush.msra.mxu0 %v486
    %831 = vmatpush.msra.mxu0 %v482
    %832 = vmatpush.msra.mxu0 %v478
    %833 = vmatmul.f32.gmra.mxu0 %v410
    %v834 = vpop.f32.mrf.mxu0
    %v835 = vadd.f32 0.0, %v834
    %836 = vdwg.mxu0
    %837 = vmatpush.msra.mxu0 %v539
    %838 = vmatpush.msra.mxu0 %v535
    %839 = vmatpush.msra.mxu0 %v531
    %840 = vmatpush.msra.mxu0 %v527
    %841 = vmatpush.msra.mxu0 %v523
    %842 = vmatpush.msra.mxu0 %v519
    %843 = vmatpush.msra.mxu0 %v515
    %844 = vmatpush.msra.mxu0 %v511
    %845 = vmatpush.msra.mxu0 %v507
    %846 = vmatpush.msra.mxu0 %v503
    %847 = vmatpush.msra.mxu0 %v499
    %848 = vmatpush.msra.mxu0 %v495
    %849 = vmatpush.msra.mxu0 %v491
    %850 = vmatpush.msra.mxu0 %v487
    %851 = vmatpush.msra.mxu0 %v483
    %852 = vmatpush.msra.mxu0 %v479
    %853 = vmatmul.f32.gmra.mxu0 %v410
    %v854 = vpop.f32.mrf.mxu0
    %v855 = vadd.f32 0.0, %v854
    %856 = vdwg.mxu0
    %v861 = vrot.slane %v815, 6
    %v862 = vrot.slane %v835, 4
    %v863 = vrot.slane %v855, 2
    %v864 = vsel %vm557, %v795, %v861
    %v865 = vsel %vm559, %v862, %v863
    %v866 = vsel %vm561, %v864, %v865
    %v868 = vadd.f32 %v776, %v866
    %v869 = vxor.u32 %v868, 2147483648
    %v870 = vmul.f32 %v869, 1.442695
    %v871 = vpow.pop %v870
    %v872 = vadd.f32 %v871, 1.0
    %v873 = vrcp.pop %v872
    %v874 = vmul.f32 %v872, %v873
    %v875 = vsub.f32 1.0, %v874
    %v876 = vmul.f32 %v873, %v875
    %v877 = vadd.f32 %v873, %v876
    %vm878 = vweird.f32 %v872
    %vm879 = vweird.f32 %v873
    %vm880 = vmor %vm878, %vm879
    %v881 = vsel %vm880, %v873, %v877
    %v882 = vand.u32 2147483647, %v872
    %vm883 = vcmp.eq.f32.partialorder %v882, 8.507059e+37
    %v884 = vand.u32 %v872, 2147483648
    %v885 = vor.u32 1.1754944e-38, %v884
    %v886 = vsel %vm883, %v885, %v881
    %v887 = vmul.f32 1.0, %v886
    %v889 = vrot.slane %v868, 2
    %v891 = vxor.u32 %v889, 2147483648
    %v892 = vmul.f32 %v891, 1.442695
    %v893 = vpow.pop %v892
    %v894 = vadd.f32 %v893, 1.0
    %v895 = vrcp.pop %v894
    %v896 = vmul.f32 %v894, %v895
    %v897 = vsub.f32 1.0, %v896
    %v898 = vmul.f32 %v895, %v897
    %v899 = vadd.f32 %v895, %v898
    %vm900 = vweird.f32 %v894
    %vm901 = vweird.f32 %v895
    %vm902 = vmor %vm900, %vm901
    %v903 = vsel %vm902, %v895, %v899
    %v904 = vand.u32 2147483647, %v894
    %vm905 = vcmp.eq.f32.partialorder %v904, 8.507059e+37
    %v906 = vand.u32 %v894, 2147483648
    %v907 = vor.u32 1.1754944e-38, %v906
    %v908 = vsel %vm905, %v907, %v903
    %v909 = vmul.f32 1.0, %v908
    %v910 = vrot.slane %v868, 4
    %v912 = vtanh.pop %v910
    %v913 = vrot.slane %v868, 6
    %v915 = vxor.u32 %v913, 2147483648
    %v916 = vmul.f32 %v915, 1.442695
    %v917 = vpow.pop %v916
    %v918 = vadd.f32 %v917, 1.0
    %v919 = vrcp.pop %v918
    %v920 = vmul.f32 %v918, %v919
    %v921 = vsub.f32 1.0, %v920
    %v922 = vmul.f32 %v919, %v921
    %v923 = vadd.f32 %v919, %v922
    %vm924 = vweird.f32 %v918
    %vm925 = vweird.f32 %v919
    %vm926 = vmor %vm924, %vm925
    %v927 = vsel %vm926, %v919, %v923
    %v928 = vand.u32 2147483647, %v918
    %vm929 = vcmp.eq.f32.partialorder %v928, 8.507059e+37
    %v930 = vand.u32 %v918, 2147483648
    %v931 = vor.u32 1.1754944e-38, %v930
    %v932 = vsel %vm929, %v931, %v927
    %v933 = vmul.f32 1.0, %v932
    %v934 = vmul.f32 %v909, 0.0
    %v935 = vmul.f32 %v887, %v912
    %v936 = vadd.f32 %v934, %v935
    %v937 = vtanh.pop %v936
    %v938 = vmul.f32 %v933, %v937
    %939 = vst [vmem:[#allocation2] sm:$0x3] %v938
    %s940 = scalar_lea.vmem [#allocation3], 8
    %v941 = vld [vmem:[%s940] sm:$0xff]
    %942 = vmatpush.msra.mxu0 %v536
    %943 = vmatpush.msra.mxu0 %v532
    %944 = vmatpush.msra.mxu0 %v528
    %945 = vmatpush.msra.mxu0 %v524
    %946 = vmatpush.msra.mxu0 %v520
    %947 = vmatpush.msra.mxu0 %v516
    %948 = vmatpush.msra.mxu0 %v512
    %949 = vmatpush.msra.mxu0 %v508
    %950 = vmatpush.msra.mxu0 %v504
    %951 = vmatpush.msra.mxu0 %v500
    %952 = vmatpush.msra.mxu0 %v496
    %953 = vmatpush.msra.mxu0 %v492
    %954 = vmatpush.msra.mxu0 %v488
    %955 = vmatpush.msra.mxu0 %v484
    %956 = vmatpush.msra.mxu0 %v480
    %957 = vmatpush.msra.mxu0 %v476
    %958 = vmatmul.f32.gmra.mxu0 %v938
    %v959 = vpop.f32.mrf.mxu0
    %v960 = vadd.f32 0.0, %v959
    %961 = vdwg.mxu0
    %962 = vmatpush.msra.mxu0 %v537
    %963 = vmatpush.msra.mxu0 %v533
    %964 = vmatpush.msra.mxu0 %v529
    %965 = vmatpush.msra.mxu0 %v525
    %966 = vmatpush.msra.mxu0 %v521
    %967 = vmatpush.msra.mxu0 %v517
    %968 = vmatpush.msra.mxu0 %v513
    %969 = vmatpush.msra.mxu0 %v509
    %970 = vmatpush.msra.mxu0 %v505
    %971 = vmatpush.msra.mxu0 %v501
    %972 = vmatpush.msra.mxu0 %v497
    %973 = vmatpush.msra.mxu0 %v493
    %974 = vmatpush.msra.mxu0 %v489
    %975 = vmatpush.msra.mxu0 %v485
    %976 = vmatpush.msra.mxu0 %v481
    %977 = vmatpush.msra.mxu0 %v477
    %978 = vmatmul.f32.gmra.mxu0 %v938
    %v979 = vpop.f32.mrf.mxu0
    %v980 = vadd.f32 0.0, %v979
    %981 = vdwg.mxu0
    %982 = vmatpush.msra.mxu0 %v538
    %983 = vmatpush.msra.mxu0 %v534
    %984 = vmatpush.msra.mxu0 %v530
    %985 = vmatpush.msra.mxu0 %v526
    %986 = vmatpush.msra.mxu0 %v522
    %987 = vmatpush.msra.mxu0 %v518
    %988 = vmatpush.msra.mxu0 %v514
    %989 = vmatpush.msra.mxu0 %v510
    %990 = vmatpush.msra.mxu0 %v506
    %991 = vmatpush.msra.mxu0 %v502
    %992 = vmatpush.msra.mxu0 %v498
    %993 = vmatpush.msra.mxu0 %v494
    %994 = vmatpush.msra.mxu0 %v490
    %995 = vmatpush.msra.mxu0 %v486
    %996 = vmatpush.msra.mxu0 %v482
    %997 = vmatpush.msra.mxu0 %v478
    %998 = vmatmul.f32.gmra.mxu0 %v938
    %v999 = vpop.f32.mrf.mxu0
    %v1000 = vadd.f32 0.0, %v999
    %1001 = vdwg.mxu0
    %1002 = vmatpush.msra.mxu0 %v539
    %1003 = vmatpush.msra.mxu0 %v535
    %1004 = vmatpush.msra.mxu0 %v531
    %1005 = vmatpush.msra.mxu0 %v527
    %1006 = vmatpush.msra.mxu0 %v523
    %1007 = vmatpush.msra.mxu0 %v519
    %1008 = vmatpush.msra.mxu0 %v515
    %1009 = vmatpush.msra.mxu0 %v511
    %1010 = vmatpush.msra.mxu0 %v507
    %1011 = vmatpush.msra.mxu0 %v503
    %1012 = vmatpush.msra.mxu0 %v499
    %1013 = vmatpush.msra.mxu0 %v495
    %1014 = vmatpush.msra.mxu0 %v491
    %1015 = vmatpush.msra.mxu0 %v487
    %1016 = vmatpush.msra.mxu0 %v483
    %1017 = vmatpush.msra.mxu0 %v479
    %1018 = vmatmul.f32.gmra.mxu0 %v938
    %v1019 = vpop.f32.mrf.mxu0
    %v1020 = vadd.f32 0.0, %v1019
    %1021 = vdwg.mxu0
    %v1026 = vrot.slane %v980, 6
    %v1027 = vrot.slane %v1000, 4
    %v1028 = vrot.slane %v1020, 2
    %v1029 = vsel %vm557, %v960, %v1026
    %v1030 = vsel %vm559, %v1027, %v1028
    %v1031 = vsel %vm561, %v1029, %v1030
    %v1033 = vadd.f32 %v941, %v1031
    %v1034 = vxor.u32 %v1033, 2147483648
    %v1035 = vmul.f32 %v1034, 1.442695
    %v1036 = vpow.pop %v1035
    %v1037 = vadd.f32 %v1036, 1.0
    %v1038 = vrcp.pop %v1037
    %v1039 = vmul.f32 %v1037, %v1038
    %v1040 = vsub.f32 1.0, %v1039
    %v1041 = vmul.f32 %v1038, %v1040
    %v1042 = vadd.f32 %v1038, %v1041
    %vm1043 = vweird.f32 %v1037
    %vm1044 = vweird.f32 %v1038
    %vm1045 = vmor %vm1043, %vm1044
    %v1046 = vsel %vm1045, %v1038, %v1042
    %v1047 = vand.u32 2147483647, %v1037
    %vm1048 = vcmp.eq.f32.partialorder %v1047, 8.507059e+37
    %v1049 = vand.u32 %v1037, 2147483648
    %v1050 = vor.u32 1.1754944e-38, %v1049
    %v1051 = vsel %vm1048, %v1050, %v1046
    %v1052 = vmul.f32 1.0, %v1051
    %v1054 = vrot.slane %v1033, 2
    %v1056 = vxor.u32 %v1054, 2147483648
    %v1057 = vmul.f32 %v1056, 1.442695
    %v1058 = vpow.pop %v1057
    %v1059 = vadd.f32 %v1058, 1.0
    %v1060 = vrcp.pop %v1059
    %v1061 = vmul.f32 %v1059, %v1060
    %v1062 = vsub.f32 1.0, %v1061
    %v1063 = vmul.f32 %v1060, %v1062
    %v1064 = vadd.f32 %v1060, %v1063
    %vm1065 = vweird.f32 %v1059
    %vm1066 = vweird.f32 %v1060
    %vm1067 = vmor %vm1065, %vm1066
    %v1068 = vsel %vm1067, %v1060, %v1064
    %v1069 = vand.u32 2147483647, %v1059
    %vm1070 = vcmp.eq.f32.partialorder %v1069, 8.507059e+37
    %v1071 = vand.u32 %v1059, 2147483648
    %v1072 = vor.u32 1.1754944e-38, %v1071
    %v1073 = vsel %vm1070, %v1072, %v1068
    %v1074 = vmul.f32 1.0, %v1073
    %v1075 = vrot.slane %v1033, 4
    %v1077 = vtanh.pop %v1075
    %v1078 = vrot.slane %v1033, 6
    %v1080 = vxor.u32 %v1078, 2147483648
    %v1081 = vmul.f32 %v1080, 1.442695
    %v1082 = vpow.pop %v1081
    %v1083 = vadd.f32 %v1082, 1.0
    %v1084 = vrcp.pop %v1083
    %v1085 = vmul.f32 %v1083, %v1084
    %v1086 = vsub.f32 1.0, %v1085
    %v1087 = vmul.f32 %v1084, %v1086
    %v1088 = vadd.f32 %v1084, %v1087
    %vm1089 = vweird.f32 %v1083
    %vm1090 = vweird.f32 %v1084
    %vm1091 = vmor %vm1089, %vm1090
    %v1092 = vsel %vm1091, %v1084, %v1088
    %v1093 = vand.u32 2147483647, %v1083
    %vm1094 = vcmp.eq.f32.partialorder %v1093, 8.507059e+37
    %v1095 = vand.u32 %v1083, 2147483648
    %v1096 = vor.u32 1.1754944e-38, %v1095
    %v1097 = vsel %vm1094, %v1096, %v1092
    %v1098 = vmul.f32 1.0, %v1097
    %v1099 = vmul.f32 %v1074, %v936
    %v1100 = vmul.f32 %v1052, %v1077
    %v1101 = vadd.f32 %v1099, %v1100
    %v1102 = vtanh.pop %v1101
    %v1103 = vmul.f32 %v1098, %v1102
    %s1104 = scalar_lea.vmem [#allocation2], 2
    %1105 = vst [vmem:[%s1104] sm:$0x3] %v1103
    %s1106 = scalar_lea.vmem [#allocation3], 16
    %v1107 = vld [vmem:[%s1106] sm:$0xff]
    %1108 = vmatpush.msra.mxu0 %v536
    %1109 = vmatpush.msra.mxu0 %v532
    %1110 = vmatpush.msra.mxu0 %v528
    %1111 = vmatpush.msra.mxu0 %v524
    %1112 = vmatpush.msra.mxu0 %v520
    %1113 = vmatpush.msra.mxu0 %v516
    %1114 = vmatpush.msra.mxu0 %v512
    %1115 = vmatpush.msra.mxu0 %v508
    %1116 = vmatpush.msra.mxu0 %v504
    %1117 = vmatpush.msra.mxu0 %v500
    %1118 = vmatpush.msra.mxu0 %v496
    %1119 = vmatpush.msra.mxu0 %v492
    %1120 = vmatpush.msra.mxu0 %v488
    %1121 = vmatpush.msra.mxu0 %v484
    %1122 = vmatpush.msra.mxu0 %v480
    %1123 = vmatpush.msra.mxu0 %v476
    %1124 = vmatmul.f32.gmra.mxu0 %v1103
    %v1125 = vpop.f32.mrf.mxu0
    %v1126 = vadd.f32 0.0, %v1125
    %1127 = vdwg.mxu0
    %1128 = vmatpush.msra.mxu0 %v537
    %1129 = vmatpush.msra.mxu0 %v533
    %1130 = vmatpush.msra.mxu0 %v529
    %1131 = vmatpush.msra.mxu0 %v525
    %1132 = vmatpush.msra.mxu0 %v521
    %1133 = vmatpush.msra.mxu0 %v517
    %1134 = vmatpush.msra.mxu0 %v513
    %1135 = vmatpush.msra.mxu0 %v509
    %1136 = vmatpush.msra.mxu0 %v505
    %1137 = vmatpush.msra.mxu0 %v501
    %1138 = vmatpush.msra.mxu0 %v497
    %1139 = vmatpush.msra.mxu0 %v493
    %1140 = vmatpush.msra.mxu0 %v489
    %1141 = vmatpush.msra.mxu0 %v485
    %1142 = vmatpush.msra.mxu0 %v481
    %1143 = vmatpush.msra.mxu0 %v477
    %1144 = vmatmul.f32.gmra.mxu0 %v1103
    %v1145 = vpop.f32.mrf.mxu0
    %v1146 = vadd.f32 0.0, %v1145
    %1147 = vdwg.mxu0
    %1148 = vmatpush.msra.mxu0 %v538
    %1149 = vmatpush.msra.mxu0 %v534
    %1150 = vmatpush.msra.mxu0 %v530
    %1151 = vmatpush.msra.mxu0 %v526
    %1152 = vmatpush.msra.mxu0 %v522
    %1153 = vmatpush.msra.mxu0 %v518
    %1154 = vmatpush.msra.mxu0 %v514
    %1155 = vmatpush.msra.mxu0 %v510
    %1156 = vmatpush.msra.mxu0 %v506
    %1157 = vmatpush.msra.mxu0 %v502
    %1158 = vmatpush.msra.mxu0 %v498
    %1159 = vmatpush.msra.mxu0 %v494
    %1160 = vmatpush.msra.mxu0 %v490
    %1161 = vmatpush.msra.mxu0 %v486
    %1162 = vmatpush.msra.mxu0 %v482
    %1163 = vmatpush.msra.mxu0 %v478
    %1164 = vmatmul.f32.gmra.mxu0 %v1103
    %v1165 = vpop.f32.mrf.mxu0
    %v1166 = vadd.f32 0.0, %v1165
    %1167 = vdwg.mxu0
    %1168 = vmatpush.msra.mxu0 %v539
    %1169 = vmatpush.msra.mxu0 %v535
    %1170 = vmatpush.msra.mxu0 %v531
    %1171 = vmatpush.msra.mxu0 %v527
    %1172 = vmatpush.msra.mxu0 %v523
    %1173 = vmatpush.msra.mxu0 %v519
    %1174 = vmatpush.msra.mxu0 %v515
    %1175 = vmatpush.msra.mxu0 %v511
    %1176 = vmatpush.msra.mxu0 %v507
    %1177 = vmatpush.msra.mxu0 %v503
    %1178 = vmatpush.msra.mxu0 %v499
    %1179 = vmatpush.msra.mxu0 %v495
    %1180 = vmatpush.msra.mxu0 %v491
    %1181 = vmatpush.msra.mxu0 %v487
    %1182 = vmatpush.msra.mxu0 %v483
    %1183 = vmatpush.msra.mxu0 %v479
    %1184 = vmatmul.f32.gmra.mxu0 %v1103
    %v1185 = vpop.f32.mrf.mxu0
    %v1186 = vadd.f32 0.0, %v1185
    %1187 = vdwg.mxu0
    %v1192 = vrot.slane %v1146, 6
    %v1193 = vrot.slane %v1166, 4
    %v1194 = vrot.slane %v1186, 2
    %v1195 = vsel %vm557, %v1126, %v1192
    %v1196 = vsel %vm559, %v1193, %v1194
    %v1197 = vsel %vm561, %v1195, %v1196
    %v1199 = vadd.f32 %v1107, %v1197
    %v1200 = vxor.u32 %v1199, 2147483648
    %v1201 = vmul.f32 %v1200, 1.442695
    %v1202 = vpow.pop %v1201
    %v1203 = vadd.f32 %v1202, 1.0
    %v1204 = vrcp.pop %v1203
    %v1205 = vmul.f32 %v1203, %v1204
    %v1206 = vsub.f32 1.0, %v1205
    %v1207 = vmul.f32 %v1204, %v1206
    %v1208 = vadd.f32 %v1204, %v1207
    %vm1209 = vweird.f32 %v1203
    %vm1210 = vweird.f32 %v1204
    %vm1211 = vmor %vm1209, %vm1210
    %v1212 = vsel %vm1211, %v1204, %v1208
    %v1213 = vand.u32 2147483647, %v1203
    %vm1214 = vcmp.eq.f32.partialorder %v1213, 8.507059e+37
    %v1215 = vand.u32 %v1203, 2147483648
    %v1216 = vor.u32 1.1754944e-38, %v1215
    %v1217 = vsel %vm1214, %v1216, %v1212
    %v1218 = vmul.f32 1.0, %v1217
    %v1220 = vrot.slane %v1199, 2
    %v1222 = vxor.u32 %v1220, 2147483648
    %v1223 = vmul.f32 %v1222, 1.442695
    %v1224 = vpow.pop %v1223
    %v1225 = vadd.f32 %v1224, 1.0
    %v1226 = vrcp.pop %v1225
    %v1227 = vmul.f32 %v1225, %v1226
    %v1228 = vsub.f32 1.0, %v1227
    %v1229 = vmul.f32 %v1226, %v1228
    %v1230 = vadd.f32 %v1226, %v1229
    %vm1231 = vweird.f32 %v1225
    %vm1232 = vweird.f32 %v1226
    %vm1233 = vmor %vm1231, %vm1232
    %v1234 = vsel %vm1233, %v1226, %v1230
    %v1235 = vand.u32 2147483647, %v1225
    %vm1236 = vcmp.eq.f32.partialorder %v1235, 8.507059e+37
    %v1237 = vand.u32 %v1225, 2147483648
    %v1238 = vor.u32 1.1754944e-38, %v1237
    %v1239 = vsel %vm1236, %v1238, %v1234
    %v1240 = vmul.f32 1.0, %v1239
    %v1241 = vrot.slane %v1199, 4
    %v1243 = vtanh.pop %v1241
    %v1244 = vrot.slane %v1199, 6
    %v1246 = vxor.u32 %v1244, 2147483648
    %v1247 = vmul.f32 %v1246, 1.442695
    %v1248 = vpow.pop %v1247
    %v1249 = vadd.f32 %v1248, 1.0
    %v1250 = vrcp.pop %v1249
    %v1251 = vmul.f32 %v1249, %v1250
    %v1252 = vsub.f32 1.0, %v1251
    %v1253 = vmul.f32 %v1250, %v1252
    %v1254 = vadd.f32 %v1250, %v1253
    %vm1255 = vweird.f32 %v1249
    %vm1256 = vweird.f32 %v1250
    %vm1257 = vmor %vm1255, %vm1256
    %v1258 = vsel %vm1257, %v1250, %v1254
    %v1259 = vand.u32 2147483647, %v1249
    %vm1260 = vcmp.eq.f32.partialorder %v1259, 8.507059e+37
    %v1261 = vand.u32 %v1249, 2147483648
    %v1262 = vor.u32 1.1754944e-38, %v1261
    %v1263 = vsel %vm1260, %v1262, %v1258
    %v1264 = vmul.f32 1.0, %v1263
    %v1265 = vmul.f32 %v1240, %v1101
    %v1266 = vmul.f32 %v1218, %v1243
    %v1267 = vadd.f32 %v1265, %v1266
    %v1268 = vtanh.pop %v1267
    %v1269 = vmul.f32 %v1264, %v1268
    %s1270 = scalar_lea.vmem [#allocation2], 4
    %1271 = vst [vmem:[%s1270] sm:$0x3] %v1269
    %s1272 = scalar_lea.vmem [#allocation3], 24
    %v1273 = vld [vmem:[%s1272] sm:$0xff]
    %1274 = vmatpush.msra.mxu0 %v536
    %1275 = vmatpush.msra.mxu0 %v532
    %1276 = vmatpush.msra.mxu0 %v528
    %1277 = vmatpush.msra.mxu0 %v524
    %1278 = vmatpush.msra.mxu0 %v520
    %1279 = vmatpush.msra.mxu0 %v516
    %1280 = vmatpush.msra.mxu0 %v512
    %1281 = vmatpush.msra.mxu0 %v508
    %1282 = vmatpush.msra.mxu0 %v504
    %1283 = vmatpush.msra.mxu0 %v500
    %1284 = vmatpush.msra.mxu0 %v496
    %1285 = vmatpush.msra.mxu0 %v492
    %1286 = vmatpush.msra.mxu0 %v488
    %1287 = vmatpush.msra.mxu0 %v484
    %1288 = vmatpush.msra.mxu0 %v480
    %1289 = vmatpush.msra.mxu0 %v476
    %1290 = vmatmul.f32.gmra.mxu0 %v1269
    %v1291 = vpop.f32.mrf.mxu0
    %v1292 = vadd.f32 0.0, %v1291
    %1293 = vdwg.mxu0
    %1294 = vmatpush.msra.mxu0 %v537
    %1295 = vmatpush.msra.mxu0 %v533
    %1296 = vmatpush.msra.mxu0 %v529
    %1297 = vmatpush.msra.mxu0 %v525
    %1298 = vmatpush.msra.mxu0 %v521
    %1299 = vmatpush.msra.mxu0 %v517
    %1300 = vmatpush.msra.mxu0 %v513
    %1301 = vmatpush.msra.mxu0 %v509
    %1302 = vmatpush.msra.mxu0 %v505
    %1303 = vmatpush.msra.mxu0 %v501
    %1304 = vmatpush.msra.mxu0 %v497
    %1305 = vmatpush.msra.mxu0 %v493
    %1306 = vmatpush.msra.mxu0 %v489
    %1307 = vmatpush.msra.mxu0 %v485
    %1308 = vmatpush.msra.mxu0 %v481
    %1309 = vmatpush.msra.mxu0 %v477
    %1310 = vmatmul.f32.gmra.mxu0 %v1269
    %v1311 = vpop.f32.mrf.mxu0
    %v1312 = vadd.f32 0.0, %v1311
    %1313 = vdwg.mxu0
    %1314 = vmatpush.msra.mxu0 %v538
    %1315 = vmatpush.msra.mxu0 %v534
    %1316 = vmatpush.msra.mxu0 %v530
    %1317 = vmatpush.msra.mxu0 %v526
    %1318 = vmatpush.msra.mxu0 %v522
    %1319 = vmatpush.msra.mxu0 %v518
    %1320 = vmatpush.msra.mxu0 %v514
    %1321 = vmatpush.msra.mxu0 %v510
    %1322 = vmatpush.msra.mxu0 %v506
    %1323 = vmatpush.msra.mxu0 %v502
    %1324 = vmatpush.msra.mxu0 %v498
    %1325 = vmatpush.msra.mxu0 %v494
    %1326 = vmatpush.msra.mxu0 %v490
    %1327 = vmatpush.msra.mxu0 %v486
    %1328 = vmatpush.msra.mxu0 %v482
    %1329 = vmatpush.msra.mxu0 %v478
    %1330 = vmatmul.f32.gmra.mxu0 %v1269
    %v1331 = vpop.f32.mrf.mxu0
    %v1332 = vadd.f32 0.0, %v1331
    %1333 = vdwg.mxu0
    %1334 = vmatpush.msra.mxu0 %v539
    %1335 = vmatpush.msra.mxu0 %v535
    %1336 = vmatpush.msra.mxu0 %v531
    %1337 = vmatpush.msra.mxu0 %v527
    %1338 = vmatpush.msra.mxu0 %v523
    %1339 = vmatpush.msra.mxu0 %v519
    %1340 = vmatpush.msra.mxu0 %v515
    %1341 = vmatpush.msra.mxu0 %v511
    %1342 = vmatpush.msra.mxu0 %v507
    %1343 = vmatpush.msra.mxu0 %v503
    %1344 = vmatpush.msra.mxu0 %v499
    %1345 = vmatpush.msra.mxu0 %v495
    %1346 = vmatpush.msra.mxu0 %v491
    %1347 = vmatpush.msra.mxu0 %v487
    %1348 = vmatpush.msra.mxu0 %v483
    %1349 = vmatpush.msra.mxu0 %v479
    %1350 = vmatmul.f32.gmra.mxu0 %v1269
    %v1351 = vpop.f32.mrf.mxu0
    %v1352 = vadd.f32 0.0, %v1351
    %1353 = vdwg.mxu0
    %v1358 = vrot.slane %v1312, 6
    %v1359 = vrot.slane %v1332, 4
    %v1360 = vrot.slane %v1352, 2
    %v1361 = vsel %vm557, %v1292, %v1358
    %v1362 = vsel %vm559, %v1359, %v1360
    %v1363 = vsel %vm561, %v1361, %v1362
    %v1365 = vadd.f32 %v1273, %v1363
    %v1366 = vxor.u32 %v1365, 2147483648
    %v1367 = vmul.f32 %v1366, 1.442695
    %v1368 = vpow.pop %v1367
    %v1369 = vadd.f32 %v1368, 1.0
    %v1370 = vrcp.pop %v1369
    %v1371 = vmul.f32 %v1369, %v1370
    %v1372 = vsub.f32 1.0, %v1371
    %v1373 = vmul.f32 %v1370, %v1372
    %v1374 = vadd.f32 %v1370, %v1373
    %vm1375 = vweird.f32 %v1369
    %vm1376 = vweird.f32 %v1370
    %vm1377 = vmor %vm1375, %vm1376
    %v1378 = vsel %vm1377, %v1370, %v1374
    %v1379 = vand.u32 2147483647, %v1369
    %vm1380 = vcmp.eq.f32.partialorder %v1379, 8.507059e+37
    %v1381 = vand.u32 %v1369, 2147483648
    %v1382 = vor.u32 1.1754944e-38, %v1381
    %v1383 = vsel %vm1380, %v1382, %v1378
    %v1384 = vmul.f32 1.0, %v1383
    %v1386 = vrot.slane %v1365, 2
    %v1388 = vxor.u32 %v1386, 2147483648
    %v1389 = vmul.f32 %v1388, 1.442695
    %v1390 = vpow.pop %v1389
    %v1391 = vadd.f32 %v1390, 1.0
    %v1392 = vrcp.pop %v1391
    %v1393 = vmul.f32 %v1391, %v1392
    %v1394 = vsub.f32 1.0, %v1393
    %v1395 = vmul.f32 %v1392, %v1394
    %v1396 = vadd.f32 %v1392, %v1395
    %vm1397 = vweird.f32 %v1391
    %vm1398 = vweird.f32 %v1392
    %vm1399 = vmor %vm1397, %vm1398
    %v1400 = vsel %vm1399, %v1392, %v1396
    %v1401 = vand.u32 2147483647, %v1391
    %vm1402 = vcmp.eq.f32.partialorder %v1401, 8.507059e+37
    %v1403 = vand.u32 %v1391, 2147483648
    %v1404 = vor.u32 1.1754944e-38, %v1403
    %v1405 = vsel %vm1402, %v1404, %v1400
    %v1406 = vmul.f32 1.0, %v1405
    %v1407 = vrot.slane %v1365, 4
    %v1409 = vtanh.pop %v1407
    %v1410 = vrot.slane %v1365, 6
    %v1412 = vxor.u32 %v1410, 2147483648
    %v1413 = vmul.f32 %v1412, 1.442695
    %v1414 = vpow.pop %v1413
    %v1415 = vadd.f32 %v1414, 1.0
    %v1416 = vrcp.pop %v1415
    %v1417 = vmul.f32 %v1415, %v1416
    %v1418 = vsub.f32 1.0, %v1417
    %v1419 = vmul.f32 %v1416, %v1418
    %v1420 = vadd.f32 %v1416, %v1419
    %vm1421 = vweird.f32 %v1415
    %vm1422 = vweird.f32 %v1416
    %vm1423 = vmor %vm1421, %vm1422
    %v1424 = vsel %vm1423, %v1416, %v1420
    %v1425 = vand.u32 2147483647, %v1415
    %vm1426 = vcmp.eq.f32.partialorder %v1425, 8.507059e+37
    %v1427 = vand.u32 %v1415, 2147483648
    %v1428 = vor.u32 1.1754944e-38, %v1427
    %v1429 = vsel %vm1426, %v1428, %v1424
    %v1430 = vmul.f32 1.0, %v1429
    %v1431 = vmul.f32 %v1406, %v1267
    %v1432 = vmul.f32 %v1384, %v1409
    %v1433 = vadd.f32 %v1431, %v1432
    %v1434 = vtanh.pop %v1433
    %v1435 = vmul.f32 %v1430, %v1434
    %s1436 = scalar_lea.vmem [#allocation2], 6
    %1437 = vst [vmem:[%s1436] sm:$0x3] %v1435
    %s1438 = scalar_lea.vmem [#allocation3], 32
    %v1439 = vld [vmem:[%s1438] sm:$0xff]
    %1440 = vmatpush.msra.mxu0 %v536
    %1441 = vmatpush.msra.mxu0 %v532
    %1442 = vmatpush.msra.mxu0 %v528
    %1443 = vmatpush.msra.mxu0 %v524
    %1444 = vmatpush.msra.mxu0 %v520
    %1445 = vmatpush.msra.mxu0 %v516
    %1446 = vmatpush.msra.mxu0 %v512
    %1447 = vmatpush.msra.mxu0 %v508
    %1448 = vmatpush.msra.mxu0 %v504
    %1449 = vmatpush.msra.mxu0 %v500
    %1450 = vmatpush.msra.mxu0 %v496
    %1451 = vmatpush.msra.mxu0 %v492
    %1452 = vmatpush.msra.mxu0 %v488
    %1453 = vmatpush.msra.mxu0 %v484
    %1454 = vmatpush.msra.mxu0 %v480
    %1455 = vmatpush.msra.mxu0 %v476
    %1456 = vmatmul.f32.gmra.mxu0 %v1435
    %v1457 = vpop.f32.mrf.mxu0
    %v1458 = vadd.f32 0.0, %v1457
    %1459 = vdwg.mxu0
    %1460 = vmatpush.msra.mxu0 %v537
    %1461 = vmatpush.msra.mxu0 %v533
    %1462 = vmatpush.msra.mxu0 %v529
    %1463 = vmatpush.msra.mxu0 %v525
    %1464 = vmatpush.msra.mxu0 %v521
    %1465 = vmatpush.msra.mxu0 %v517
    %1466 = vmatpush.msra.mxu0 %v513
    %1467 = vmatpush.msra.mxu0 %v509
    %1468 = vmatpush.msra.mxu0 %v505
    %1469 = vmatpush.msra.mxu0 %v501
    %1470 = vmatpush.msra.mxu0 %v497
    %1471 = vmatpush.msra.mxu0 %v493
    %1472 = vmatpush.msra.mxu0 %v489
    %1473 = vmatpush.msra.mxu0 %v485
    %1474 = vmatpush.msra.mxu0 %v481
    %1475 = vmatpush.msra.mxu0 %v477
    %1476 = vmatmul.f32.gmra.mxu0 %v1435
    %v1477 = vpop.f32.mrf.mxu0
    %v1478 = vadd.f32 0.0, %v1477
    %1479 = vdwg.mxu0
    %1480 = vmatpush.msra.mxu0 %v538
    %1481 = vmatpush.msra.mxu0 %v534
    %1482 = vmatpush.msra.mxu0 %v530
    %1483 = vmatpush.msra.mxu0 %v526
    %1484 = vmatpush.msra.mxu0 %v522
    %1485 = vmatpush.msra.mxu0 %v518
    %1486 = vmatpush.msra.mxu0 %v514
    %1487 = vmatpush.msra.mxu0 %v510
    %1488 = vmatpush.msra.mxu0 %v506
    %1489 = vmatpush.msra.mxu0 %v502
    %1490 = vmatpush.msra.mxu0 %v498
    %1491 = vmatpush.msra.mxu0 %v494
    %1492 = vmatpush.msra.mxu0 %v490
    %1493 = vmatpush.msra.mxu0 %v486
    %1494 = vmatpush.msra.mxu0 %v482
    %1495 = vmatpush.msra.mxu0 %v478
    %1496 = vmatmul.f32.gmra.mxu0 %v1435
    %v1497 = vpop.f32.mrf.mxu0
    %v1498 = vadd.f32 0.0, %v1497
    %1499 = vdwg.mxu0
    %1500 = vmatpush.msra.mxu0 %v539
    %1501 = vmatpush.msra.mxu0 %v535
    %1502 = vmatpush.msra.mxu0 %v531
    %1503 = vmatpush.msra.mxu0 %v527
    %1504 = vmatpush.msra.mxu0 %v523
    %1505 = vmatpush.msra.mxu0 %v519
    %1506 = vmatpush.msra.mxu0 %v515
    %1507 = vmatpush.msra.mxu0 %v511
    %1508 = vmatpush.msra.mxu0 %v507
    %1509 = vmatpush.msra.mxu0 %v503
    %1510 = vmatpush.msra.mxu0 %v499
    %1511 = vmatpush.msra.mxu0 %v495
    %1512 = vmatpush.msra.mxu0 %v491
    %1513 = vmatpush.msra.mxu0 %v487
    %1514 = vmatpush.msra.mxu0 %v483
    %1515 = vmatpush.msra.mxu0 %v479
    %1516 = vmatmul.f32.gmra.mxu0 %v1435
    %v1517 = vpop.f32.mrf.mxu0
    %v1518 = vadd.f32 0.0, %v1517
    %1519 = vdwg.mxu0
    %v1524 = vrot.slane %v1478, 6
    %v1525 = vrot.slane %v1498, 4
    %v1526 = vrot.slane %v1518, 2
    %v1527 = vsel %vm557, %v1458, %v1524
    %v1528 = vsel %vm559, %v1525, %v1526
    %v1529 = vsel %vm561, %v1527, %v1528
    %v1531 = vadd.f32 %v1439, %v1529
    %v1532 = vxor.u32 %v1531, 2147483648
    %v1533 = vmul.f32 %v1532, 1.442695
    %v1534 = vpow.pop %v1533
    %v1535 = vadd.f32 %v1534, 1.0
    %v1536 = vrcp.pop %v1535
    %v1537 = vmul.f32 %v1535, %v1536
    %v1538 = vsub.f32 1.0, %v1537
    %v1539 = vmul.f32 %v1536, %v1538
    %v1540 = vadd.f32 %v1536, %v1539
    %vm1541 = vweird.f32 %v1535
    %vm1542 = vweird.f32 %v1536
    %vm1543 = vmor %vm1541, %vm1542
    %v1544 = vsel %vm1543, %v1536, %v1540
    %v1545 = vand.u32 2147483647, %v1535
    %vm1546 = vcmp.eq.f32.partialorder %v1545, 8.507059e+37
    %v1547 = vand.u32 %v1535, 2147483648
    %v1548 = vor.u32 1.1754944e-38, %v1547
    %v1549 = vsel %vm1546, %v1548, %v1544
    %v1550 = vmul.f32 1.0, %v1549
    %v1552 = vrot.slane %v1531, 2
    %v1554 = vxor.u32 %v1552, 2147483648
    %v1555 = vmul.f32 %v1554, 1.442695
    %v1556 = vpow.pop %v1555
    %v1557 = vadd.f32 %v1556, 1.0
    %v1558 = vrcp.pop %v1557
    %v1559 = vmul.f32 %v1557, %v1558
    %v1560 = vsub.f32 1.0, %v1559
    %v1561 = vmul.f32 %v1558, %v1560
    %v1562 = vadd.f32 %v1558, %v1561
    %vm1563 = vweird.f32 %v1557
    %vm1564 = vweird.f32 %v1558
    %vm1565 = vmor %vm1563, %vm1564
    %v1566 = vsel %vm1565, %v1558, %v1562
    %v1567 = vand.u32 2147483647, %v1557
    %vm1568 = vcmp.eq.f32.partialorder %v1567, 8.507059e+37
    %v1569 = vand.u32 %v1557, 2147483648
    %v1570 = vor.u32 1.1754944e-38, %v1569
    %v1571 = vsel %vm1568, %v1570, %v1566
    %v1572 = vmul.f32 1.0, %v1571
    %v1573 = vrot.slane %v1531, 4
    %v1575 = vtanh.pop %v1573
    %v1576 = vrot.slane %v1531, 6
    %v1578 = vxor.u32 %v1576, 2147483648
    %v1579 = vmul.f32 %v1578, 1.442695
    %v1580 = vpow.pop %v1579
    %v1581 = vadd.f32 %v1580, 1.0
    %v1582 = vrcp.pop %v1581
    %v1583 = vmul.f32 %v1581, %v1582
    %v1584 = vsub.f32 1.0, %v1583
    %v1585 = vmul.f32 %v1582, %v1584
    %v1586 = vadd.f32 %v1582, %v1585
    %vm1587 = vweird.f32 %v1581
    %vm1588 = vweird.f32 %v1582
    %vm1589 = vmor %vm1587, %vm1588
    %v1590 = vsel %vm1589, %v1582, %v1586
    %v1591 = vand.u32 2147483647, %v1581
    %vm1592 = vcmp.eq.f32.partialorder %v1591, 8.507059e+37
    %v1593 = vand.u32 %v1581, 2147483648
    %v1594 = vor.u32 1.1754944e-38, %v1593
    %v1595 = vsel %vm1592, %v1594, %v1590
    %v1596 = vmul.f32 1.0, %v1595
    %v1597 = vmul.f32 %v1572, %v1433
    %v1598 = vmul.f32 %v1550, %v1575
    %v1599 = vadd.f32 %v1597, %v1598
    %v1600 = vtanh.pop %v1599
    %v1601 = vmul.f32 %v1596, %v1600
    %s1602 = scalar_lea.vmem [#allocation2], 8
    %1603 = vst [vmem:[%s1602] sm:$0x3] %v1601
    %s1604 = scalar_lea.vmem [#allocation3], 40
    %v1605 = vld [vmem:[%s1604] sm:$0xff]
    %1606 = vmatpush.msra.mxu0 %v536
    %1607 = vmatpush.msra.mxu0 %v532
    %1608 = vmatpush.msra.mxu0 %v528
    %1609 = vmatpush.msra.mxu0 %v524
    %1610 = vmatpush.msra.mxu0 %v520
    %1611 = vmatpush.msra.mxu0 %v516
    %1612 = vmatpush.msra.mxu0 %v512
    %1613 = vmatpush.msra.mxu0 %v508
    %1614 = vmatpush.msra.mxu0 %v504
    %1615 = vmatpush.msra.mxu0 %v500
    %1616 = vmatpush.msra.mxu0 %v496
    %1617 = vmatpush.msra.mxu0 %v492
    %1618 = vmatpush.msra.mxu0 %v488
    %1619 = vmatpush.msra.mxu0 %v484
    %1620 = vmatpush.msra.mxu0 %v480
    %1621 = vmatpush.msra.mxu0 %v476
    %1622 = vmatmul.f32.gmra.mxu0 %v1601
    %v1623 = vpop.f32.mrf.mxu0
    %v1624 = vadd.f32 0.0, %v1623
    %1625 = vdwg.mxu0
    %1626 = vmatpush.msra.mxu0 %v537
    %1627 = vmatpush.msra.mxu0 %v533
    %1628 = vmatpush.msra.mxu0 %v529
    %1629 = vmatpush.msra.mxu0 %v525
    %1630 = vmatpush.msra.mxu0 %v521
    %1631 = vmatpush.msra.mxu0 %v517
    %1632 = vmatpush.msra.mxu0 %v513
    %1633 = vmatpush.msra.mxu0 %v509
    %1634 = vmatpush.msra.mxu0 %v505
    %1635 = vmatpush.msra.mxu0 %v501
    %1636 = vmatpush.msra.mxu0 %v497
    %1637 = vmatpush.msra.mxu0 %v493
    %1638 = vmatpush.msra.mxu0 %v489
    %1639 = vmatpush.msra.mxu0 %v485
    %1640 = vmatpush.msra.mxu0 %v481
    %1641 = vmatpush.msra.mxu0 %v477
    %1642 = vmatmul.f32.gmra.mxu0 %v1601
    %v1643 = vpop.f32.mrf.mxu0
    %v1644 = vadd.f32 0.0, %v1643
    %1645 = vdwg.mxu0
    %1646 = vmatpush.msra.mxu0 %v538
    %1647 = vmatpush.msra.mxu0 %v534
    %1648 = vmatpush.msra.mxu0 %v530
    %1649 = vmatpush.msra.mxu0 %v526
    %1650 = vmatpush.msra.mxu0 %v522
    %1651 = vmatpush.msra.mxu0 %v518
    %1652 = vmatpush.msra.mxu0 %v514
    %1653 = vmatpush.msra.mxu0 %v510
    %1654 = vmatpush.msra.mxu0 %v506
    %1655 = vmatpush.msra.mxu0 %v502
    %1656 = vmatpush.msra.mxu0 %v498
    %1657 = vmatpush.msra.mxu0 %v494
    %1658 = vmatpush.msra.mxu0 %v490
    %1659 = vmatpush.msra.mxu0 %v486
    %1660 = vmatpush.msra.mxu0 %v482
    %1661 = vmatpush.msra.mxu0 %v478
    %1662 = vmatmul.f32.gmra.mxu0 %v1601
    %v1663 = vpop.f32.mrf.mxu0
    %v1664 = vadd.f32 0.0, %v1663
    %1665 = vdwg.mxu0
    %1666 = vmatpush.msra.mxu0 %v539
    %1667 = vmatpush.msra.mxu0 %v535
    %1668 = vmatpush.msra.mxu0 %v531
    %1669 = vmatpush.msra.mxu0 %v527
    %1670 = vmatpush.msra.mxu0 %v523
    %1671 = vmatpush.msra.mxu0 %v519
    %1672 = vmatpush.msra.mxu0 %v515
    %1673 = vmatpush.msra.mxu0 %v511
    %1674 = vmatpush.msra.mxu0 %v507
    %1675 = vmatpush.msra.mxu0 %v503
    %1676 = vmatpush.msra.mxu0 %v499
    %1677 = vmatpush.msra.mxu0 %v495
    %1678 = vmatpush.msra.mxu0 %v491
    %1679 = vmatpush.msra.mxu0 %v487
    %1680 = vmatpush.msra.mxu0 %v483
    %1681 = vmatpush.msra.mxu0 %v479
    %1682 = vmatmul.f32.gmra.mxu0 %v1601
    %v1683 = vpop.f32.mrf.mxu0
    %v1684 = vadd.f32 0.0, %v1683
    %1685 = vdwg.mxu0
    %v1690 = vrot.slane %v1644, 6
    %v1691 = vrot.slane %v1664, 4
    %v1692 = vrot.slane %v1684, 2
    %v1693 = vsel %vm557, %v1624, %v1690
    %v1694 = vsel %vm559, %v1691, %v1692
    %v1695 = vsel %vm561, %v1693, %v1694
    %v1697 = vadd.f32 %v1605, %v1695
    %v1698 = vxor.u32 %v1697, 2147483648
    %v1699 = vmul.f32 %v1698, 1.442695
    %v1700 = vpow.pop %v1699
    %v1701 = vadd.f32 %v1700, 1.0
    %v1702 = vrcp.pop %v1701
    %v1703 = vmul.f32 %v1701, %v1702
    %v1704 = vsub.f32 1.0, %v1703
    %v1705 = vmul.f32 %v1702, %v1704
    %v1706 = vadd.f32 %v1702, %v1705
    %vm1707 = vweird.f32 %v1701
    %vm1708 = vweird.f32 %v1702
    %vm1709 = vmor %vm1707, %vm1708
    %v1710 = vsel %vm1709, %v1702, %v1706
    %v1711 = vand.u32 2147483647, %v1701
    %vm1712 = vcmp.eq.f32.partialorder %v1711, 8.507059e+37
    %v1713 = vand.u32 %v1701, 2147483648
    %v1714 = vor.u32 1.1754944e-38, %v1713
    %v1715 = vsel %vm1712, %v1714, %v1710
    %v1716 = vmul.f32 1.0, %v1715
    %v1718 = vrot.slane %v1697, 2
    %v1720 = vxor.u32 %v1718, 2147483648
    %v1721 = vmul.f32 %v1720, 1.442695
    %v1722 = vpow.pop %v1721
    %v1723 = vadd.f32 %v1722, 1.0
    %v1724 = vrcp.pop %v1723
    %v1725 = vmul.f32 %v1723, %v1724
    %v1726 = vsub.f32 1.0, %v1725
    %v1727 = vmul.f32 %v1724, %v1726
    %v1728 = vadd.f32 %v1724, %v1727
    %vm1729 = vweird.f32 %v1723
    %vm1730 = vweird.f32 %v1724
    %vm1731 = vmor %vm1729, %vm1730
    %v1732 = vsel %vm1731, %v1724, %v1728
    %v1733 = vand.u32 2147483647, %v1723
    %vm1734 = vcmp.eq.f32.partialorder %v1733, 8.507059e+37
    %v1735 = vand.u32 %v1723, 2147483648
    %v1736 = vor.u32 1.1754944e-38, %v1735
    %v1737 = vsel %vm1734, %v1736, %v1732
    %v1738 = vmul.f32 1.0, %v1737
    %v1739 = vrot.slane %v1697, 4
    %v1741 = vtanh.pop %v1739
    %v1742 = vrot.slane %v1697, 6
    %v1744 = vxor.u32 %v1742, 2147483648
    %v1745 = vmul.f32 %v1744, 1.442695
    %v1746 = vpow.pop %v1745
    %v1747 = vadd.f32 %v1746, 1.0
    %v1748 = vrcp.pop %v1747
    %v1749 = vmul.f32 %v1747, %v1748
    %v1750 = vsub.f32 1.0, %v1749
    %v1751 = vmul.f32 %v1748, %v1750
    %v1752 = vadd.f32 %v1748, %v1751
    %vm1753 = vweird.f32 %v1747
    %vm1754 = vweird.f32 %v1748
    %vm1755 = vmor %vm1753, %vm1754
    %v1756 = vsel %vm1755, %v1748, %v1752
    %v1757 = vand.u32 2147483647, %v1747
    %vm1758 = vcmp.eq.f32.partialorder %v1757, 8.507059e+37
    %v1759 = vand.u32 %v1747, 2147483648
    %v1760 = vor.u32 1.1754944e-38, %v1759
    %v1761 = vsel %vm1758, %v1760, %v1756
    %v1762 = vmul.f32 1.0, %v1761
    %v1763 = vmul.f32 %v1738, %v1599
    %v1764 = vmul.f32 %v1716, %v1741
    %v1765 = vadd.f32 %v1763, %v1764
    %v1766 = vtanh.pop %v1765
    %v1767 = vmul.f32 %v1762, %v1766
    %s1768 = scalar_lea.vmem [#allocation2], 10
    %1769 = vst [vmem:[%s1768] sm:$0x3] %v1767
    %s1770 = scalar_lea.vmem [#allocation3], 48
    %v1771 = vld [vmem:[%s1770] sm:$0xff]
    %1772 = vmatpush.msra.mxu0 %v536
    %1773 = vmatpush.msra.mxu0 %v532
    %1774 = vmatpush.msra.mxu0 %v528
    %1775 = vmatpush.msra.mxu0 %v524
    %1776 = vmatpush.msra.mxu0 %v520
    %1777 = vmatpush.msra.mxu0 %v516
    %1778 = vmatpush.msra.mxu0 %v512
    %1779 = vmatpush.msra.mxu0 %v508
    %1780 = vmatpush.msra.mxu0 %v504
    %1781 = vmatpush.msra.mxu0 %v500
    %1782 = vmatpush.msra.mxu0 %v496
    %1783 = vmatpush.msra.mxu0 %v492
    %1784 = vmatpush.msra.mxu0 %v488
    %1785 = vmatpush.msra.mxu0 %v484
    %1786 = vmatpush.msra.mxu0 %v480
    %1787 = vmatpush.msra.mxu0 %v476
    %1788 = vmatmul.f32.gmra.mxu0 %v1767
    %v1789 = vpop.f32.mrf.mxu0
    %v1790 = vadd.f32 0.0, %v1789
    %1791 = vdwg.mxu0
    %1792 = vmatpush.msra.mxu0 %v537
    %1793 = vmatpush.msra.mxu0 %v533
    %1794 = vmatpush.msra.mxu0 %v529
    %1795 = vmatpush.msra.mxu0 %v525
    %1796 = vmatpush.msra.mxu0 %v521
    %1797 = vmatpush.msra.mxu0 %v517
    %1798 = vmatpush.msra.mxu0 %v513
    %1799 = vmatpush.msra.mxu0 %v509
    %1800 = vmatpush.msra.mxu0 %v505
    %1801 = vmatpush.msra.mxu0 %v501
    %1802 = vmatpush.msra.mxu0 %v497
    %1803 = vmatpush.msra.mxu0 %v493
    %1804 = vmatpush.msra.mxu0 %v489
    %1805 = vmatpush.msra.mxu0 %v485
    %1806 = vmatpush.msra.mxu0 %v481
    %1807 = vmatpush.msra.mxu0 %v477
    %1808 = vmatmul.f32.gmra.mxu0 %v1767
    %v1809 = vpop.f32.mrf.mxu0
    %v1810 = vadd.f32 0.0, %v1809
    %1811 = vdwg.mxu0
    %1812 = vmatpush.msra.mxu0 %v538
    %1813 = vmatpush.msra.mxu0 %v534
    %1814 = vmatpush.msra.mxu0 %v530
    %1815 = vmatpush.msra.mxu0 %v526
    %1816 = vmatpush.msra.mxu0 %v522
    %1817 = vmatpush.msra.mxu0 %v518
    %1818 = vmatpush.msra.mxu0 %v514
    %1819 = vmatpush.msra.mxu0 %v510
    %1820 = vmatpush.msra.mxu0 %v506
    %1821 = vmatpush.msra.mxu0 %v502
    %1822 = vmatpush.msra.mxu0 %v498
    %1823 = vmatpush.msra.mxu0 %v494
    %1824 = vmatpush.msra.mxu0 %v490
    %1825 = vmatpush.msra.mxu0 %v486
    %1826 = vmatpush.msra.mxu0 %v482
    %1827 = vmatpush.msra.mxu0 %v478
    %1828 = vmatmul.f32.gmra.mxu0 %v1767
    %v1829 = vpop.f32.mrf.mxu0
    %v1830 = vadd.f32 0.0, %v1829
    %1831 = vdwg.mxu0
    %1832 = vmatpush.msra.mxu0 %v539
    %1833 = vmatpush.msra.mxu0 %v535
    %1834 = vmatpush.msra.mxu0 %v531
    %1835 = vmatpush.msra.mxu0 %v527
    %1836 = vmatpush.msra.mxu0 %v523
    %1837 = vmatpush.msra.mxu0 %v519
    %1838 = vmatpush.msra.mxu0 %v515
    %1839 = vmatpush.msra.mxu0 %v511
    %1840 = vmatpush.msra.mxu0 %v507
    %1841 = vmatpush.msra.mxu0 %v503
    %1842 = vmatpush.msra.mxu0 %v499
    %1843 = vmatpush.msra.mxu0 %v495
    %1844 = vmatpush.msra.mxu0 %v491
    %1845 = vmatpush.msra.mxu0 %v487
    %1846 = vmatpush.msra.mxu0 %v483
    %1847 = vmatpush.msra.mxu0 %v479
    %1848 = vmatmul.f32.gmra.mxu0 %v1767
    %v1849 = vpop.f32.mrf.mxu0
    %v1850 = vadd.f32 0.0, %v1849
    %1851 = vdwg.mxu0
    %v1856 = vrot.slane %v1810, 6
    %v1857 = vrot.slane %v1830, 4
    %v1858 = vrot.slane %v1850, 2
    %v1859 = vsel %vm557, %v1790, %v1856
    %v1860 = vsel %vm559, %v1857, %v1858
    %v1861 = vsel %vm561, %v1859, %v1860
    %v1863 = vadd.f32 %v1771, %v1861
    %v1864 = vxor.u32 %v1863, 2147483648
    %v1865 = vmul.f32 %v1864, 1.442695
    %v1866 = vpow.pop %v1865
    %v1867 = vadd.f32 %v1866, 1.0
    %v1868 = vrcp.pop %v1867
    %v1869 = vmul.f32 %v1867, %v1868
    %v1870 = vsub.f32 1.0, %v1869
    %v1871 = vmul.f32 %v1868, %v1870
    %v1872 = vadd.f32 %v1868, %v1871
    %vm1873 = vweird.f32 %v1867
    %vm1874 = vweird.f32 %v1868
    %vm1875 = vmor %vm1873, %vm1874
    %v1876 = vsel %vm1875, %v1868, %v1872
    %v1877 = vand.u32 2147483647, %v1867
    %vm1878 = vcmp.eq.f32.partialorder %v1877, 8.507059e+37
    %v1879 = vand.u32 %v1867, 2147483648
    %v1880 = vor.u32 1.1754944e-38, %v1879
    %v1881 = vsel %vm1878, %v1880, %v1876
    %v1882 = vmul.f32 1.0, %v1881
    %v1884 = vrot.slane %v1863, 2
    %v1886 = vxor.u32 %v1884, 2147483648
    %v1887 = vmul.f32 %v1886, 1.442695
    %v1888 = vpow.pop %v1887
    %v1889 = vadd.f32 %v1888, 1.0
    %v1890 = vrcp.pop %v1889
    %v1891 = vmul.f32 %v1889, %v1890
    %v1892 = vsub.f32 1.0, %v1891
    %v1893 = vmul.f32 %v1890, %v1892
    %v1894 = vadd.f32 %v1890, %v1893
    %vm1895 = vweird.f32 %v1889
    %vm1896 = vweird.f32 %v1890
    %vm1897 = vmor %vm1895, %vm1896
    %v1898 = vsel %vm1897, %v1890, %v1894
    %v1899 = vand.u32 2147483647, %v1889
    %vm1900 = vcmp.eq.f32.partialorder %v1899, 8.507059e+37
    %v1901 = vand.u32 %v1889, 2147483648
    %v1902 = vor.u32 1.1754944e-38, %v1901
    %v1903 = vsel %vm1900, %v1902, %v1898
    %v1904 = vmul.f32 1.0, %v1903
    %v1905 = vrot.slane %v1863, 4
    %v1907 = vtanh.pop %v1905
    %v1908 = vrot.slane %v1863, 6
    %v1910 = vxor.u32 %v1908, 2147483648
    %v1911 = vmul.f32 %v1910, 1.442695
    %v1912 = vpow.pop %v1911
    %v1913 = vadd.f32 %v1912, 1.0
    %v1914 = vrcp.pop %v1913
    %v1915 = vmul.f32 %v1913, %v1914
    %v1916 = vsub.f32 1.0, %v1915
    %v1917 = vmul.f32 %v1914, %v1916
    %v1918 = vadd.f32 %v1914, %v1917
    %vm1919 = vweird.f32 %v1913
    %vm1920 = vweird.f32 %v1914
    %vm1921 = vmor %vm1919, %vm1920
    %v1922 = vsel %vm1921, %v1914, %v1918
    %v1923 = vand.u32 2147483647, %v1913
    %vm1924 = vcmp.eq.f32.partialorder %v1923, 8.507059e+37
    %v1925 = vand.u32 %v1913, 2147483648
    %v1926 = vor.u32 1.1754944e-38, %v1925
    %v1927 = vsel %vm1924, %v1926, %v1922
    %v1928 = vmul.f32 1.0, %v1927
    %v1929 = vmul.f32 %v1904, %v1765
    %v1930 = vmul.f32 %v1882, %v1907
    %v1931 = vadd.f32 %v1929, %v1930
    %v1932 = vtanh.pop %v1931
    %v1933 = vmul.f32 %v1928, %v1932
    %s1934 = scalar_lea.vmem [#allocation2], 12
    %1935 = vst [vmem:[%s1934] sm:$0x3] %v1933
    %s1936 = scalar_lea.vmem [#allocation3], 56
    %v1937 = vld [vmem:[%s1936] sm:$0xff]
    %1938 = vmatpush.msra.mxu0 %v536
    %1939 = vmatpush.msra.mxu0 %v532
    %1940 = vmatpush.msra.mxu0 %v528
    %1941 = vmatpush.msra.mxu0 %v524
    %1942 = vmatpush.msra.mxu0 %v520
    %1943 = vmatpush.msra.mxu0 %v516
    %1944 = vmatpush.msra.mxu0 %v512
    %1945 = vmatpush.msra.mxu0 %v508
    %1946 = vmatpush.msra.mxu0 %v504
    %1947 = vmatpush.msra.mxu0 %v500
    %1948 = vmatpush.msra.mxu0 %v496
    %1949 = vmatpush.msra.mxu0 %v492
    %1950 = vmatpush.msra.mxu0 %v488
    %1951 = vmatpush.msra.mxu0 %v484
    %1952 = vmatpush.msra.mxu0 %v480
    %1953 = vmatpush.msra.mxu0 %v476
    %1954 = vmatmul.f32.gmra.mxu0 %v1933
    %v1955 = vpop.f32.mrf.mxu0
    %v1956 = vadd.f32 0.0, %v1955
    %1957 = vdwg.mxu0
    %1958 = vmatpush.msra.mxu0 %v537
    %1959 = vmatpush.msra.mxu0 %v533
    %1960 = vmatpush.msra.mxu0 %v529
    %1961 = vmatpush.msra.mxu0 %v525
    %1962 = vmatpush.msra.mxu0 %v521
    %1963 = vmatpush.msra.mxu0 %v517
    %1964 = vmatpush.msra.mxu0 %v513
    %1965 = vmatpush.msra.mxu0 %v509
    %1966 = vmatpush.msra.mxu0 %v505
    %1967 = vmatpush.msra.mxu0 %v501
    %1968 = vmatpush.msra.mxu0 %v497
    %1969 = vmatpush.msra.mxu0 %v493
    %1970 = vmatpush.msra.mxu0 %v489
    %1971 = vmatpush.msra.mxu0 %v485
    %1972 = vmatpush.msra.mxu0 %v481
    %1973 = vmatpush.msra.mxu0 %v477
    %1974 = vmatmul.f32.gmra.mxu0 %v1933
    %v1975 = vpop.f32.mrf.mxu0
    %v1976 = vadd.f32 0.0, %v1975
    %1977 = vdwg.mxu0
    %1978 = vmatpush.msra.mxu0 %v538
    %1979 = vmatpush.msra.mxu0 %v534
    %1980 = vmatpush.msra.mxu0 %v530
    %1981 = vmatpush.msra.mxu0 %v526
    %1982 = vmatpush.msra.mxu0 %v522
    %1983 = vmatpush.msra.mxu0 %v518
    %1984 = vmatpush.msra.mxu0 %v514
    %1985 = vmatpush.msra.mxu0 %v510
    %1986 = vmatpush.msra.mxu0 %v506
    %1987 = vmatpush.msra.mxu0 %v502
    %1988 = vmatpush.msra.mxu0 %v498
    %1989 = vmatpush.msra.mxu0 %v494
    %1990 = vmatpush.msra.mxu0 %v490
    %1991 = vmatpush.msra.mxu0 %v486
    %1992 = vmatpush.msra.mxu0 %v482
    %1993 = vmatpush.msra.mxu0 %v478
    %1994 = vmatmul.f32.gmra.mxu0 %v1933
    %v1995 = vpop.f32.mrf.mxu0
    %v1996 = vadd.f32 0.0, %v1995
    %1997 = vdwg.mxu0
    %1998 = vmatpush.msra.mxu0 %v539
    %1999 = vmatpush.msra.mxu0 %v535
    %2000 = vmatpush.msra.mxu0 %v531
    %2001 = vmatpush.msra.mxu0 %v527
    %2002 = vmatpush.msra.mxu0 %v523
    %2003 = vmatpush.msra.mxu0 %v519
    %2004 = vmatpush.msra.mxu0 %v515
    %2005 = vmatpush.msra.mxu0 %v511
    %2006 = vmatpush.msra.mxu0 %v507
    %2007 = vmatpush.msra.mxu0 %v503
    %2008 = vmatpush.msra.mxu0 %v499
    %2009 = vmatpush.msra.mxu0 %v495
    %2010 = vmatpush.msra.mxu0 %v491
    %2011 = vmatpush.msra.mxu0 %v487
    %2012 = vmatpush.msra.mxu0 %v483
    %2013 = vmatpush.msra.mxu0 %v479
    %2014 = vmatmul.f32.gmra.mxu0 %v1933
    %v2015 = vpop.f32.mrf.mxu0
    %v2016 = vadd.f32 0.0, %v2015
    %2017 = vdwg.mxu0
    %v2022 = vrot.slane %v1976, 6
    %v2023 = vrot.slane %v1996, 4
    %v2024 = vrot.slane %v2016, 2
    %v2025 = vsel %vm557, %v1956, %v2022
    %v2026 = vsel %vm559, %v2023, %v2024
    %v2027 = vsel %vm561, %v2025, %v2026
    %v2029 = vadd.f32 %v1937, %v2027
    %v2030 = vxor.u32 %v2029, 2147483648
    %v2031 = vmul.f32 %v2030, 1.442695
    %v2032 = vpow.pop %v2031
    %v2033 = vadd.f32 %v2032, 1.0
    %v2034 = vrcp.pop %v2033
    %v2035 = vmul.f32 %v2033, %v2034
    %v2036 = vsub.f32 1.0, %v2035
    %v2037 = vmul.f32 %v2034, %v2036
    %v2038 = vadd.f32 %v2034, %v2037
    %vm2039 = vweird.f32 %v2033
    %vm2040 = vweird.f32 %v2034
    %vm2041 = vmor %vm2039, %vm2040
    %v2042 = vsel %vm2041, %v2034, %v2038
    %v2043 = vand.u32 2147483647, %v2033
    %vm2044 = vcmp.eq.f32.partialorder %v2043, 8.507059e+37
    %v2045 = vand.u32 %v2033, 2147483648
    %v2046 = vor.u32 1.1754944e-38, %v2045
    %v2047 = vsel %vm2044, %v2046, %v2042
    %v2048 = vmul.f32 1.0, %v2047
    %v2050 = vrot.slane %v2029, 2
    %v2052 = vxor.u32 %v2050, 2147483648
    %v2053 = vmul.f32 %v2052, 1.442695
    %v2054 = vpow.pop %v2053
    %v2055 = vadd.f32 %v2054, 1.0
    %v2056 = vrcp.pop %v2055
    %v2057 = vmul.f32 %v2055, %v2056
    %v2058 = vsub.f32 1.0, %v2057
    %v2059 = vmul.f32 %v2056, %v2058
    %v2060 = vadd.f32 %v2056, %v2059
    %vm2061 = vweird.f32 %v2055
    %vm2062 = vweird.f32 %v2056
    %vm2063 = vmor %vm2061, %vm2062
    %v2064 = vsel %vm2063, %v2056, %v2060
    %v2065 = vand.u32 2147483647, %v2055
    %vm2066 = vcmp.eq.f32.partialorder %v2065, 8.507059e+37
    %v2067 = vand.u32 %v2055, 2147483648
    %v2068 = vor.u32 1.1754944e-38, %v2067
    %v2069 = vsel %vm2066, %v2068, %v2064
    %v2070 = vmul.f32 1.0, %v2069
    %v2071 = vrot.slane %v2029, 4
    %v2073 = vtanh.pop %v2071
    %v2074 = vrot.slane %v2029, 6
    %v2076 = vxor.u32 %v2074, 2147483648
    %v2077 = vmul.f32 %v2076, 1.442695
    %v2078 = vpow.pop %v2077
    %v2079 = vadd.f32 %v2078, 1.0
    %v2080 = vrcp.pop %v2079
    %v2081 = vmul.f32 %v2079, %v2080
    %v2082 = vsub.f32 1.0, %v2081
    %v2083 = vmul.f32 %v2080, %v2082
    %v2084 = vadd.f32 %v2080, %v2083
    %vm2085 = vweird.f32 %v2079
    %vm2086 = vweird.f32 %v2080
    %vm2087 = vmor %vm2085, %vm2086
    %v2088 = vsel %vm2087, %v2080, %v2084
    %v2089 = vand.u32 2147483647, %v2079
    %vm2090 = vcmp.eq.f32.partialorder %v2089, 8.507059e+37
    %v2091 = vand.u32 %v2079, 2147483648
    %v2092 = vor.u32 1.1754944e-38, %v2091
    %v2093 = vsel %vm2090, %v2092, %v2088
    %v2094 = vmul.f32 1.0, %v2093
    %v2095 = vmul.f32 %v2070, %v1931
    %v2096 = vmul.f32 %v2048, %v2073
    %v2097 = vadd.f32 %v2095, %v2096
    %v2098 = vtanh.pop %v2097
    %v2099 = vmul.f32 %v2094, %v2098
    %s2100 = scalar_lea.vmem [#allocation2], 14
    %2101 = vst [vmem:[%s2100] sm:$0x3] %v2099
    %v2102 = vld [vmem:[#allocation21] sm:$0xff]
    %v2103 = vld [vmem:[#allocation21 + $0x8] sm:$0xff]
    %v2104 = vld [vmem:[#allocation21 + $0x10] sm:$0xff]
    %v2105 = vld [vmem:[#allocation21 + $0x18] sm:$0xff]
    %v2106 = vld [vmem:[#allocation21 + $0x20] sm:$0xff]
    %v2107 = vld [vmem:[#allocation21 + $0x28] sm:$0xff]
    %v2108 = vld [vmem:[#allocation21 + $0x30] sm:$0xff]
    %v2109 = vld [vmem:[#allocation21 + $0x38] sm:$0xff]
    %v2110 = vld [vmem:[#allocation21 + $0x40] sm:$0xff]
    %v2111 = vld [vmem:[#allocation21 + $0x48] sm:$0xff]
    %v2112 = vld [vmem:[#allocation21 + $0x50] sm:$0xff]
    %v2113 = vld [vmem:[#allocation21 + $0x58] sm:$0xff]
    %v2114 = vld [vmem:[#allocation21 + $0x60] sm:$0xff]
    %v2115 = vld [vmem:[#allocation21 + $0x68] sm:$0xff]
    %v2116 = vld [vmem:[#allocation21 + $0x70] sm:$0xff]
    %v2117 = vld [vmem:[#allocation21 + $0x78] sm:$0xff]
    %v2118 = vld [vmem:[#allocation21 + $0x80] sm:$0xff]
    %v2119 = vld [vmem:[#allocation21 + $0x88] sm:$0xff]
    %v2120 = vld [vmem:[#allocation21 + $0x90] sm:$0xff]
    %v2121 = vld [vmem:[#allocation21 + $0x98] sm:$0xff]
    %v2122 = vld [vmem:[#allocation21 + $0xa0] sm:$0xff]
    %v2123 = vld [vmem:[#allocation21 + $0xa8] sm:$0xff]
    %v2124 = vld [vmem:[#allocation21 + $0xb0] sm:$0xff]
    %v2125 = vld [vmem:[#allocation21 + $0xb8] sm:$0xff]
    %v2126 = vld [vmem:[#allocation21 + $0xc0] sm:$0xff]
    %v2127 = vld [vmem:[#allocation21 + $0xc8] sm:$0xff]
    %v2128 = vld [vmem:[#allocation21 + $0xd0] sm:$0xff]
    %v2129 = vld [vmem:[#allocation21 + $0xd8] sm:$0xff]
    %v2130 = vld [vmem:[#allocation21 + $0xe0] sm:$0xff]
    %v2131 = vld [vmem:[#allocation21 + $0xe8] sm:$0xff]
    %v2132 = vld [vmem:[#allocation21 + $0xf0] sm:$0xff]
    %v2133 = vld [vmem:[#allocation21 + $0xf8] sm:$0xff]
    %v2134 = vld [vmem:[#allocation21 + $0x100] sm:$0xff]
    %v2135 = vld [vmem:[#allocation21 + $0x108] sm:$0xff]
    %v2136 = vld [vmem:[#allocation21 + $0x110] sm:$0xff]
    %v2137 = vld [vmem:[#allocation21 + $0x118] sm:$0xff]
    %v2138 = vld [vmem:[#allocation21 + $0x120] sm:$0xff]
    %v2139 = vld [vmem:[#allocation21 + $0x128] sm:$0xff]
    %v2140 = vld [vmem:[#allocation21 + $0x130] sm:$0xff]
    %v2141 = vld [vmem:[#allocation21 + $0x138] sm:$0xff]
    %v2142 = vld [vmem:[#allocation21 + $0x140] sm:$0xff]
    %v2143 = vld [vmem:[#allocation21 + $0x148] sm:$0xff]
    %v2144 = vld [vmem:[#allocation21 + $0x150] sm:$0xff]
    %v2145 = vld [vmem:[#allocation21 + $0x158] sm:$0xff]
    %v2146 = vld [vmem:[#allocation21 + $0x160] sm:$0xff]
    %v2147 = vld [vmem:[#allocation21 + $0x168] sm:$0xff]
    %v2148 = vld [vmem:[#allocation21 + $0x170] sm:$0xff]
    %v2149 = vld [vmem:[#allocation21 + $0x178] sm:$0xff]
    %v2150 = vld [vmem:[#allocation21 + $0x180] sm:$0xff]
    %v2151 = vld [vmem:[#allocation21 + $0x188] sm:$0xff]
    %v2152 = vld [vmem:[#allocation21 + $0x190] sm:$0xff]
    %v2153 = vld [vmem:[#allocation21 + $0x198] sm:$0xff]
    %v2154 = vld [vmem:[#allocation21 + $0x1a0] sm:$0xff]
    %v2155 = vld [vmem:[#allocation21 + $0x1a8] sm:$0xff]
    %v2156 = vld [vmem:[#allocation21 + $0x1b0] sm:$0xff]
    %v2157 = vld [vmem:[#allocation21 + $0x1b8] sm:$0xff]
    %v2158 = vld [vmem:[#allocation21 + $0x1c0] sm:$0xff]
    %v2159 = vld [vmem:[#allocation21 + $0x1c8] sm:$0xff]
    %v2160 = vld [vmem:[#allocation21 + $0x1d0] sm:$0xff]
    %v2161 = vld [vmem:[#allocation21 + $0x1d8] sm:$0xff]
    %v2162 = vld [vmem:[#allocation21 + $0x1e0] sm:$0xff]
    %v2163 = vld [vmem:[#allocation21 + $0x1e8] sm:$0xff]
    %v2164 = vld [vmem:[#allocation21 + $0x1f0] sm:$0xff]
    %v2165 = vld [vmem:[#allocation21 + $0x1f8] sm:$0xff]
    %v2166 = vld [vmem:[#allocation22] sm:$0xff]
    %v2167 = vld [vmem:[#allocation22 + $0x8] sm:$0xff]
    %v2168 = vld [vmem:[#allocation22 + $0x10] sm:$0xff]
    %v2169 = vld [vmem:[#allocation22 + $0x18] sm:$0xff]
    %v2170 = vld [vmem:[#allocation22 + $0x20] sm:$0xff]
    %v2171 = vld [vmem:[#allocation22 + $0x28] sm:$0xff]
    %v2172 = vld [vmem:[#allocation22 + $0x30] sm:$0xff]
    %v2173 = vld [vmem:[#allocation22 + $0x38] sm:$0xff]
    %v2174 = vld [vmem:[#allocation22 + $0x40] sm:$0xff]
    %v2175 = vld [vmem:[#allocation22 + $0x48] sm:$0xff]
    %v2176 = vld [vmem:[#allocation22 + $0x50] sm:$0xff]
    %v2177 = vld [vmem:[#allocation22 + $0x58] sm:$0xff]
    %v2178 = vld [vmem:[#allocation22 + $0x60] sm:$0xff]
    %v2179 = vld [vmem:[#allocation22 + $0x68] sm:$0xff]
    %v2180 = vld [vmem:[#allocation22 + $0x70] sm:$0xff]
    %v2181 = vld [vmem:[#allocation22 + $0x78] sm:$0xff]
    %v2182 = vld [vmem:[#allocation22 + $0x80] sm:$0xff]
    %v2183 = vld [vmem:[#allocation22 + $0x88] sm:$0xff]
    %v2184 = vld [vmem:[#allocation22 + $0x90] sm:$0xff]
    %v2185 = vld [vmem:[#allocation22 + $0x98] sm:$0xff]
    %v2186 = vld [vmem:[#allocation22 + $0xa0] sm:$0xff]
    %v2187 = vld [vmem:[#allocation22 + $0xa8] sm:$0xff]
    %v2188 = vld [vmem:[#allocation22 + $0xb0] sm:$0xff]
    %v2189 = vld [vmem:[#allocation22 + $0xb8] sm:$0xff]
    %v2190 = vld [vmem:[#allocation22 + $0xc0] sm:$0xff]
    %v2191 = vld [vmem:[#allocation22 + $0xc8] sm:$0xff]
    %v2192 = vld [vmem:[#allocation22 + $0xd0] sm:$0xff]
    %v2193 = vld [vmem:[#allocation22 + $0xd8] sm:$0xff]
    %v2194 = vld [vmem:[#allocation22 + $0xe0] sm:$0xff]
    %v2195 = vld [vmem:[#allocation22 + $0xe8] sm:$0xff]
    %v2196 = vld [vmem:[#allocation22 + $0xf0] sm:$0xff]
    %v2197 = vld [vmem:[#allocation22 + $0xf8] sm:$0xff]
    %v2198 = vld [vmem:[#allocation22 + $0x100] sm:$0xff]
    %v2199 = vld [vmem:[#allocation22 + $0x108] sm:$0xff]
    %v2200 = vld [vmem:[#allocation22 + $0x110] sm:$0xff]
    %v2201 = vld [vmem:[#allocation22 + $0x118] sm:$0xff]
    %v2202 = vld [vmem:[#allocation22 + $0x120] sm:$0xff]
    %v2203 = vld [vmem:[#allocation22 + $0x128] sm:$0xff]
    %v2204 = vld [vmem:[#allocation22 + $0x130] sm:$0xff]
    %v2205 = vld [vmem:[#allocation22 + $0x138] sm:$0xff]
    %v2206 = vld [vmem:[#allocation22 + $0x140] sm:$0xff]
    %v2207 = vld [vmem:[#allocation22 + $0x148] sm:$0xff]
    %v2208 = vld [vmem:[#allocation22 + $0x150] sm:$0xff]
    %v2209 = vld [vmem:[#allocation22 + $0x158] sm:$0xff]
    %v2210 = vld [vmem:[#allocation22 + $0x160] sm:$0xff]
    %v2211 = vld [vmem:[#allocation22 + $0x168] sm:$0xff]
    %v2212 = vld [vmem:[#allocation22 + $0x170] sm:$0xff]
    %v2213 = vld [vmem:[#allocation22 + $0x178] sm:$0xff]
    %v2214 = vld [vmem:[#allocation22 + $0x180] sm:$0xff]
    %v2215 = vld [vmem:[#allocation22 + $0x188] sm:$0xff]
    %v2216 = vld [vmem:[#allocation22 + $0x190] sm:$0xff]
    %v2217 = vld [vmem:[#allocation22 + $0x198] sm:$0xff]
    %v2218 = vld [vmem:[#allocation22 + $0x1a0] sm:$0xff]
    %v2219 = vld [vmem:[#allocation22 + $0x1a8] sm:$0xff]
    %v2220 = vld [vmem:[#allocation22 + $0x1b0] sm:$0xff]
    %v2221 = vld [vmem:[#allocation22 + $0x1b8] sm:$0xff]
    %v2222 = vld [vmem:[#allocation22 + $0x1c0] sm:$0xff]
    %v2223 = vld [vmem:[#allocation22 + $0x1c8] sm:$0xff]
    %v2224 = vld [vmem:[#allocation22 + $0x1d0] sm:$0xff]
    %v2225 = vld [vmem:[#allocation22 + $0x1d8] sm:$0xff]
    %v2226 = vld [vmem:[#allocation22 + $0x1e0] sm:$0xff]
    %v2227 = vld [vmem:[#allocation22 + $0x1e8] sm:$0xff]
    %v2228 = vld [vmem:[#allocation22 + $0x1f0] sm:$0xff]
    %v2229 = vld [vmem:[#allocation22 + $0x1f8] sm:$0xff]
    %v2230 = vld [vmem:[%s13] sm:$0xf]
    %v2231 = vld [vmem:[#allocation2] sm:$0x3]
    %v2232 = vld [vmem:[#allocation2 + $0x2] sm:$0x3]
    %v2233 = vld [vmem:[#allocation2 + $0x4] sm:$0x3]
    %v2234 = vld [vmem:[#allocation2 + $0x6] sm:$0x3]
    %v2235 = vld [vmem:[#allocation2 + $0x8] sm:$0x3]
    %v2236 = vld [vmem:[#allocation2 + $0xa] sm:$0x3]
    %v2237 = vld [vmem:[#allocation2 + $0xc] sm:$0x3]
    %v2238 = vld [vmem:[#allocation2 + $0xe] sm:$0x3]
    %v2240 = vperm.slane %v2230, 0
    %v2241 = vperm.slane %v2230, 1
    %v2242 = vperm.slane %v2230, 2
    %v2243 = vperm.slane %v2230, 3
    %v2244 = vrot.slane %v2241, 6
    %v2245 = vrot.slane %v2242, 4
    %v2246 = vrot.slane %v2243, 2
    %v2247 = vsel %vm557, %v2240, %v2244
    %v2248 = vsel %vm559, %v2245, %v2246
    %v2249 = vsel %vm561, %v2247, %v2248
    %2258 = vst [vmem:[#allocation1] ss:$4 sm:$0xff] %v2231
    %s2259 = scalar_lea.vmem [#allocation1], 1
    %2260 = vst [vmem:[%s2259] ss:$4 sm:$0xff] %v2232
    %s2261 = scalar_lea.vmem [#allocation1], 2
    %2262 = vst [vmem:[%s2261] ss:$4 sm:$0xff] %v2233
    %s2263 = scalar_lea.vmem [#allocation1], 3
    %2264 = vst [vmem:[%s2263] ss:$4 sm:$0xff] %v2234
    %s2265 = scalar_lea.vmem [#allocation1], 32
    %2266 = vst [vmem:[%s2265] ss:$4 sm:$0xff] %v2235
    %s2267 = scalar_lea.vmem [#allocation1], 33
    %2268 = vst [vmem:[%s2267] ss:$4 sm:$0xff] %v2236
    %s2269 = scalar_lea.vmem [#allocation1], 34
    %2270 = vst [vmem:[%s2269] ss:$4 sm:$0xff] %v2237
    %s2271 = scalar_lea.vmem [#allocation1], 35
    %2272 = vst [vmem:[%s2271] ss:$4 sm:$0xff] %v2238
    %v2273 = vld.sshfl [vmem:[#allocation1] sm:$0xff pattern:$0x73625140]
    %v2274 = vld.sshfl [vmem:[#allocation1 + $0x20] sm:$0xff pattern:$0x73625140]
    %2277 = vst [vmem:[#allocation1] ss:$4 sm:$0xff] %v2249
    %s2278 = scalar_lea.vmem [#allocation1], 1
    %2279 = vst [vmem:[%s2278] ss:$4 sm:$0xff] %v2249
    %s2280 = scalar_lea.vmem [#allocation1], 2
    %2281 = vst [vmem:[%s2280] ss:$4 sm:$0xff] %v2249
    %s2282 = scalar_lea.vmem [#allocation1], 3
    %2283 = vst [vmem:[%s2282] ss:$4 sm:$0xff] %v2249
    %s2284 = scalar_lea.vmem [#allocation1], 32
    %2285 = vst [vmem:[%s2284] ss:$4 sm:$0xff] %v2249
    %s2286 = scalar_lea.vmem [#allocation1], 33
    %2287 = vst [vmem:[%s2286] ss:$4 sm:$0xff] %v2249
    %s2288 = scalar_lea.vmem [#allocation1], 34
    %2289 = vst [vmem:[%s2288] ss:$4 sm:$0xff] %v2249
    %s2290 = scalar_lea.vmem [#allocation1], 35
    %2291 = vst [vmem:[%s2290] ss:$4 sm:$0xff] %v2249
    %v2292 = vld.sshfl [vmem:[#allocation1] sm:$0xff pattern:$0x73625140]
    %v2293 = vld.sshfl [vmem:[#allocation1 + $0x8] sm:$0xff pattern:$0x73625140]
    %v2294 = vld.sshfl [vmem:[#allocation1 + $0x10] sm:$0xff pattern:$0x73625140]
    %v2295 = vld.sshfl [vmem:[#allocation1 + $0x18] sm:$0xff pattern:$0x73625140]
    %v2296 = vld.sshfl [vmem:[#allocation1 + $0x20] sm:$0xff pattern:$0x73625140]
    %v2297 = vld.sshfl [vmem:[#allocation1 + $0x28] sm:$0xff pattern:$0x73625140]
    %v2298 = vld.sshfl [vmem:[#allocation1 + $0x30] sm:$0xff pattern:$0x73625140]
    %v2299 = vld.sshfl [vmem:[#allocation1 + $0x38] sm:$0xff pattern:$0x73625140]
    %2308 = vmatpush.msra.mxu0 %v2162
    %2309 = vmatpush.msra.mxu0 %v2158
    %2310 = vmatpush.msra.mxu0 %v2154
    %2311 = vmatpush.msra.mxu0 %v2150
    %2312 = vmatpush.msra.mxu0 %v2146
    %2313 = vmatpush.msra.mxu0 %v2142
    %2314 = vmatpush.msra.mxu0 %v2138
    %2315 = vmatpush.msra.mxu0 %v2134
    %2316 = vmatpush.msra.mxu0 %v2130
    %2317 = vmatpush.msra.mxu0 %v2126
    %2318 = vmatpush.msra.mxu0 %v2122
    %2319 = vmatpush.msra.mxu0 %v2118
    %2320 = vmatpush.msra.mxu0 %v2114
    %2321 = vmatpush.msra.mxu0 %v2110
    %2322 = vmatpush.msra.mxu0 %v2106
    %2323 = vmatpush.msra.mxu0 %v2102
    %2324 = vmatmul.f32.gmra.mxu0 %v2273
    %v2325 = vpop.f32.mrf.mxu0
    %v2326 = vadd.f32 %v2292, %v2325
    %2327 = vmatmul.f32.gmra.mxu0 %v2274
    %v2328 = vpop.f32.mrf.mxu0
    %v2329 = vadd.f32 %v2296, %v2328
    %2330 = vdwg.mxu0
    %2331 = vmatpush.msra.mxu0 %v2163
    %2332 = vmatpush.msra.mxu0 %v2159
    %2333 = vmatpush.msra.mxu0 %v2155
    %2334 = vmatpush.msra.mxu0 %v2151
    %2335 = vmatpush.msra.mxu0 %v2147
    %2336 = vmatpush.msra.mxu0 %v2143
    %2337 = vmatpush.msra.mxu0 %v2139
    %2338 = vmatpush.msra.mxu0 %v2135
    %2339 = vmatpush.msra.mxu0 %v2131
    %2340 = vmatpush.msra.mxu0 %v2127
    %2341 = vmatpush.msra.mxu0 %v2123
    %2342 = vmatpush.msra.mxu0 %v2119
    %2343 = vmatpush.msra.mxu0 %v2115
    %2344 = vmatpush.msra.mxu0 %v2111
    %2345 = vmatpush.msra.mxu0 %v2107
    %2346 = vmatpush.msra.mxu0 %v2103
    %2347 = vmatmul.f32.gmra.mxu0 %v2273
    %v2348 = vpop.f32.mrf.mxu0
    %v2349 = vadd.f32 %v2293, %v2348
    %2350 = vmatmul.f32.gmra.mxu0 %v2274
    %v2351 = vpop.f32.mrf.mxu0
    %v2352 = vadd.f32 %v2297, %v2351
    %2353 = vdwg.mxu0
    %2354 = vmatpush.msra.mxu0 %v2164
    %2355 = vmatpush.msra.mxu0 %v2160
    %2356 = vmatpush.msra.mxu0 %v2156
    %2357 = vmatpush.msra.mxu0 %v2152
    %2358 = vmatpush.msra.mxu0 %v2148
    %2359 = vmatpush.msra.mxu0 %v2144
    %2360 = vmatpush.msra.mxu0 %v2140
    %2361 = vmatpush.msra.mxu0 %v2136
    %2362 = vmatpush.msra.mxu0 %v2132
    %2363 = vmatpush.msra.mxu0 %v2128
    %2364 = vmatpush.msra.mxu0 %v2124
    %2365 = vmatpush.msra.mxu0 %v2120
    %2366 = vmatpush.msra.mxu0 %v2116
    %2367 = vmatpush.msra.mxu0 %v2112
    %2368 = vmatpush.msra.mxu0 %v2108
    %2369 = vmatpush.msra.mxu0 %v2104
    %2370 = vmatmul.f32.gmra.mxu0 %v2273
    %v2371 = vpop.f32.mrf.mxu0
    %v2372 = vadd.f32 %v2294, %v2371
    %2373 = vmatmul.f32.gmra.mxu0 %v2274
    %v2374 = vpop.f32.mrf.mxu0
    %v2375 = vadd.f32 %v2298, %v2374
    %2376 = vdwg.mxu0
    %2377 = vmatpush.msra.mxu0 %v2165
    %2378 = vmatpush.msra.mxu0 %v2161
    %2379 = vmatpush.msra.mxu0 %v2157
    %2380 = vmatpush.msra.mxu0 %v2153
    %2381 = vmatpush.msra.mxu0 %v2149
    %2382 = vmatpush.msra.mxu0 %v2145
    %2383 = vmatpush.msra.mxu0 %v2141
    %2384 = vmatpush.msra.mxu0 %v2137
    %2385 = vmatpush.msra.mxu0 %v2133
    %2386 = vmatpush.msra.mxu0 %v2129
    %2387 = vmatpush.msra.mxu0 %v2125
    %2388 = vmatpush.msra.mxu0 %v2121
    %2389 = vmatpush.msra.mxu0 %v2117
    %2390 = vmatpush.msra.mxu0 %v2113
    %2391 = vmatpush.msra.mxu0 %v2109
    %2392 = vmatpush.msra.mxu0 %v2105
    %2393 = vmatmul.f32.gmra.mxu0 %v2273
    %v2394 = vpop.f32.mrf.mxu0
    %v2395 = vadd.f32 %v2295, %v2394
    %2396 = vmatmul.f32.gmra.mxu0 %v2274
    %v2397 = vpop.f32.mrf.mxu0
    %v2398 = vadd.f32 %v2299, %v2397
    %2399 = vdwg.mxu0
    %v2408 = vrot.slane %v2349, 6
    %v2409 = vrot.slane %v2372, 4
    %v2410 = vrot.slane %v2395, 2
    %v2411 = vrot.slane %v2352, 6
    %v2412 = vrot.slane %v2375, 4
    %v2413 = vrot.slane %v2398, 2
    %v2414 = vsel %vm557, %v2326, %v2408
    %v2415 = vsel %vm559, %v2409, %v2410
    %v2416 = vsel %vm561, %v2414, %v2415
    %v2417 = vsel %vm730, %v2326, %v2408
    %v2418 = vsel %vm732, %v2410, %v2409
    %v2419 = vsel %vm734, %v2417, %v2418
    %v2420 = vrot.slane %v2419, 2
    %v2421 = vsel %vm559, %v2326, %v2408
    %v2422 = vsel %vm557, %v2409, %v2410
    %v2423 = vsel %vm561, %v2422, %v2421
    %v2424 = vrot.slane %v2423, 4
    %v2425 = vsel %vm732, %v2408, %v2326
    %v2426 = vsel %vm730, %v2409, %v2410
    %v2427 = vsel %vm734, %v2426, %v2425
    %v2428 = vrot.slane %v2427, 6
    %v2429 = vsel %vm557, %v2329, %v2411
    %v2430 = vsel %vm559, %v2412, %v2413
    %v2431 = vsel %vm561, %v2429, %v2430
    %v2432 = vsel %vm730, %v2329, %v2411
    %v2433 = vsel %vm732, %v2413, %v2412
    %v2434 = vsel %vm734, %v2432, %v2433
    %v2435 = vrot.slane %v2434, 2
    %v2436 = vsel %vm559, %v2329, %v2411
    %v2437 = vsel %vm557, %v2412, %v2413
    %v2438 = vsel %vm561, %v2437, %v2436
    %v2439 = vrot.slane %v2438, 4
    %v2440 = vsel %vm732, %v2411, %v2329
    %v2441 = vsel %vm730, %v2412, %v2413
    %v2442 = vsel %vm734, %v2441, %v2440
    %v2443 = vrot.slane %v2442, 6
    %2452 = vst [vmem:[#allocation3] sm:$0xff] %v2416
    %2453 = vst [vmem:[#allocation3 + $0x8] sm:$0xff] %v2420
    %2454 = vst [vmem:[#allocation3 + $0x10] sm:$0xff] %v2424
    %2455 = vst [vmem:[#allocation3 + $0x18] sm:$0xff] %v2428
    %2456 = vst [vmem:[#allocation3 + $0x20] sm:$0xff] %v2431
    %2457 = vst [vmem:[#allocation3 + $0x28] sm:$0xff] %v2435
    %2458 = vst [vmem:[#allocation3 + $0x30] sm:$0xff] %v2439
    %2459 = vst [vmem:[#allocation3 + $0x38] sm:$0xff] %v2443
    %v2460 = vld [vmem:[#allocation3] sm:$0xff]
    %2461 = vmatpush.msra.mxu0 %v2226
    %2462 = vmatpush.msra.mxu0 %v2222
    %2463 = vmatpush.msra.mxu0 %v2218
    %2464 = vmatpush.msra.mxu0 %v2214
    %2465 = vmatpush.msra.mxu0 %v2210
    %2466 = vmatpush.msra.mxu0 %v2206
    %2467 = vmatpush.msra.mxu0 %v2202
    %2468 = vmatpush.msra.mxu0 %v2198
    %2469 = vmatpush.msra.mxu0 %v2194
    %2470 = vmatpush.msra.mxu0 %v2190
    %2471 = vmatpush.msra.mxu0 %v2186
    %2472 = vmatpush.msra.mxu0 %v2182
    %2473 = vmatpush.msra.mxu0 %v2178
    %2474 = vmatpush.msra.mxu0 %v2174
    %2475 = vmatpush.msra.mxu0 %v2170
    %2476 = vmatpush.msra.mxu0 %v2166
    %2477 = vmatmul.f32.gmra.mxu0 %v411
    %v2478 = vpop.f32.mrf.mxu0
    %v2479 = vadd.f32 0.0, %v2478
    %2480 = vdwg.mxu0
    %2481 = vmatpush.msra.mxu0 %v2227
    %2482 = vmatpush.msra.mxu0 %v2223
    %2483 = vmatpush.msra.mxu0 %v2219
    %2484 = vmatpush.msra.mxu0 %v2215
    %2485 = vmatpush.msra.mxu0 %v2211
    %2486 = vmatpush.msra.mxu0 %v2207
    %2487 = vmatpush.msra.mxu0 %v2203
    %2488 = vmatpush.msra.mxu0 %v2199
    %2489 = vmatpush.msra.mxu0 %v2195
    %2490 = vmatpush.msra.mxu0 %v2191
    %2491 = vmatpush.msra.mxu0 %v2187
    %2492 = vmatpush.msra.mxu0 %v2183
    %2493 = vmatpush.msra.mxu0 %v2179
    %2494 = vmatpush.msra.mxu0 %v2175
    %2495 = vmatpush.msra.mxu0 %v2171
    %2496 = vmatpush.msra.mxu0 %v2167
    %2497 = vmatmul.f32.gmra.mxu0 %v411
    %v2498 = vpop.f32.mrf.mxu0
    %v2499 = vadd.f32 0.0, %v2498
    %2500 = vdwg.mxu0
    %2501 = vmatpush.msra.mxu0 %v2228
    %2502 = vmatpush.msra.mxu0 %v2224
    %2503 = vmatpush.msra.mxu0 %v2220
    %2504 = vmatpush.msra.mxu0 %v2216
    %2505 = vmatpush.msra.mxu0 %v2212
    %2506 = vmatpush.msra.mxu0 %v2208
    %2507 = vmatpush.msra.mxu0 %v2204
    %2508 = vmatpush.msra.mxu0 %v2200
    %2509 = vmatpush.msra.mxu0 %v2196
    %2510 = vmatpush.msra.mxu0 %v2192
    %2511 = vmatpush.msra.mxu0 %v2188
    %2512 = vmatpush.msra.mxu0 %v2184
    %2513 = vmatpush.msra.mxu0 %v2180
    %2514 = vmatpush.msra.mxu0 %v2176
    %2515 = vmatpush.msra.mxu0 %v2172
    %2516 = vmatpush.msra.mxu0 %v2168
    %2517 = vmatmul.f32.gmra.mxu0 %v411
    %v2518 = vpop.f32.mrf.mxu0
    %v2519 = vadd.f32 0.0, %v2518
    %2520 = vdwg.mxu0
    %2521 = vmatpush.msra.mxu0 %v2229
    %2522 = vmatpush.msra.mxu0 %v2225
    %2523 = vmatpush.msra.mxu0 %v2221
    %2524 = vmatpush.msra.mxu0 %v2217
    %2525 = vmatpush.msra.mxu0 %v2213
    %2526 = vmatpush.msra.mxu0 %v2209
    %2527 = vmatpush.msra.mxu0 %v2205
    %2528 = vmatpush.msra.mxu0 %v2201
    %2529 = vmatpush.msra.mxu0 %v2197
    %2530 = vmatpush.msra.mxu0 %v2193
    %2531 = vmatpush.msra.mxu0 %v2189
    %2532 = vmatpush.msra.mxu0 %v2185
    %2533 = vmatpush.msra.mxu0 %v2181
    %2534 = vmatpush.msra.mxu0 %v2177
    %2535 = vmatpush.msra.mxu0 %v2173
    %2536 = vmatpush.msra.mxu0 %v2169
    %2537 = vmatmul.f32.gmra.mxu0 %v411
    %v2538 = vpop.f32.mrf.mxu0
    %v2539 = vadd.f32 0.0, %v2538
    %2540 = vdwg.mxu0
    %v2545 = vrot.slane %v2499, 6
    %v2546 = vrot.slane %v2519, 4
    %v2547 = vrot.slane %v2539, 2
    %v2548 = vsel %vm557, %v2479, %v2545
    %v2549 = vsel %vm559, %v2546, %v2547
    %v2550 = vsel %vm561, %v2548, %v2549
    %v2552 = vadd.f32 %v2460, %v2550
    %v2553 = vxor.u32 %v2552, 2147483648
    %v2554 = vmul.f32 %v2553, 1.442695
    %v2555 = vpow.pop %v2554
    %v2556 = vadd.f32 %v2555, 1.0
    %v2557 = vrcp.pop %v2556
    %v2558 = vmul.f32 %v2556, %v2557
    %v2559 = vsub.f32 1.0, %v2558
    %v2560 = vmul.f32 %v2557, %v2559
    %v2561 = vadd.f32 %v2557, %v2560
    %vm2562 = vweird.f32 %v2556
    %vm2563 = vweird.f32 %v2557
    %vm2564 = vmor %vm2562, %vm2563
    %v2565 = vsel %vm2564, %v2557, %v2561
    %v2566 = vand.u32 2147483647, %v2556
    %vm2567 = vcmp.eq.f32.partialorder %v2566, 8.507059e+37
    %v2568 = vand.u32 %v2556, 2147483648
    %v2569 = vor.u32 1.1754944e-38, %v2568
    %v2570 = vsel %vm2567, %v2569, %v2565
    %v2571 = vmul.f32 1.0, %v2570
    %v2573 = vrot.slane %v2552, 2
    %v2575 = vxor.u32 %v2573, 2147483648
    %v2576 = vmul.f32 %v2575, 1.442695
    %v2577 = vpow.pop %v2576
    %v2578 = vadd.f32 %v2577, 1.0
    %v2579 = vrcp.pop %v2578
    %v2580 = vmul.f32 %v2578, %v2579
    %v2581 = vsub.f32 1.0, %v2580
    %v2582 = vmul.f32 %v2579, %v2581
    %v2583 = vadd.f32 %v2579, %v2582
    %vm2584 = vweird.f32 %v2578
    %vm2585 = vweird.f32 %v2579
    %vm2586 = vmor %vm2584, %vm2585
    %v2587 = vsel %vm2586, %v2579, %v2583
    %v2588 = vand.u32 2147483647, %v2578
    %vm2589 = vcmp.eq.f32.partialorder %v2588, 8.507059e+37
    %v2590 = vand.u32 %v2578, 2147483648
    %v2591 = vor.u32 1.1754944e-38, %v2590
    %v2592 = vsel %vm2589, %v2591, %v2587
    %v2593 = vmul.f32 1.0, %v2592
    %v2594 = vrot.slane %v2552, 4
    %v2596 = vtanh.pop %v2594
    %v2597 = vrot.slane %v2552, 6
    %v2599 = vxor.u32 %v2597, 2147483648
    %v2600 = vmul.f32 %v2599, 1.442695
    %v2601 = vpow.pop %v2600
    %v2602 = vadd.f32 %v2601, 1.0
    %v2603 = vrcp.pop %v2602
    %v2604 = vmul.f32 %v2602, %v2603
    %v2605 = vsub.f32 1.0, %v2604
    %v2606 = vmul.f32 %v2603, %v2605
    %v2607 = vadd.f32 %v2603, %v2606
    %vm2608 = vweird.f32 %v2602
    %vm2609 = vweird.f32 %v2603
    %vm2610 = vmor %vm2608, %vm2609
    %v2611 = vsel %vm2610, %v2603, %v2607
    %v2612 = vand.u32 2147483647, %v2602
    %vm2613 = vcmp.eq.f32.partialorder %v2612, 8.507059e+37
    %v2614 = vand.u32 %v2602, 2147483648
    %v2615 = vor.u32 1.1754944e-38, %v2614
    %v2616 = vsel %vm2613, %v2615, %v2611
    %v2617 = vmul.f32 1.0, %v2616
    %v2618 = vmul.f32 %v2593, 0.0
    %v2619 = vmul.f32 %v2571, %v2596
    %v2620 = vadd.f32 %v2618, %v2619
    %v2621 = vtanh.pop %v2620
    %v2622 = vmul.f32 %v2617, %v2621
    %2623 = vst [vmem:[#allocation2] sm:$0x3] %v2622
    %v2624 = vld [vmem:[%s940] sm:$0xff]
    %2625 = vmatpush.msra.mxu0 %v2226
    %2626 = vmatpush.msra.mxu0 %v2222
    %2627 = vmatpush.msra.mxu0 %v2218
    %2628 = vmatpush.msra.mxu0 %v2214
    %2629 = vmatpush.msra.mxu0 %v2210
    %2630 = vmatpush.msra.mxu0 %v2206
    %2631 = vmatpush.msra.mxu0 %v2202
    %2632 = vmatpush.msra.mxu0 %v2198
    %2633 = vmatpush.msra.mxu0 %v2194
    %2634 = vmatpush.msra.mxu0 %v2190
    %2635 = vmatpush.msra.mxu0 %v2186
    %2636 = vmatpush.msra.mxu0 %v2182
    %2637 = vmatpush.msra.mxu0 %v2178
    %2638 = vmatpush.msra.mxu0 %v2174
    %2639 = vmatpush.msra.mxu0 %v2170
    %2640 = vmatpush.msra.mxu0 %v2166
    %2641 = vmatmul.f32.gmra.mxu0 %v2622
    %v2642 = vpop.f32.mrf.mxu0
    %v2643 = vadd.f32 0.0, %v2642
    %2644 = vdwg.mxu0
    %2645 = vmatpush.msra.mxu0 %v2227
    %2646 = vmatpush.msra.mxu0 %v2223
    %2647 = vmatpush.msra.mxu0 %v2219
    %2648 = vmatpush.msra.mxu0 %v2215
    %2649 = vmatpush.msra.mxu0 %v2211
    %2650 = vmatpush.msra.mxu0 %v2207
    %2651 = vmatpush.msra.mxu0 %v2203
    %2652 = vmatpush.msra.mxu0 %v2199
    %2653 = vmatpush.msra.mxu0 %v2195
    %2654 = vmatpush.msra.mxu0 %v2191
    %2655 = vmatpush.msra.mxu0 %v2187
    %2656 = vmatpush.msra.mxu0 %v2183
    %2657 = vmatpush.msra.mxu0 %v2179
    %2658 = vmatpush.msra.mxu0 %v2175
    %2659 = vmatpush.msra.mxu0 %v2171
    %2660 = vmatpush.msra.mxu0 %v2167
    %2661 = vmatmul.f32.gmra.mxu0 %v2622
    %v2662 = vpop.f32.mrf.mxu0
    %v2663 = vadd.f32 0.0, %v2662
    %2664 = vdwg.mxu0
    %2665 = vmatpush.msra.mxu0 %v2228
    %2666 = vmatpush.msra.mxu0 %v2224
    %2667 = vmatpush.msra.mxu0 %v2220
    %2668 = vmatpush.msra.mxu0 %v2216
    %2669 = vmatpush.msra.mxu0 %v2212
    %2670 = vmatpush.msra.mxu0 %v2208
    %2671 = vmatpush.msra.mxu0 %v2204
    %2672 = vmatpush.msra.mxu0 %v2200
    %2673 = vmatpush.msra.mxu0 %v2196
    %2674 = vmatpush.msra.mxu0 %v2192
    %2675 = vmatpush.msra.mxu0 %v2188
    %2676 = vmatpush.msra.mxu0 %v2184
    %2677 = vmatpush.msra.mxu0 %v2180
    %2678 = vmatpush.msra.mxu0 %v2176
    %2679 = vmatpush.msra.mxu0 %v2172
    %2680 = vmatpush.msra.mxu0 %v2168
    %2681 = vmatmul.f32.gmra.mxu0 %v2622
    %v2682 = vpop.f32.mrf.mxu0
    %v2683 = vadd.f32 0.0, %v2682
    %2684 = vdwg.mxu0
    %2685 = vmatpush.msra.mxu0 %v2229
    %2686 = vmatpush.msra.mxu0 %v2225
    %2687 = vmatpush.msra.mxu0 %v2221
    %2688 = vmatpush.msra.mxu0 %v2217
    %2689 = vmatpush.msra.mxu0 %v2213
    %2690 = vmatpush.msra.mxu0 %v2209
    %2691 = vmatpush.msra.mxu0 %v2205
    %2692 = vmatpush.msra.mxu0 %v2201
    %2693 = vmatpush.msra.mxu0 %v2197
    %2694 = vmatpush.msra.mxu0 %v2193
    %2695 = vmatpush.msra.mxu0 %v2189
    %2696 = vmatpush.msra.mxu0 %v2185
    %2697 = vmatpush.msra.mxu0 %v2181
    %2698 = vmatpush.msra.mxu0 %v2177
    %2699 = vmatpush.msra.mxu0 %v2173
    %2700 = vmatpush.msra.mxu0 %v2169
    %2701 = vmatmul.f32.gmra.mxu0 %v2622
    %v2702 = vpop.f32.mrf.mxu0
    %v2703 = vadd.f32 0.0, %v2702
    %2704 = vdwg.mxu0
    %v2709 = vrot.slane %v2663, 6
    %v2710 = vrot.slane %v2683, 4
    %v2711 = vrot.slane %v2703, 2
    %v2712 = vsel %vm557, %v2643, %v2709
    %v2713 = vsel %vm559, %v2710, %v2711
    %v2714 = vsel %vm561, %v2712, %v2713
    %v2716 = vadd.f32 %v2624, %v2714
    %v2717 = vxor.u32 %v2716, 2147483648
    %v2718 = vmul.f32 %v2717, 1.442695
    %v2719 = vpow.pop %v2718
    %v2720 = vadd.f32 %v2719, 1.0
    %v2721 = vrcp.pop %v2720
    %v2722 = vmul.f32 %v2720, %v2721
    %v2723 = vsub.f32 1.0, %v2722
    %v2724 = vmul.f32 %v2721, %v2723
    %v2725 = vadd.f32 %v2721, %v2724
    %vm2726 = vweird.f32 %v2720
    %vm2727 = vweird.f32 %v2721
    %vm2728 = vmor %vm2726, %vm2727
    %v2729 = vsel %vm2728, %v2721, %v2725
    %v2730 = vand.u32 2147483647, %v2720
    %vm2731 = vcmp.eq.f32.partialorder %v2730, 8.507059e+37
    %v2732 = vand.u32 %v2720, 2147483648
    %v2733 = vor.u32 1.1754944e-38, %v2732
    %v2734 = vsel %vm2731, %v2733, %v2729
    %v2735 = vmul.f32 1.0, %v2734
    %v2737 = vrot.slane %v2716, 2
    %v2739 = vxor.u32 %v2737, 2147483648
    %v2740 = vmul.f32 %v2739, 1.442695
    %v2741 = vpow.pop %v2740
    %v2742 = vadd.f32 %v2741, 1.0
    %v2743 = vrcp.pop %v2742
    %v2744 = vmul.f32 %v2742, %v2743
    %v2745 = vsub.f32 1.0, %v2744
    %v2746 = vmul.f32 %v2743, %v2745
    %v2747 = vadd.f32 %v2743, %v2746
    %vm2748 = vweird.f32 %v2742
    %vm2749 = vweird.f32 %v2743
    %vm2750 = vmor %vm2748, %vm2749
    %v2751 = vsel %vm2750, %v2743, %v2747
    %v2752 = vand.u32 2147483647, %v2742
    %vm2753 = vcmp.eq.f32.partialorder %v2752, 8.507059e+37
    %v2754 = vand.u32 %v2742, 2147483648
    %v2755 = vor.u32 1.1754944e-38, %v2754
    %v2756 = vsel %vm2753, %v2755, %v2751
    %v2757 = vmul.f32 1.0, %v2756
    %v2758 = vrot.slane %v2716, 4
    %v2760 = vtanh.pop %v2758
    %v2761 = vrot.slane %v2716, 6
    %v2763 = vxor.u32 %v2761, 2147483648
    %v2764 = vmul.f32 %v2763, 1.442695
    %v2765 = vpow.pop %v2764
    %v2766 = vadd.f32 %v2765, 1.0
    %v2767 = vrcp.pop %v2766
    %v2768 = vmul.f32 %v2766, %v2767
    %v2769 = vsub.f32 1.0, %v2768
    %v2770 = vmul.f32 %v2767, %v2769
    %v2771 = vadd.f32 %v2767, %v2770
    %vm2772 = vweird.f32 %v2766
    %vm2773 = vweird.f32 %v2767
    %vm2774 = vmor %vm2772, %vm2773
    %v2775 = vsel %vm2774, %v2767, %v2771
    %v2776 = vand.u32 2147483647, %v2766
    %vm2777 = vcmp.eq.f32.partialorder %v2776, 8.507059e+37
    %v2778 = vand.u32 %v2766, 2147483648
    %v2779 = vor.u32 1.1754944e-38, %v2778
    %v2780 = vsel %vm2777, %v2779, %v2775
    %v2781 = vmul.f32 1.0, %v2780
    %v2782 = vmul.f32 %v2757, %v2620
    %v2783 = vmul.f32 %v2735, %v2760
    %v2784 = vadd.f32 %v2782, %v2783
    %v2785 = vtanh.pop %v2784
    %v2786 = vmul.f32 %v2781, %v2785
    %2787 = vst [vmem:[%s1104] sm:$0x3] %v2786
    %v2788 = vld [vmem:[%s1106] sm:$0xff]
    %2789 = vmatpush.msra.mxu0 %v2226
    %2790 = vmatpush.msra.mxu0 %v2222
    %2791 = vmatpush.msra.mxu0 %v2218
    %2792 = vmatpush.msra.mxu0 %v2214
    %2793 = vmatpush.msra.mxu0 %v2210
    %2794 = vmatpush.msra.mxu0 %v2206
    %2795 = vmatpush.msra.mxu0 %v2202
    %2796 = vmatpush.msra.mxu0 %v2198
    %2797 = vmatpush.msra.mxu0 %v2194
    %2798 = vmatpush.msra.mxu0 %v2190
    %2799 = vmatpush.msra.mxu0 %v2186
    %2800 = vmatpush.msra.mxu0 %v2182
    %2801 = vmatpush.msra.mxu0 %v2178
    %2802 = vmatpush.msra.mxu0 %v2174
    %2803 = vmatpush.msra.mxu0 %v2170
    %2804 = vmatpush.msra.mxu0 %v2166
    %2805 = vmatmul.f32.gmra.mxu0 %v2786
    %v2806 = vpop.f32.mrf.mxu0
    %v2807 = vadd.f32 0.0, %v2806
    %2808 = vdwg.mxu0
    %2809 = vmatpush.msra.mxu0 %v2227
    %2810 = vmatpush.msra.mxu0 %v2223
    %2811 = vmatpush.msra.mxu0 %v2219
    %2812 = vmatpush.msra.mxu0 %v2215
    %2813 = vmatpush.msra.mxu0 %v2211
    %2814 = vmatpush.msra.mxu0 %v2207
    %2815 = vmatpush.msra.mxu0 %v2203
    %2816 = vmatpush.msra.mxu0 %v2199
    %2817 = vmatpush.msra.mxu0 %v2195
    %2818 = vmatpush.msra.mxu0 %v2191
    %2819 = vmatpush.msra.mxu0 %v2187
    %2820 = vmatpush.msra.mxu0 %v2183
    %2821 = vmatpush.msra.mxu0 %v2179
    %2822 = vmatpush.msra.mxu0 %v2175
    %2823 = vmatpush.msra.mxu0 %v2171
    %2824 = vmatpush.msra.mxu0 %v2167
    %2825 = vmatmul.f32.gmra.mxu0 %v2786
    %v2826 = vpop.f32.mrf.mxu0
    %v2827 = vadd.f32 0.0, %v2826
    %2828 = vdwg.mxu0
    %2829 = vmatpush.msra.mxu0 %v2228
    %2830 = vmatpush.msra.mxu0 %v2224
    %2831 = vmatpush.msra.mxu0 %v2220
    %2832 = vmatpush.msra.mxu0 %v2216
    %2833 = vmatpush.msra.mxu0 %v2212
    %2834 = vmatpush.msra.mxu0 %v2208
    %2835 = vmatpush.msra.mxu0 %v2204
    %2836 = vmatpush.msra.mxu0 %v2200
    %2837 = vmatpush.msra.mxu0 %v2196
    %2838 = vmatpush.msra.mxu0 %v2192
    %2839 = vmatpush.msra.mxu0 %v2188
    %2840 = vmatpush.msra.mxu0 %v2184
    %2841 = vmatpush.msra.mxu0 %v2180
    %2842 = vmatpush.msra.mxu0 %v2176
    %2843 = vmatpush.msra.mxu0 %v2172
    %2844 = vmatpush.msra.mxu0 %v2168
    %2845 = vmatmul.f32.gmra.mxu0 %v2786
    %v2846 = vpop.f32.mrf.mxu0
    %v2847 = vadd.f32 0.0, %v2846
    %2848 = vdwg.mxu0
    %2849 = vmatpush.msra.mxu0 %v2229
    %2850 = vmatpush.msra.mxu0 %v2225
    %2851 = vmatpush.msra.mxu0 %v2221
    %2852 = vmatpush.msra.mxu0 %v2217
    %2853 = vmatpush.msra.mxu0 %v2213
    %2854 = vmatpush.msra.mxu0 %v2209
    %2855 = vmatpush.msra.mxu0 %v2205
    %2856 = vmatpush.msra.mxu0 %v2201
    %2857 = vmatpush.msra.mxu0 %v2197
    %2858 = vmatpush.msra.mxu0 %v2193
    %2859 = vmatpush.msra.mxu0 %v2189
    %2860 = vmatpush.msra.mxu0 %v2185
    %2861 = vmatpush.msra.mxu0 %v2181
    %2862 = vmatpush.msra.mxu0 %v2177
    %2863 = vmatpush.msra.mxu0 %v2173
    %2864 = vmatpush.msra.mxu0 %v2169
    %2865 = vmatmul.f32.gmra.mxu0 %v2786
    %v2866 = vpop.f32.mrf.mxu0
    %v2867 = vadd.f32 0.0, %v2866
    %2868 = vdwg.mxu0
    %v2873 = vrot.slane %v2827, 6
    %v2874 = vrot.slane %v2847, 4
    %v2875 = vrot.slane %v2867, 2
    %v2876 = vsel %vm557, %v2807, %v2873
    %v2877 = vsel %vm559, %v2874, %v2875
    %v2878 = vsel %vm561, %v2876, %v2877
    %v2880 = vadd.f32 %v2788, %v2878
    %v2881 = vxor.u32 %v2880, 2147483648
    %v2882 = vmul.f32 %v2881, 1.442695
    %v2883 = vpow.pop %v2882
    %v2884 = vadd.f32 %v2883, 1.0
    %v2885 = vrcp.pop %v2884
    %v2886 = vmul.f32 %v2884, %v2885
    %v2887 = vsub.f32 1.0, %v2886
    %v2888 = vmul.f32 %v2885, %v2887
    %v2889 = vadd.f32 %v2885, %v2888
    %vm2890 = vweird.f32 %v2884
    %vm2891 = vweird.f32 %v2885
    %vm2892 = vmor %vm2890, %vm2891
    %v2893 = vsel %vm2892, %v2885, %v2889
    %v2894 = vand.u32 2147483647, %v2884
    %vm2895 = vcmp.eq.f32.partialorder %v2894, 8.507059e+37
    %v2896 = vand.u32 %v2884, 2147483648
    %v2897 = vor.u32 1.1754944e-38, %v2896
    %v2898 = vsel %vm2895, %v2897, %v2893
    %v2899 = vmul.f32 1.0, %v2898
    %v2901 = vrot.slane %v2880, 2
    %v2903 = vxor.u32 %v2901, 2147483648
    %v2904 = vmul.f32 %v2903, 1.442695
    %v2905 = vpow.pop %v2904
    %v2906 = vadd.f32 %v2905, 1.0
    %v2907 = vrcp.pop %v2906
    %v2908 = vmul.f32 %v2906, %v2907
    %v2909 = vsub.f32 1.0, %v2908
    %v2910 = vmul.f32 %v2907, %v2909
    %v2911 = vadd.f32 %v2907, %v2910
    %vm2912 = vweird.f32 %v2906
    %vm2913 = vweird.f32 %v2907
    %vm2914 = vmor %vm2912, %vm2913
    %v2915 = vsel %vm2914, %v2907, %v2911
    %v2916 = vand.u32 2147483647, %v2906
    %vm2917 = vcmp.eq.f32.partialorder %v2916, 8.507059e+37
    %v2918 = vand.u32 %v2906, 2147483648
    %v2919 = vor.u32 1.1754944e-38, %v2918
    %v2920 = vsel %vm2917, %v2919, %v2915
    %v2921 = vmul.f32 1.0, %v2920
    %v2922 = vrot.slane %v2880, 4
    %v2924 = vtanh.pop %v2922
    %v2925 = vrot.slane %v2880, 6
    %v2927 = vxor.u32 %v2925, 2147483648
    %v2928 = vmul.f32 %v2927, 1.442695
    %v2929 = vpow.pop %v2928
    %v2930 = vadd.f32 %v2929, 1.0
    %v2931 = vrcp.pop %v2930
    %v2932 = vmul.f32 %v2930, %v2931
    %v2933 = vsub.f32 1.0, %v2932
    %v2934 = vmul.f32 %v2931, %v2933
    %v2935 = vadd.f32 %v2931, %v2934
    %vm2936 = vweird.f32 %v2930
    %vm2937 = vweird.f32 %v2931
    %vm2938 = vmor %vm2936, %vm2937
    %v2939 = vsel %vm2938, %v2931, %v2935
    %v2940 = vand.u32 2147483647, %v2930
    %vm2941 = vcmp.eq.f32.partialorder %v2940, 8.507059e+37
    %v2942 = vand.u32 %v2930, 2147483648
    %v2943 = vor.u32 1.1754944e-38, %v2942
    %v2944 = vsel %vm2941, %v2943, %v2939
    %v2945 = vmul.f32 1.0, %v2944
    %v2946 = vmul.f32 %v2921, %v2784
    %v2947 = vmul.f32 %v2899, %v2924
    %v2948 = vadd.f32 %v2946, %v2947
    %v2949 = vtanh.pop %v2948
    %v2950 = vmul.f32 %v2945, %v2949
    %2951 = vst [vmem:[%s1270] sm:$0x3] %v2950
    %v2952 = vld [vmem:[%s1272] sm:$0xff]
    %2953 = vmatpush.msra.mxu0 %v2226
    %2954 = vmatpush.msra.mxu0 %v2222
    %2955 = vmatpush.msra.mxu0 %v2218
    %2956 = vmatpush.msra.mxu0 %v2214
    %2957 = vmatpush.msra.mxu0 %v2210
    %2958 = vmatpush.msra.mxu0 %v2206
    %2959 = vmatpush.msra.mxu0 %v2202
    %2960 = vmatpush.msra.mxu0 %v2198
    %2961 = vmatpush.msra.mxu0 %v2194
    %2962 = vmatpush.msra.mxu0 %v2190
    %2963 = vmatpush.msra.mxu0 %v2186
    %2964 = vmatpush.msra.mxu0 %v2182
    %2965 = vmatpush.msra.mxu0 %v2178
    %2966 = vmatpush.msra.mxu0 %v2174
    %2967 = vmatpush.msra.mxu0 %v2170
    %2968 = vmatpush.msra.mxu0 %v2166
    %2969 = vmatmul.f32.gmra.mxu0 %v2950
    %v2970 = vpop.f32.mrf.mxu0
    %v2971 = vadd.f32 0.0, %v2970
    %2972 = vdwg.mxu0
    %2973 = vmatpush.msra.mxu0 %v2227
    %2974 = vmatpush.msra.mxu0 %v2223
    %2975 = vmatpush.msra.mxu0 %v2219
    %2976 = vmatpush.msra.mxu0 %v2215
    %2977 = vmatpush.msra.mxu0 %v2211
    %2978 = vmatpush.msra.mxu0 %v2207
    %2979 = vmatpush.msra.mxu0 %v2203
    %2980 = vmatpush.msra.mxu0 %v2199
    %2981 = vmatpush.msra.mxu0 %v2195
    %2982 = vmatpush.msra.mxu0 %v2191
    %2983 = vmatpush.msra.mxu0 %v2187
    %2984 = vmatpush.msra.mxu0 %v2183
    %2985 = vmatpush.msra.mxu0 %v2179
    %2986 = vmatpush.msra.mxu0 %v2175
    %2987 = vmatpush.msra.mxu0 %v2171
    %2988 = vmatpush.msra.mxu0 %v2167
    %2989 = vmatmul.f32.gmra.mxu0 %v2950
    %v2990 = vpop.f32.mrf.mxu0
    %v2991 = vadd.f32 0.0, %v2990
    %2992 = vdwg.mxu0
    %2993 = vmatpush.msra.mxu0 %v2228
    %2994 = vmatpush.msra.mxu0 %v2224
    %2995 = vmatpush.msra.mxu0 %v2220
    %2996 = vmatpush.msra.mxu0 %v2216
    %2997 = vmatpush.msra.mxu0 %v2212
    %2998 = vmatpush.msra.mxu0 %v2208
    %2999 = vmatpush.msra.mxu0 %v2204
    %3000 = vmatpush.msra.mxu0 %v2200
    %3001 = vmatpush.msra.mxu0 %v2196
    %3002 = vmatpush.msra.mxu0 %v2192
    %3003 = vmatpush.msra.mxu0 %v2188
    %3004 = vmatpush.msra.mxu0 %v2184
    %3005 = vmatpush.msra.mxu0 %v2180
    %3006 = vmatpush.msra.mxu0 %v2176
    %3007 = vmatpush.msra.mxu0 %v2172
    %3008 = vmatpush.msra.mxu0 %v2168
    %3009 = vmatmul.f32.gmra.mxu0 %v2950
    %v3010 = vpop.f32.mrf.mxu0
    %v3011 = vadd.f32 0.0, %v3010
    %3012 = vdwg.mxu0
    %3013 = vmatpush.msra.mxu0 %v2229
    %3014 = vmatpush.msra.mxu0 %v2225
    %3015 = vmatpush.msra.mxu0 %v2221
    %3016 = vmatpush.msra.mxu0 %v2217
    %3017 = vmatpush.msra.mxu0 %v2213
    %3018 = vmatpush.msra.mxu0 %v2209
    %3019 = vmatpush.msra.mxu0 %v2205
    %3020 = vmatpush.msra.mxu0 %v2201
    %3021 = vmatpush.msra.mxu0 %v2197
    %3022 = vmatpush.msra.mxu0 %v2193
    %3023 = vmatpush.msra.mxu0 %v2189
    %3024 = vmatpush.msra.mxu0 %v2185
    %3025 = vmatpush.msra.mxu0 %v2181
    %3026 = vmatpush.msra.mxu0 %v2177
    %3027 = vmatpush.msra.mxu0 %v2173
    %3028 = vmatpush.msra.mxu0 %v2169
    %3029 = vmatmul.f32.gmra.mxu0 %v2950
    %v3030 = vpop.f32.mrf.mxu0
    %v3031 = vadd.f32 0.0, %v3030
    %3032 = vdwg.mxu0
    %v3037 = vrot.slane %v2991, 6
    %v3038 = vrot.slane %v3011, 4
    %v3039 = vrot.slane %v3031, 2
    %v3040 = vsel %vm557, %v2971, %v3037
    %v3041 = vsel %vm559, %v3038, %v3039
    %v3042 = vsel %vm561, %v3040, %v3041
    %v3044 = vadd.f32 %v2952, %v3042
    %v3045 = vxor.u32 %v3044, 2147483648
    %v3046 = vmul.f32 %v3045, 1.442695
    %v3047 = vpow.pop %v3046
    %v3048 = vadd.f32 %v3047, 1.0
    %v3049 = vrcp.pop %v3048
    %v3050 = vmul.f32 %v3048, %v3049
    %v3051 = vsub.f32 1.0, %v3050
    %v3052 = vmul.f32 %v3049, %v3051
    %v3053 = vadd.f32 %v3049, %v3052
    %vm3054 = vweird.f32 %v3048
    %vm3055 = vweird.f32 %v3049
    %vm3056 = vmor %vm3054, %vm3055
    %v3057 = vsel %vm3056, %v3049, %v3053
    %v3058 = vand.u32 2147483647, %v3048
    %vm3059 = vcmp.eq.f32.partialorder %v3058, 8.507059e+37
    %v3060 = vand.u32 %v3048, 2147483648
    %v3061 = vor.u32 1.1754944e-38, %v3060
    %v3062 = vsel %vm3059, %v3061, %v3057
    %v3063 = vmul.f32 1.0, %v3062
    %v3065 = vrot.slane %v3044, 2
    %v3067 = vxor.u32 %v3065, 2147483648
    %v3068 = vmul.f32 %v3067, 1.442695
    %v3069 = vpow.pop %v3068
    %v3070 = vadd.f32 %v3069, 1.0
    %v3071 = vrcp.pop %v3070
    %v3072 = vmul.f32 %v3070, %v3071
    %v3073 = vsub.f32 1.0, %v3072
    %v3074 = vmul.f32 %v3071, %v3073
    %v3075 = vadd.f32 %v3071, %v3074
    %vm3076 = vweird.f32 %v3070
    %vm3077 = vweird.f32 %v3071
    %vm3078 = vmor %vm3076, %vm3077
    %v3079 = vsel %vm3078, %v3071, %v3075
    %v3080 = vand.u32 2147483647, %v3070
    %vm3081 = vcmp.eq.f32.partialorder %v3080, 8.507059e+37
    %v3082 = vand.u32 %v3070, 2147483648
    %v3083 = vor.u32 1.1754944e-38, %v3082
    %v3084 = vsel %vm3081, %v3083, %v3079
    %v3085 = vmul.f32 1.0, %v3084
    %v3086 = vrot.slane %v3044, 4
    %v3088 = vtanh.pop %v3086
    %v3089 = vrot.slane %v3044, 6
    %v3091 = vxor.u32 %v3089, 2147483648
    %v3092 = vmul.f32 %v3091, 1.442695
    %v3093 = vpow.pop %v3092
    %v3094 = vadd.f32 %v3093, 1.0
    %v3095 = vrcp.pop %v3094
    %v3096 = vmul.f32 %v3094, %v3095
    %v3097 = vsub.f32 1.0, %v3096
    %v3098 = vmul.f32 %v3095, %v3097
    %v3099 = vadd.f32 %v3095, %v3098
    %vm3100 = vweird.f32 %v3094
    %vm3101 = vweird.f32 %v3095
    %vm3102 = vmor %vm3100, %vm3101
    %v3103 = vsel %vm3102, %v3095, %v3099
    %v3104 = vand.u32 2147483647, %v3094
    %vm3105 = vcmp.eq.f32.partialorder %v3104, 8.507059e+37
    %v3106 = vand.u32 %v3094, 2147483648
    %v3107 = vor.u32 1.1754944e-38, %v3106
    %v3108 = vsel %vm3105, %v3107, %v3103
    %v3109 = vmul.f32 1.0, %v3108
    %v3110 = vmul.f32 %v3085, %v2948
    %v3111 = vmul.f32 %v3063, %v3088
    %v3112 = vadd.f32 %v3110, %v3111
    %v3113 = vtanh.pop %v3112
    %v3114 = vmul.f32 %v3109, %v3113
    %3115 = vst [vmem:[%s1436] sm:$0x3] %v3114
    %v3116 = vld [vmem:[%s1438] sm:$0xff]
    %3117 = vmatpush.msra.mxu0 %v2226
    %3118 = vmatpush.msra.mxu0 %v2222
    %3119 = vmatpush.msra.mxu0 %v2218
    %3120 = vmatpush.msra.mxu0 %v2214
    %3121 = vmatpush.msra.mxu0 %v2210
    %3122 = vmatpush.msra.mxu0 %v2206
    %3123 = vmatpush.msra.mxu0 %v2202
    %3124 = vmatpush.msra.mxu0 %v2198
    %3125 = vmatpush.msra.mxu0 %v2194
    %3126 = vmatpush.msra.mxu0 %v2190
    %3127 = vmatpush.msra.mxu0 %v2186
    %3128 = vmatpush.msra.mxu0 %v2182
    %3129 = vmatpush.msra.mxu0 %v2178
    %3130 = vmatpush.msra.mxu0 %v2174
    %3131 = vmatpush.msra.mxu0 %v2170
    %3132 = vmatpush.msra.mxu0 %v2166
    %3133 = vmatmul.f32.gmra.mxu0 %v3114
    %v3134 = vpop.f32.mrf.mxu0
    %v3135 = vadd.f32 0.0, %v3134
    %3136 = vdwg.mxu0
    %3137 = vmatpush.msra.mxu0 %v2227
    %3138 = vmatpush.msra.mxu0 %v2223
    %3139 = vmatpush.msra.mxu0 %v2219
    %3140 = vmatpush.msra.mxu0 %v2215
    %3141 = vmatpush.msra.mxu0 %v2211
    %3142 = vmatpush.msra.mxu0 %v2207
    %3143 = vmatpush.msra.mxu0 %v2203
    %3144 = vmatpush.msra.mxu0 %v2199
    %3145 = vmatpush.msra.mxu0 %v2195
    %3146 = vmatpush.msra.mxu0 %v2191
    %3147 = vmatpush.msra.mxu0 %v2187
    %3148 = vmatpush.msra.mxu0 %v2183
    %3149 = vmatpush.msra.mxu0 %v2179
    %3150 = vmatpush.msra.mxu0 %v2175
    %3151 = vmatpush.msra.mxu0 %v2171
    %3152 = vmatpush.msra.mxu0 %v2167
    %3153 = vmatmul.f32.gmra.mxu0 %v3114
    %v3154 = vpop.f32.mrf.mxu0
    %v3155 = vadd.f32 0.0, %v3154
    %3156 = vdwg.mxu0
    %3157 = vmatpush.msra.mxu0 %v2228
    %3158 = vmatpush.msra.mxu0 %v2224
    %3159 = vmatpush.msra.mxu0 %v2220
    %3160 = vmatpush.msra.mxu0 %v2216
    %3161 = vmatpush.msra.mxu0 %v2212
    %3162 = vmatpush.msra.mxu0 %v2208
    %3163 = vmatpush.msra.mxu0 %v2204
    %3164 = vmatpush.msra.mxu0 %v2200
    %3165 = vmatpush.msra.mxu0 %v2196
    %3166 = vmatpush.msra.mxu0 %v2192
    %3167 = vmatpush.msra.mxu0 %v2188
    %3168 = vmatpush.msra.mxu0 %v2184
    %3169 = vmatpush.msra.mxu0 %v2180
    %3170 = vmatpush.msra.mxu0 %v2176
    %3171 = vmatpush.msra.mxu0 %v2172
    %3172 = vmatpush.msra.mxu0 %v2168
    %3173 = vmatmul.f32.gmra.mxu0 %v3114
    %v3174 = vpop.f32.mrf.mxu0
    %v3175 = vadd.f32 0.0, %v3174
    %3176 = vdwg.mxu0
    %3177 = vmatpush.msra.mxu0 %v2229
    %3178 = vmatpush.msra.mxu0 %v2225
    %3179 = vmatpush.msra.mxu0 %v2221
    %3180 = vmatpush.msra.mxu0 %v2217
    %3181 = vmatpush.msra.mxu0 %v2213
    %3182 = vmatpush.msra.mxu0 %v2209
    %3183 = vmatpush.msra.mxu0 %v2205
    %3184 = vmatpush.msra.mxu0 %v2201
    %3185 = vmatpush.msra.mxu0 %v2197
    %3186 = vmatpush.msra.mxu0 %v2193
    %3187 = vmatpush.msra.mxu0 %v2189
    %3188 = vmatpush.msra.mxu0 %v2185
    %3189 = vmatpush.msra.mxu0 %v2181
    %3190 = vmatpush.msra.mxu0 %v2177
    %3191 = vmatpush.msra.mxu0 %v2173
    %3192 = vmatpush.msra.mxu0 %v2169
    %3193 = vmatmul.f32.gmra.mxu0 %v3114
    %v3194 = vpop.f32.mrf.mxu0
    %v3195 = vadd.f32 0.0, %v3194
    %3196 = vdwg.mxu0
    %v3201 = vrot.slane %v3155, 6
    %v3202 = vrot.slane %v3175, 4
    %v3203 = vrot.slane %v3195, 2
    %v3204 = vsel %vm557, %v3135, %v3201
    %v3205 = vsel %vm559, %v3202, %v3203
    %v3206 = vsel %vm561, %v3204, %v3205
    %v3208 = vadd.f32 %v3116, %v3206
    %v3209 = vxor.u32 %v3208, 2147483648
    %v3210 = vmul.f32 %v3209, 1.442695
    %v3211 = vpow.pop %v3210
    %v3212 = vadd.f32 %v3211, 1.0
    %v3213 = vrcp.pop %v3212
    %v3214 = vmul.f32 %v3212, %v3213
    %v3215 = vsub.f32 1.0, %v3214
    %v3216 = vmul.f32 %v3213, %v3215
    %v3217 = vadd.f32 %v3213, %v3216
    %vm3218 = vweird.f32 %v3212
    %vm3219 = vweird.f32 %v3213
    %vm3220 = vmor %vm3218, %vm3219
    %v3221 = vsel %vm3220, %v3213, %v3217
    %v3222 = vand.u32 2147483647, %v3212
    %vm3223 = vcmp.eq.f32.partialorder %v3222, 8.507059e+37
    %v3224 = vand.u32 %v3212, 2147483648
    %v3225 = vor.u32 1.1754944e-38, %v3224
    %v3226 = vsel %vm3223, %v3225, %v3221
    %v3227 = vmul.f32 1.0, %v3226
    %v3229 = vrot.slane %v3208, 2
    %v3231 = vxor.u32 %v3229, 2147483648
    %v3232 = vmul.f32 %v3231, 1.442695
    %v3233 = vpow.pop %v3232
    %v3234 = vadd.f32 %v3233, 1.0
    %v3235 = vrcp.pop %v3234
    %v3236 = vmul.f32 %v3234, %v3235
    %v3237 = vsub.f32 1.0, %v3236
    %v3238 = vmul.f32 %v3235, %v3237
    %v3239 = vadd.f32 %v3235, %v3238
    %vm3240 = vweird.f32 %v3234
    %vm3241 = vweird.f32 %v3235
    %vm3242 = vmor %vm3240, %vm3241
    %v3243 = vsel %vm3242, %v3235, %v3239
    %v3244 = vand.u32 2147483647, %v3234
    %vm3245 = vcmp.eq.f32.partialorder %v3244, 8.507059e+37
    %v3246 = vand.u32 %v3234, 2147483648
    %v3247 = vor.u32 1.1754944e-38, %v3246
    %v3248 = vsel %vm3245, %v3247, %v3243
    %v3249 = vmul.f32 1.0, %v3248
    %v3250 = vrot.slane %v3208, 4
    %v3252 = vtanh.pop %v3250
    %v3253 = vrot.slane %v3208, 6
    %v3255 = vxor.u32 %v3253, 2147483648
    %v3256 = vmul.f32 %v3255, 1.442695
    %v3257 = vpow.pop %v3256
    %v3258 = vadd.f32 %v3257, 1.0
    %v3259 = vrcp.pop %v3258
    %v3260 = vmul.f32 %v3258, %v3259
    %v3261 = vsub.f32 1.0, %v3260
    %v3262 = vmul.f32 %v3259, %v3261
    %v3263 = vadd.f32 %v3259, %v3262
    %vm3264 = vweird.f32 %v3258
    %vm3265 = vweird.f32 %v3259
    %vm3266 = vmor %vm3264, %vm3265
    %v3267 = vsel %vm3266, %v3259, %v3263
    %v3268 = vand.u32 2147483647, %v3258
    %vm3269 = vcmp.eq.f32.partialorder %v3268, 8.507059e+37
    %v3270 = vand.u32 %v3258, 2147483648
    %v3271 = vor.u32 1.1754944e-38, %v3270
    %v3272 = vsel %vm3269, %v3271, %v3267
    %v3273 = vmul.f32 1.0, %v3272
    %v3274 = vmul.f32 %v3249, %v3112
    %v3275 = vmul.f32 %v3227, %v3252
    %v3276 = vadd.f32 %v3274, %v3275
    %v3277 = vtanh.pop %v3276
    %v3278 = vmul.f32 %v3273, %v3277
    %3279 = vst [vmem:[%s1602] sm:$0x3] %v3278
    %v3280 = vld [vmem:[%s1604] sm:$0xff]
    %3281 = vmatpush.msra.mxu0 %v2226
    %3282 = vmatpush.msra.mxu0 %v2222
    %3283 = vmatpush.msra.mxu0 %v2218
    %3284 = vmatpush.msra.mxu0 %v2214
    %3285 = vmatpush.msra.mxu0 %v2210
    %3286 = vmatpush.msra.mxu0 %v2206
    %3287 = vmatpush.msra.mxu0 %v2202
    %3288 = vmatpush.msra.mxu0 %v2198
    %3289 = vmatpush.msra.mxu0 %v2194
    %3290 = vmatpush.msra.mxu0 %v2190
    %3291 = vmatpush.msra.mxu0 %v2186
    %3292 = vmatpush.msra.mxu0 %v2182
    %3293 = vmatpush.msra.mxu0 %v2178
    %3294 = vmatpush.msra.mxu0 %v2174
    %3295 = vmatpush.msra.mxu0 %v2170
    %3296 = vmatpush.msra.mxu0 %v2166
    %3297 = vmatmul.f32.gmra.mxu0 %v3278
    %v3298 = vpop.f32.mrf.mxu0
    %v3299 = vadd.f32 0.0, %v3298
    %3300 = vdwg.mxu0
    %3301 = vmatpush.msra.mxu0 %v2227
    %3302 = vmatpush.msra.mxu0 %v2223
    %3303 = vmatpush.msra.mxu0 %v2219
    %3304 = vmatpush.msra.mxu0 %v2215
    %3305 = vmatpush.msra.mxu0 %v2211
    %3306 = vmatpush.msra.mxu0 %v2207
    %3307 = vmatpush.msra.mxu0 %v2203
    %3308 = vmatpush.msra.mxu0 %v2199
    %3309 = vmatpush.msra.mxu0 %v2195
    %3310 = vmatpush.msra.mxu0 %v2191
    %3311 = vmatpush.msra.mxu0 %v2187
    %3312 = vmatpush.msra.mxu0 %v2183
    %3313 = vmatpush.msra.mxu0 %v2179
    %3314 = vmatpush.msra.mxu0 %v2175
    %3315 = vmatpush.msra.mxu0 %v2171
    %3316 = vmatpush.msra.mxu0 %v2167
    %3317 = vmatmul.f32.gmra.mxu0 %v3278
    %v3318 = vpop.f32.mrf.mxu0
    %v3319 = vadd.f32 0.0, %v3318
    %3320 = vdwg.mxu0
    %3321 = vmatpush.msra.mxu0 %v2228
    %3322 = vmatpush.msra.mxu0 %v2224
    %3323 = vmatpush.msra.mxu0 %v2220
    %3324 = vmatpush.msra.mxu0 %v2216
    %3325 = vmatpush.msra.mxu0 %v2212
    %3326 = vmatpush.msra.mxu0 %v2208
    %3327 = vmatpush.msra.mxu0 %v2204
    %3328 = vmatpush.msra.mxu0 %v2200
    %3329 = vmatpush.msra.mxu0 %v2196
    %3330 = vmatpush.msra.mxu0 %v2192
    %3331 = vmatpush.msra.mxu0 %v2188
    %3332 = vmatpush.msra.mxu0 %v2184
    %3333 = vmatpush.msra.mxu0 %v2180
    %3334 = vmatpush.msra.mxu0 %v2176
    %3335 = vmatpush.msra.mxu0 %v2172
    %3336 = vmatpush.msra.mxu0 %v2168
    %3337 = vmatmul.f32.gmra.mxu0 %v3278
    %v3338 = vpop.f32.mrf.mxu0
    %v3339 = vadd.f32 0.0, %v3338
    %3340 = vdwg.mxu0
    %3341 = vmatpush.msra.mxu0 %v2229
    %3342 = vmatpush.msra.mxu0 %v2225
    %3343 = vmatpush.msra.mxu0 %v2221
    %3344 = vmatpush.msra.mxu0 %v2217
    %3345 = vmatpush.msra.mxu0 %v2213
    %3346 = vmatpush.msra.mxu0 %v2209
    %3347 = vmatpush.msra.mxu0 %v2205
    %3348 = vmatpush.msra.mxu0 %v2201
    %3349 = vmatpush.msra.mxu0 %v2197
    %3350 = vmatpush.msra.mxu0 %v2193
    %3351 = vmatpush.msra.mxu0 %v2189
    %3352 = vmatpush.msra.mxu0 %v2185
    %3353 = vmatpush.msra.mxu0 %v2181
    %3354 = vmatpush.msra.mxu0 %v2177
    %3355 = vmatpush.msra.mxu0 %v2173
    %3356 = vmatpush.msra.mxu0 %v2169
    %3357 = vmatmul.f32.gmra.mxu0 %v3278
    %v3358 = vpop.f32.mrf.mxu0
    %v3359 = vadd.f32 0.0, %v3358
    %3360 = vdwg.mxu0
    %v3365 = vrot.slane %v3319, 6
    %v3366 = vrot.slane %v3339, 4
    %v3367 = vrot.slane %v3359, 2
    %v3368 = vsel %vm557, %v3299, %v3365
    %v3369 = vsel %vm559, %v3366, %v3367
    %v3370 = vsel %vm561, %v3368, %v3369
    %v3372 = vadd.f32 %v3280, %v3370
    %v3373 = vxor.u32 %v3372, 2147483648
    %v3374 = vmul.f32 %v3373, 1.442695
    %v3375 = vpow.pop %v3374
    %v3376 = vadd.f32 %v3375, 1.0
    %v3377 = vrcp.pop %v3376
    %v3378 = vmul.f32 %v3376, %v3377
    %v3379 = vsub.f32 1.0, %v3378
    %v3380 = vmul.f32 %v3377, %v3379
    %v3381 = vadd.f32 %v3377, %v3380
    %vm3382 = vweird.f32 %v3376
    %vm3383 = vweird.f32 %v3377
    %vm3384 = vmor %vm3382, %vm3383
    %v3385 = vsel %vm3384, %v3377, %v3381
    %v3386 = vand.u32 2147483647, %v3376
    %vm3387 = vcmp.eq.f32.partialorder %v3386, 8.507059e+37
    %v3388 = vand.u32 %v3376, 2147483648
    %v3389 = vor.u32 1.1754944e-38, %v3388
    %v3390 = vsel %vm3387, %v3389, %v3385
    %v3391 = vmul.f32 1.0, %v3390
    %v3393 = vrot.slane %v3372, 2
    %v3395 = vxor.u32 %v3393, 2147483648
    %v3396 = vmul.f32 %v3395, 1.442695
    %v3397 = vpow.pop %v3396
    %v3398 = vadd.f32 %v3397, 1.0
    %v3399 = vrcp.pop %v3398
    %v3400 = vmul.f32 %v3398, %v3399
    %v3401 = vsub.f32 1.0, %v3400
    %v3402 = vmul.f32 %v3399, %v3401
    %v3403 = vadd.f32 %v3399, %v3402
    %vm3404 = vweird.f32 %v3398
    %vm3405 = vweird.f32 %v3399
    %vm3406 = vmor %vm3404, %vm3405
    %v3407 = vsel %vm3406, %v3399, %v3403
    %v3408 = vand.u32 2147483647, %v3398
    %vm3409 = vcmp.eq.f32.partialorder %v3408, 8.507059e+37
    %v3410 = vand.u32 %v3398, 2147483648
    %v3411 = vor.u32 1.1754944e-38, %v3410
    %v3412 = vsel %vm3409, %v3411, %v3407
    %v3413 = vmul.f32 1.0, %v3412
    %v3414 = vrot.slane %v3372, 4
    %v3416 = vtanh.pop %v3414
    %v3417 = vrot.slane %v3372, 6
    %v3419 = vxor.u32 %v3417, 2147483648
    %v3420 = vmul.f32 %v3419, 1.442695
    %v3421 = vpow.pop %v3420
    %v3422 = vadd.f32 %v3421, 1.0
    %v3423 = vrcp.pop %v3422
    %v3424 = vmul.f32 %v3422, %v3423
    %v3425 = vsub.f32 1.0, %v3424
    %v3426 = vmul.f32 %v3423, %v3425
    %v3427 = vadd.f32 %v3423, %v3426
    %vm3428 = vweird.f32 %v3422
    %vm3429 = vweird.f32 %v3423
    %vm3430 = vmor %vm3428, %vm3429
    %v3431 = vsel %vm3430, %v3423, %v3427
    %v3432 = vand.u32 2147483647, %v3422
    %vm3433 = vcmp.eq.f32.partialorder %v3432, 8.507059e+37
    %v3434 = vand.u32 %v3422, 2147483648
    %v3435 = vor.u32 1.1754944e-38, %v3434
    %v3436 = vsel %vm3433, %v3435, %v3431
    %v3437 = vmul.f32 1.0, %v3436
    %v3438 = vmul.f32 %v3413, %v3276
    %v3439 = vmul.f32 %v3391, %v3416
    %v3440 = vadd.f32 %v3438, %v3439
    %v3441 = vtanh.pop %v3440
    %v3442 = vmul.f32 %v3437, %v3441
    %3443 = vst [vmem:[%s1768] sm:$0x3] %v3442
    %v3444 = vld [vmem:[%s1770] sm:$0xff]
    %3445 = vmatpush.msra.mxu0 %v2226
    %3446 = vmatpush.msra.mxu0 %v2222
    %3447 = vmatpush.msra.mxu0 %v2218
    %3448 = vmatpush.msra.mxu0 %v2214
    %3449 = vmatpush.msra.mxu0 %v2210
    %3450 = vmatpush.msra.mxu0 %v2206
    %3451 = vmatpush.msra.mxu0 %v2202
    %3452 = vmatpush.msra.mxu0 %v2198
    %3453 = vmatpush.msra.mxu0 %v2194
    %3454 = vmatpush.msra.mxu0 %v2190
    %3455 = vmatpush.msra.mxu0 %v2186
    %3456 = vmatpush.msra.mxu0 %v2182
    %3457 = vmatpush.msra.mxu0 %v2178
    %3458 = vmatpush.msra.mxu0 %v2174
    %3459 = vmatpush.msra.mxu0 %v2170
    %3460 = vmatpush.msra.mxu0 %v2166
    %3461 = vmatmul.f32.gmra.mxu0 %v3442
    %v3462 = vpop.f32.mrf.mxu0
    %v3463 = vadd.f32 0.0, %v3462
    %3464 = vdwg.mxu0
    %3465 = vmatpush.msra.mxu0 %v2227
    %3466 = vmatpush.msra.mxu0 %v2223
    %3467 = vmatpush.msra.mxu0 %v2219
    %3468 = vmatpush.msra.mxu0 %v2215
    %3469 = vmatpush.msra.mxu0 %v2211
    %3470 = vmatpush.msra.mxu0 %v2207
    %3471 = vmatpush.msra.mxu0 %v2203
    %3472 = vmatpush.msra.mxu0 %v2199
    %3473 = vmatpush.msra.mxu0 %v2195
    %3474 = vmatpush.msra.mxu0 %v2191
    %3475 = vmatpush.msra.mxu0 %v2187
    %3476 = vmatpush.msra.mxu0 %v2183
    %3477 = vmatpush.msra.mxu0 %v2179
    %3478 = vmatpush.msra.mxu0 %v2175
    %3479 = vmatpush.msra.mxu0 %v2171
    %3480 = vmatpush.msra.mxu0 %v2167
    %3481 = vmatmul.f32.gmra.mxu0 %v3442
    %v3482 = vpop.f32.mrf.mxu0
    %v3483 = vadd.f32 0.0, %v3482
    %3484 = vdwg.mxu0
    %3485 = vmatpush.msra.mxu0 %v2228
    %3486 = vmatpush.msra.mxu0 %v2224
    %3487 = vmatpush.msra.mxu0 %v2220
    %3488 = vmatpush.msra.mxu0 %v2216
    %3489 = vmatpush.msra.mxu0 %v2212
    %3490 = vmatpush.msra.mxu0 %v2208
    %3491 = vmatpush.msra.mxu0 %v2204
    %3492 = vmatpush.msra.mxu0 %v2200
    %3493 = vmatpush.msra.mxu0 %v2196
    %3494 = vmatpush.msra.mxu0 %v2192
    %3495 = vmatpush.msra.mxu0 %v2188
    %3496 = vmatpush.msra.mxu0 %v2184
    %3497 = vmatpush.msra.mxu0 %v2180
    %3498 = vmatpush.msra.mxu0 %v2176
    %3499 = vmatpush.msra.mxu0 %v2172
    %3500 = vmatpush.msra.mxu0 %v2168
    %3501 = vmatmul.f32.gmra.mxu0 %v3442
    %v3502 = vpop.f32.mrf.mxu0
    %v3503 = vadd.f32 0.0, %v3502
    %3504 = vdwg.mxu0
    %3505 = vmatpush.msra.mxu0 %v2229
    %3506 = vmatpush.msra.mxu0 %v2225
    %3507 = vmatpush.msra.mxu0 %v2221
    %3508 = vmatpush.msra.mxu0 %v2217
    %3509 = vmatpush.msra.mxu0 %v2213
    %3510 = vmatpush.msra.mxu0 %v2209
    %3511 = vmatpush.msra.mxu0 %v2205
    %3512 = vmatpush.msra.mxu0 %v2201
    %3513 = vmatpush.msra.mxu0 %v2197
    %3514 = vmatpush.msra.mxu0 %v2193
    %3515 = vmatpush.msra.mxu0 %v2189
    %3516 = vmatpush.msra.mxu0 %v2185
    %3517 = vmatpush.msra.mxu0 %v2181
    %3518 = vmatpush.msra.mxu0 %v2177
    %3519 = vmatpush.msra.mxu0 %v2173
    %3520 = vmatpush.msra.mxu0 %v2169
    %3521 = vmatmul.f32.gmra.mxu0 %v3442
    %v3522 = vpop.f32.mrf.mxu0
    %v3523 = vadd.f32 0.0, %v3522
    %3524 = vdwg.mxu0
    %v3529 = vrot.slane %v3483, 6
    %v3530 = vrot.slane %v3503, 4
    %v3531 = vrot.slane %v3523, 2
    %v3532 = vsel %vm557, %v3463, %v3529
    %v3533 = vsel %vm559, %v3530, %v3531
    %v3534 = vsel %vm561, %v3532, %v3533
    %v3536 = vadd.f32 %v3444, %v3534
    %v3537 = vxor.u32 %v3536, 2147483648
    %v3538 = vmul.f32 %v3537, 1.442695
    %v3539 = vpow.pop %v3538
    %v3540 = vadd.f32 %v3539, 1.0
    %v3541 = vrcp.pop %v3540
    %v3542 = vmul.f32 %v3540, %v3541
    %v3543 = vsub.f32 1.0, %v3542
    %v3544 = vmul.f32 %v3541, %v3543
    %v3545 = vadd.f32 %v3541, %v3544
    %vm3546 = vweird.f32 %v3540
    %vm3547 = vweird.f32 %v3541
    %vm3548 = vmor %vm3546, %vm3547
    %v3549 = vsel %vm3548, %v3541, %v3545
    %v3550 = vand.u32 2147483647, %v3540
    %vm3551 = vcmp.eq.f32.partialorder %v3550, 8.507059e+37
    %v3552 = vand.u32 %v3540, 2147483648
    %v3553 = vor.u32 1.1754944e-38, %v3552
    %v3554 = vsel %vm3551, %v3553, %v3549
    %v3555 = vmul.f32 1.0, %v3554
    %v3557 = vrot.slane %v3536, 2
    %v3559 = vxor.u32 %v3557, 2147483648
    %v3560 = vmul.f32 %v3559, 1.442695
    %v3561 = vpow.pop %v3560
    %v3562 = vadd.f32 %v3561, 1.0
    %v3563 = vrcp.pop %v3562
    %v3564 = vmul.f32 %v3562, %v3563
    %v3565 = vsub.f32 1.0, %v3564
    %v3566 = vmul.f32 %v3563, %v3565
    %v3567 = vadd.f32 %v3563, %v3566
    %vm3568 = vweird.f32 %v3562
    %vm3569 = vweird.f32 %v3563
    %vm3570 = vmor %vm3568, %vm3569
    %v3571 = vsel %vm3570, %v3563, %v3567
    %v3572 = vand.u32 2147483647, %v3562
    %vm3573 = vcmp.eq.f32.partialorder %v3572, 8.507059e+37
    %v3574 = vand.u32 %v3562, 2147483648
    %v3575 = vor.u32 1.1754944e-38, %v3574
    %v3576 = vsel %vm3573, %v3575, %v3571
    %v3577 = vmul.f32 1.0, %v3576
    %v3578 = vrot.slane %v3536, 4
    %v3580 = vtanh.pop %v3578
    %v3581 = vrot.slane %v3536, 6
    %v3583 = vxor.u32 %v3581, 2147483648
    %v3584 = vmul.f32 %v3583, 1.442695
    %v3585 = vpow.pop %v3584
    %v3586 = vadd.f32 %v3585, 1.0
    %v3587 = vrcp.pop %v3586
    %v3588 = vmul.f32 %v3586, %v3587
    %v3589 = vsub.f32 1.0, %v3588
    %v3590 = vmul.f32 %v3587, %v3589
    %v3591 = vadd.f32 %v3587, %v3590
    %vm3592 = vweird.f32 %v3586
    %vm3593 = vweird.f32 %v3587
    %vm3594 = vmor %vm3592, %vm3593
    %v3595 = vsel %vm3594, %v3587, %v3591
    %v3596 = vand.u32 2147483647, %v3586
    %vm3597 = vcmp.eq.f32.partialorder %v3596, 8.507059e+37
    %v3598 = vand.u32 %v3586, 2147483648
    %v3599 = vor.u32 1.1754944e-38, %v3598
    %v3600 = vsel %vm3597, %v3599, %v3595
    %v3601 = vmul.f32 1.0, %v3600
    %v3602 = vmul.f32 %v3577, %v3440
    %v3603 = vmul.f32 %v3555, %v3580
    %v3604 = vadd.f32 %v3602, %v3603
    %v3605 = vtanh.pop %v3604
    %v3606 = vmul.f32 %v3601, %v3605
    %3607 = vst [vmem:[%s1934] sm:$0x3] %v3606
    %v3608 = vld [vmem:[%s1936] sm:$0xff]
    %3609 = vmatpush.msra.mxu0 %v2226
    %3610 = vmatpush.msra.mxu0 %v2222
    %3611 = vmatpush.msra.mxu0 %v2218
    %3612 = vmatpush.msra.mxu0 %v2214
    %3613 = vmatpush.msra.mxu0 %v2210
    %3614 = vmatpush.msra.mxu0 %v2206
    %3615 = vmatpush.msra.mxu0 %v2202
    %3616 = vmatpush.msra.mxu0 %v2198
    %3617 = vmatpush.msra.mxu0 %v2194
    %3618 = vmatpush.msra.mxu0 %v2190
    %3619 = vmatpush.msra.mxu0 %v2186
    %3620 = vmatpush.msra.mxu0 %v2182
    %3621 = vmatpush.msra.mxu0 %v2178
    %3622 = vmatpush.msra.mxu0 %v2174
    %3623 = vmatpush.msra.mxu0 %v2170
    %3624 = vmatpush.msra.mxu0 %v2166
    %3625 = vmatmul.f32.gmra.mxu0 %v3606
    %v3626 = vpop.f32.mrf.mxu0
    %v3627 = vadd.f32 0.0, %v3626
    %3628 = vdwg.mxu0
    %3629 = vmatpush.msra.mxu0 %v2227
    %3630 = vmatpush.msra.mxu0 %v2223
    %3631 = vmatpush.msra.mxu0 %v2219
    %3632 = vmatpush.msra.mxu0 %v2215
    %3633 = vmatpush.msra.mxu0 %v2211
    %3634 = vmatpush.msra.mxu0 %v2207
    %3635 = vmatpush.msra.mxu0 %v2203
    %3636 = vmatpush.msra.mxu0 %v2199
    %3637 = vmatpush.msra.mxu0 %v2195
    %3638 = vmatpush.msra.mxu0 %v2191
    %3639 = vmatpush.msra.mxu0 %v2187
    %3640 = vmatpush.msra.mxu0 %v2183
    %3641 = vmatpush.msra.mxu0 %v2179
    %3642 = vmatpush.msra.mxu0 %v2175
    %3643 = vmatpush.msra.mxu0 %v2171
    %3644 = vmatpush.msra.mxu0 %v2167
    %3645 = vmatmul.f32.gmra.mxu0 %v3606
    %v3646 = vpop.f32.mrf.mxu0
    %v3647 = vadd.f32 0.0, %v3646
    %3648 = vdwg.mxu0
    %3649 = vmatpush.msra.mxu0 %v2228
    %3650 = vmatpush.msra.mxu0 %v2224
    %3651 = vmatpush.msra.mxu0 %v2220
    %3652 = vmatpush.msra.mxu0 %v2216
    %3653 = vmatpush.msra.mxu0 %v2212
    %3654 = vmatpush.msra.mxu0 %v2208
    %3655 = vmatpush.msra.mxu0 %v2204
    %3656 = vmatpush.msra.mxu0 %v2200
    %3657 = vmatpush.msra.mxu0 %v2196
    %3658 = vmatpush.msra.mxu0 %v2192
    %3659 = vmatpush.msra.mxu0 %v2188
    %3660 = vmatpush.msra.mxu0 %v2184
    %3661 = vmatpush.msra.mxu0 %v2180
    %3662 = vmatpush.msra.mxu0 %v2176
    %3663 = vmatpush.msra.mxu0 %v2172
    %3664 = vmatpush.msra.mxu0 %v2168
    %3665 = vmatmul.f32.gmra.mxu0 %v3606
    %v3666 = vpop.f32.mrf.mxu0
    %v3667 = vadd.f32 0.0, %v3666
    %3668 = vdwg.mxu0
    %3669 = vmatpush.msra.mxu0 %v2229
    %3670 = vmatpush.msra.mxu0 %v2225
    %3671 = vmatpush.msra.mxu0 %v2221
    %3672 = vmatpush.msra.mxu0 %v2217
    %3673 = vmatpush.msra.mxu0 %v2213
    %3674 = vmatpush.msra.mxu0 %v2209
    %3675 = vmatpush.msra.mxu0 %v2205
    %3676 = vmatpush.msra.mxu0 %v2201
    %3677 = vmatpush.msra.mxu0 %v2197
    %3678 = vmatpush.msra.mxu0 %v2193
    %3679 = vmatpush.msra.mxu0 %v2189
    %3680 = vmatpush.msra.mxu0 %v2185
    %3681 = vmatpush.msra.mxu0 %v2181
    %3682 = vmatpush.msra.mxu0 %v2177
    %3683 = vmatpush.msra.mxu0 %v2173
    %3684 = vmatpush.msra.mxu0 %v2169
    %3685 = vmatmul.f32.gmra.mxu0 %v3606
    %v3686 = vpop.f32.mrf.mxu0
    %v3687 = vadd.f32 0.0, %v3686
    %3688 = vdwg.mxu0
    %v3693 = vrot.slane %v3647, 6
    %v3694 = vrot.slane %v3667, 4
    %v3695 = vrot.slane %v3687, 2
    %v3696 = vsel %vm557, %v3627, %v3693
    %v3697 = vsel %vm559, %v3694, %v3695
    %v3698 = vsel %vm561, %v3696, %v3697
    %v3700 = vadd.f32 %v3608, %v3698
    %v3701 = vxor.u32 %v3700, 2147483648
    %v3702 = vmul.f32 %v3701, 1.442695
    %v3703 = vpow.pop %v3702
    %v3704 = vadd.f32 %v3703, 1.0
    %v3705 = vrcp.pop %v3704
    %v3706 = vmul.f32 %v3704, %v3705
    %v3707 = vsub.f32 1.0, %v3706
    %v3708 = vmul.f32 %v3705, %v3707
    %v3709 = vadd.f32 %v3705, %v3708
    %vm3710 = vweird.f32 %v3704
    %vm3711 = vweird.f32 %v3705
    %vm3712 = vmor %vm3710, %vm3711
    %v3713 = vsel %vm3712, %v3705, %v3709
    %v3714 = vand.u32 2147483647, %v3704
    %vm3715 = vcmp.eq.f32.partialorder %v3714, 8.507059e+37
    %v3716 = vand.u32 %v3704, 2147483648
    %v3717 = vor.u32 1.1754944e-38, %v3716
    %v3718 = vsel %vm3715, %v3717, %v3713
    %v3719 = vmul.f32 1.0, %v3718
    %v3721 = vrot.slane %v3700, 2
    %v3723 = vxor.u32 %v3721, 2147483648
    %v3724 = vmul.f32 %v3723, 1.442695
    %v3725 = vpow.pop %v3724
    %v3726 = vadd.f32 %v3725, 1.0
    %v3727 = vrcp.pop %v3726
    %v3728 = vmul.f32 %v3726, %v3727
    %v3729 = vsub.f32 1.0, %v3728
    %v3730 = vmul.f32 %v3727, %v3729
    %v3731 = vadd.f32 %v3727, %v3730
    %vm3732 = vweird.f32 %v3726
    %vm3733 = vweird.f32 %v3727
    %vm3734 = vmor %vm3732, %vm3733
    %v3735 = vsel %vm3734, %v3727, %v3731
    %v3736 = vand.u32 2147483647, %v3726
    %vm3737 = vcmp.eq.f32.partialorder %v3736, 8.507059e+37
    %v3738 = vand.u32 %v3726, 2147483648
    %v3739 = vor.u32 1.1754944e-38, %v3738
    %v3740 = vsel %vm3737, %v3739, %v3735
    %v3741 = vmul.f32 1.0, %v3740
    %v3742 = vrot.slane %v3700, 4
    %v3744 = vtanh.pop %v3742
    %v3745 = vrot.slane %v3700, 6
    %v3747 = vxor.u32 %v3745, 2147483648
    %v3748 = vmul.f32 %v3747, 1.442695
    %v3749 = vpow.pop %v3748
    %v3750 = vadd.f32 %v3749, 1.0
    %v3751 = vrcp.pop %v3750
    %v3752 = vmul.f32 %v3750, %v3751
    %v3753 = vsub.f32 1.0, %v3752
    %v3754 = vmul.f32 %v3751, %v3753
    %v3755 = vadd.f32 %v3751, %v3754
    %vm3756 = vweird.f32 %v3750
    %vm3757 = vweird.f32 %v3751
    %vm3758 = vmor %vm3756, %vm3757
    %v3759 = vsel %vm3758, %v3751, %v3755
    %v3760 = vand.u32 2147483647, %v3750
    %vm3761 = vcmp.eq.f32.partialorder %v3760, 8.507059e+37
    %v3762 = vand.u32 %v3750, 2147483648
    %v3763 = vor.u32 1.1754944e-38, %v3762
    %v3764 = vsel %vm3761, %v3763, %v3759
    %v3765 = vmul.f32 1.0, %v3764
    %v3766 = vmul.f32 %v3741, %v3604
    %v3767 = vmul.f32 %v3719, %v3744
    %v3768 = vadd.f32 %v3766, %v3767
    %v3769 = vtanh.pop %v3768
    %v3770 = vmul.f32 %v3765, %v3769
    %3771 = vst [vmem:[%s2100] sm:$0x3] %v3770
    %v3772 = vld [vmem:[#allocation2] sm:$0x3]
    %v3773 = vld [vmem:[#allocation2 + $0x2] sm:$0x3]
    %v3774 = vld [vmem:[#allocation2 + $0x4] sm:$0x3]
    %v3775 = vld [vmem:[#allocation2 + $0x6] sm:$0x3]
    %v3776 = vld [vmem:[#allocation2 + $0x8] sm:$0x3]
    %v3777 = vld [vmem:[#allocation2 + $0xa] sm:$0x3]
    %v3778 = vld [vmem:[#allocation2 + $0xc] sm:$0x3]
    %v3779 = vld [vmem:[#allocation2 + $0xe] sm:$0x3]
    %v3780 = vld [vmem:[#allocation24] sm:$0xff]
    %v3781 = vld [vmem:[#allocation24 + $0x8] sm:$0xff]
    %v3782 = vld [vmem:[#allocation24 + $0x10] sm:$0xff]
    %v3783 = vld [vmem:[#allocation24 + $0x18] sm:$0xff]
    %v3784 = vld [vmem:[#allocation24 + $0x20] sm:$0xff]
    %v3785 = vld [vmem:[#allocation24 + $0x28] sm:$0xff]
    %v3786 = vld [vmem:[#allocation24 + $0x30] sm:$0xff]
    %v3787 = vld [vmem:[#allocation24 + $0x38] sm:$0xff]
    %v3788 = vld [vmem:[#allocation24 + $0x40] sm:$0xff]
    %v3789 = vld [vmem:[#allocation24 + $0x48] sm:$0xff]
    %v3790 = vld [vmem:[#allocation24 + $0x50] sm:$0xff]
    %v3791 = vld [vmem:[#allocation24 + $0x58] sm:$0xff]
    %v3792 = vld [vmem:[#allocation24 + $0x60] sm:$0xff]
    %v3793 = vld [vmem:[#allocation24 + $0x68] sm:$0xff]
    %v3794 = vld [vmem:[#allocation24 + $0x70] sm:$0xff]
    %v3795 = vld [vmem:[#allocation24 + $0x78] sm:$0xff]
    %v3796 = vld [vmem:[%s15] sm:$0x1]
    %v3798 = vperm.slane %v3796, 0
    %3807 = vst [vmem:[#allocation1] ss:$4 sm:$0xff] %v3772
    %s3808 = scalar_lea.vmem [#allocation1], 1
    %3809 = vst [vmem:[%s3808] ss:$4 sm:$0xff] %v3773
    %s3810 = scalar_lea.vmem [#allocation1], 2
    %3811 = vst [vmem:[%s3810] ss:$4 sm:$0xff] %v3774
    %s3812 = scalar_lea.vmem [#allocation1], 3
    %3813 = vst [vmem:[%s3812] ss:$4 sm:$0xff] %v3775
    %s3814 = scalar_lea.vmem [#allocation1], 32
    %3815 = vst [vmem:[%s3814] ss:$4 sm:$0xff] %v3776
    %s3816 = scalar_lea.vmem [#allocation1], 33
    %3817 = vst [vmem:[%s3816] ss:$4 sm:$0xff] %v3777
    %s3818 = scalar_lea.vmem [#allocation1], 34
    %3819 = vst [vmem:[%s3818] ss:$4 sm:$0xff] %v3778
    %s3820 = scalar_lea.vmem [#allocation1], 35
    %3821 = vst [vmem:[%s3820] ss:$4 sm:$0xff] %v3779
    %v3822 = vld.sshfl [vmem:[#allocation1] sm:$0xff pattern:$0x73625140]
    %v3823 = vld.sshfl [vmem:[#allocation1 + $0x20] sm:$0xff pattern:$0x73625140]
    %3826 = vst [vmem:[#allocation1] ss:$4 sm:$0xff] %v3798
    %s3827 = scalar_lea.vmem [#allocation1], 1
    %3828 = vst [vmem:[%s3827] ss:$4 sm:$0xff] %v3798
    %s3829 = scalar_lea.vmem [#allocation1], 2
    %3830 = vst [vmem:[%s3829] ss:$4 sm:$0xff] %v3798
    %s3831 = scalar_lea.vmem [#allocation1], 3
    %3832 = vst [vmem:[%s3831] ss:$4 sm:$0xff] %v3798
    %s3833 = scalar_lea.vmem [#allocation1], 32
    %3834 = vst [vmem:[%s3833] ss:$4 sm:$0xff] %v3798
    %s3835 = scalar_lea.vmem [#allocation1], 33
    %3836 = vst [vmem:[%s3835] ss:$4 sm:$0xff] %v3798
    %s3837 = scalar_lea.vmem [#allocation1], 34
    %3838 = vst [vmem:[%s3837] ss:$4 sm:$0xff] %v3798
    %s3839 = scalar_lea.vmem [#allocation1], 35
    %3840 = vst [vmem:[%s3839] ss:$4 sm:$0xff] %v3798
    %v3841 = vld.sshfl [vmem:[#allocation1] sm:$0xff pattern:$0x73625140]
    %v3842 = vld.sshfl [vmem:[#allocation1 + $0x20] sm:$0xff pattern:$0x73625140]
    %3845 = vmatpush.msra.mxu0 %v3795
    %3846 = vmatpush.msra.mxu0 %v3794
    %3847 = vmatpush.msra.mxu0 %v3793
    %3848 = vmatpush.msra.mxu0 %v3792
    %3849 = vmatpush.msra.mxu0 %v3791
    %3850 = vmatpush.msra.mxu0 %v3790
    %3851 = vmatpush.msra.mxu0 %v3789
    %3852 = vmatpush.msra.mxu0 %v3788
    %3853 = vmatpush.msra.mxu0 %v3787
    %3854 = vmatpush.msra.mxu0 %v3786
    %3855 = vmatpush.msra.mxu0 %v3785
    %3856 = vmatpush.msra.mxu0 %v3784
    %3857 = vmatpush.msra.mxu0 %v3783
    %3858 = vmatpush.msra.mxu0 %v3782
    %3859 = vmatpush.msra.mxu0 %v3781
    %3860 = vmatpush.msra.mxu0 %v3780
    %3861 = vmatmul.f32.gmra.mxu0 %v3822
    %v3862 = vpop.f32.mrf.mxu0
    %v3863 = vadd.f32 %v3841, %v3862
    %3864 = vmatmul.f32.gmra.mxu0 %v3823
    %v3865 = vpop.f32.mrf.mxu0
    %v3866 = vadd.f32 %v3842, %v3865
    %3867 = vdwg.mxu0
    %v3870 = vrot.slane %v3863, 2
    %v3871 = vrot.slane %v3863, 4
    %v3872 = vrot.slane %v3863, 6
    %v3873 = vrot.slane %v3866, 2
    %v3874 = vrot.slane %v3866, 4
    %v3875 = vrot.slane %v3866, 6
    %3882 = vst [vmem:[#allocation25] sm:$0x3] %v3863
    %3883 = vst [vmem:[#allocation25 + $0x2] sm:$0x3] %v3870
    %3884 = vst [vmem:[#allocation25 + $0x4] sm:$0x3] %v3871
    %3885 = vst [vmem:[#allocation25 + $0x6] sm:$0x3] %v3872
    %3886 = vst [vmem:[#allocation25 + $0x8] sm:$0x3] %v3866
    %3887 = vst [vmem:[#allocation25 + $0xa] sm:$0x3] %v3873
    %3888 = vst [vmem:[#allocation25 + $0xc] sm:$0x3] %v3874
    %3889 = vst [vmem:[#allocation25 + $0xe] sm:$0x3] %v3875
    // Predicated region
    $region118: #{tpu_custom_call.1} parent=1 // pred_check
      _
    $region119: #{tpu_custom_call.1} parent=1 // pred_check_branch
      %3891 = sbr.rel (0) target = $region121
    $region120: #{tpu_custom_call.1} parent=1 // pred_region
      %3893 = vsyncadd [#allocation6], 0
      %s3894 = sshll.u32 [#allocation25], 4
      %s3895 = int_to_ptr.vmem [resolvable:$true] %s3894
      %s3896 = sshll.u32 %s16, 4
      %s3897 = int_to_ptr.hbm [resolvable:$true] %s3896
      %3902 = dma.vmem_to_hbm [thread:$0]  %s3895, 256, %s3897, [#allocation6], 32, 32, 2
    $region121: #{tpu_custom_call.1} parent=1 // pred_fallthru
      _
    // Predicated region
    $region122: #{tpu_custom_call.1} parent=1 // pred_check
      _
    $region123: #{tpu_custom_call.1} parent=1 // pred_check_branch
      %3904 = sbr.rel (0) target = $region125
    $region124: #{tpu_custom_call.1} parent=1 // pred_region
      %3906 = dma.done [#allocation6], 256
    $region125: #{tpu_custom_call.1} parent=1 // pred_fallthru
      _
    %3907 = vsyncpa [#allocation5], 1
    %3908 = vsyncpa [#allocation8], 1
    %3909 = vsyncpa [#allocation11], 1
    %3910 = vsyncpa [#allocation14], 1
    %3911 = vsyncpa [#allocation17], 1
    %3912 = vsyncpa [#allocation20], 1
    %3913 = vsyncpa [#allocation23], 1
    %3914 = vsyncpa [#allocation6], 1

</llo_original>
